<compile_context>
chip_gen: v7x
topology: tpu7x:2x2x1
jax: 0.10.0
libtpu: 0.0.40
codegen_flags: <defaults>
</compile_context>

<pallas_src>
import functools

import jax
import jax.numpy as jnp
from jax import lax
from jax.experimental import pallas as pl
from jax.experimental.pallas import tpu as pltpu

_PAD = 128   # lane halo around the activation body in the shared VMEM scratch


def _log2(v):
    assert v > 0 and (v & (v - 1)) == 0, "power-of-two spatial sizes required"
    return v.bit_length() - 1


def _zero_right_pad(buf_ref, C, N):
    buf_ref[0:C, _PAD + N:_PAD + N + _PAD] = jnp.zeros((C, _PAD), jnp.float32)


def _fill_body(buf_ref, val):
    """Zero the right halo and store the lane-folded activation body."""
    C, N = val.shape
    _zero_right_pad(buf_ref, C, N)
    buf_ref[0:C, _PAD:_PAD + N] = val


def _conv3x3(buf_ref, w_ref, b_ref, *, H, W, N, relu):
    """3x3 conv (stride 1, zero pad 1) on the lane-folded activation stored at
    buf_ref[0:Cin, _PAD:_PAD+N] (N = Bt*H*W, halos are zero).  Each tap is an
    unaligned halo load + iota border mask + bf16 MXU matmul, accumulated in
    f32.  Returns (Cout, N) float32."""
    Cin = w_ref.shape[2]
    lw = _log2(W)
    pos = lax.broadcasted_iota(jnp.int32, (1, N), 1)
    col = pos & (W - 1)
    row = (pos >> lw) & (H - 1)
    ok_r = [row >= 1, row >= 0, row < H - 1]           # dh = -1, 0, +1
    ok_c = [col >= 1, col >= 0, col < W - 1]           # dw = -1, 0, +1
    acc = None
    for k in range(9):
        kh, kw = k // 3, k % 3
        s = (kh - 1) * W + (kw - 1)
        raw = buf_ref[0:Cin, _PAD + s:_PAD + s + N]
        slab = jnp.where(ok_r[kh] & ok_c[kw], raw, 0.0).astype(jnp.bfloat16)
        part = jnp.dot(w_ref[k], slab, preferred_element_type=jnp.float32)
        acc = part if acc is None else acc + part
    y = acc + b_ref[...]
    return jnp.maximum(y, 0.0) if relu else y


def _maxpool2x2(buf_ref, y, *, H, W):
    """2x2 / stride-2 max-pool with PyTorch-style per-image flat argmax.
    y: (C, N) f32 (also stored at buf_ref[0:C, _PAD:_PAD+N] by the caller).
    Down-sample is ONE fused bf16 matmul against an iota-generated one-hot
    matrix; indices stay exact (only window offsets go through the matmul).
    Returns ((C, N//4) f32, (C, N//4) int32)."""
    C, N = y.shape
    W2, HW2 = W // 2, (H // 2) * (W // 2)
    N4 = N // 4
    lw, lw2 = _log2(W), _log2(W2)

    best_v, best_t = y, jnp.zeros_like(y)
    for t in (1, W, W + 1):                 # row-major window order: first max wins
        cand = buf_ref[0:C, _PAD + t:_PAD + t + N]
        take = cand > best_v
        best_v = jnp.where(take, cand, best_v)
        best_t = jnp.where(take, float(t), best_t)

    # one-hot stride-2 selection, generated in-kernel from iota (no HBM constant)
    n = lax.broadcasted_iota(jnp.int32, (N, N4), 0)
    q = lax.broadcasted_iota(jnp.int32, (N, N4), 1)
    r = q & (HW2 - 1)
    src = ((q - r) << 2) + ((r >> lw2) << (lw + 1)) + ((r & (W2 - 1)) << 1)
    sel = (n == src).astype(jnp.bfloat16)

    # fused (values ; window offsets) selection matmul, bf16 in / f32 out
    a = jnp.concatenate([best_v, best_t], axis=0).astype(jnp.bfloat16)
    pooled = jnp.dot(a, sel, preferred_element_type=jnp.float32)
    pooled_v, pooled_t = pooled[0:C], pooled[C:2 * C]

    qo = lax.broadcasted_iota(jnp.int32, (C, N4), 1)
    ro = qo & (HW2 - 1)
    base = ((ro >> lw2) << (lw + 1)) + ((ro & (W2 - 1)) << 1)   # 2*ph*W + 2*pw
    idx = base + (pooled_t + 0.5).astype(jnp.int32)
    return pooled_v, idx


def _patch_embed_kernel(x_ref, w1_ref, b1_ref, w2_ref, b2_ref, w3_ref, b3_ref,
                        out_ref, fea1_ref, idx1_ref, fea2_ref, idx2_ref,
                        buf_ref, *, H, W, Bt):
    HW = H * W
    Cin = w1_ref.shape[2]
    N1, N2, N3 = Bt * HW, Bt * HW // 4, Bt * HW // 16
    S2, S3 = HW // 4, HW // 16                       # per-image pooled sizes

    # shared left halo: zero once per grid step (stages zero their own right halo)
    buf_ref[:, 0:_PAD] = jnp.zeros((buf_ref.shape[0], _PAD), jnp.float32)

    # ---- conv1 + relu --------------------------------------------------------
    _zero_right_pad(buf_ref, Cin, N1)
    for b in range(Bt):                              # fold the batch block onto lanes
        buf_ref[0:Cin, _PAD + b * HW:_PAD + (b + 1) * HW] = x_ref[b]
    y1 = _conv3x3(buf_ref, w1_ref, b1_ref, H=H, W=W, N=N1, relu=True)
    for b in range(Bt):
        fea1_ref[b] = y1[:, b * HW:(b + 1) * HW]

    # ---- maxpool1 ------------------------------------------------------------
    _fill_body(buf_ref, y1)
    p1, i1 = _maxpool2x2(buf_ref, y1, H=H, W=W)
    for b in range(Bt):
        idx1_ref[b] = i1[:, b * S2:(b + 1) * S2]

    # ---- conv2 + relu --------------------------------------------------------
    _fill_body(buf_ref, p1)
    y2 = _conv3x3(buf_ref, w2_ref, b2_ref, H=H // 2, W=W // 2, N=N2, relu=True)
    for b in range(Bt):
        fea2_ref[b] = y2[:, b * S2:(b + 1) * S2]

    # ---- maxpool2 ------------------------------------------------------------
    _fill_body(buf_ref, y2)
    p2, i2 = _maxpool2x2(buf_ref, y2, H=H // 2, W=W // 2)
    for b in range(Bt):
        idx2_ref[b] = i2[:, b * S3:(b + 1) * S3]

    # ---- conv3 (projection, no relu) ----------------------------------------
    _fill_body(buf_ref, p2)
    y3 = _conv3x3(buf_ref, w3_ref, b3_ref, H=H // 4, W=W // 4, N=N3, relu=False)
    for b in range(Bt):
        out_ref[b] = y3[:, b * S3:(b + 1) * S3]


# ----------------------------------------------------------------------------
# PatchEmbed module (norm_layer=None path)
# ----------------------------------------------------------------------------
class PatchEmbedPallas:
    def __init__(self, img_size=16, patch_size=4, in_chans=4, embed_dim=32,
                 key=None, batch_block_cap=8):
        assert patch_size == 4, "conv/pool x2 + conv pipeline realises a /4 patchify"
        assert img_size % 4 == 0
        _log2(img_size)                           # power-of-two spatial size required
        assert embed_dim % 16 == 0                # sublane-aligned channel counts
        self.img_size = (img_size, img_size)
        self.patch_size = (patch_size, patch_size)
        self.patches_resolution = [img_size // patch_size, img_size // patch_size]
        self.num_patches = self.patches_resolution[0] * self.patches_resolution[1]
        self.in_chans = in_chans
        self.inter_chans = embed_dim // 2
        self.embed_dim = embed_dim
        self.batch_block_cap = batch_block_cap
        # TODO(synk): norm_layer (if provided) is not implemented; default None path only.

        if key is None:
            key = jax.random.PRNGKey(0)
        k1, k2, k3, k4, k5, k6 = jax.random.split(key, 6)
        # f32 master weights, HWIO (3,3,Cin,Cout); deterministic synthetic init
        self.w1 = 0.1 * jax.random.normal(k1, (3, 3, in_chans, self.inter_chans), jnp.float32)
        self.b1 = 0.1 * jax.random.normal(k2, (self.inter_chans,), jnp.float32)
        self.w2 = 0.1 * jax.random.normal(k3, (3, 3, self.inter_chans, embed_dim), jnp.float32)
        self.b2 = 0.1 * jax.random.normal(k4, (embed_dim,), jnp.float32)
        self.w3 = 0.1 * jax.random.normal(k5, (3, 3, embed_dim, embed_dim), jnp.float32)
        self.b3 = 0.1 * jax.random.normal(k6, (embed_dim,), jnp.float32)

        def pack(w):   # HWIO -> (tap, Cout, Cin) bf16, tap = kh*3 + kw
            return (jnp.transpose(w, (0, 1, 3, 2))
                    .reshape(9, w.shape[3], w.shape[2]).astype(jnp.bfloat16))

        self._w1p, self._b1p = pack(self.w1), self.b1.reshape(-1, 1)
        self._w2p, self._b2p = pack(self.w2), self.b2.reshape(-1, 1)
        self._w3p, self._b3p = pack(self.w3), self.b3.reshape(-1, 1)

        self._forward = jax.jit(self._forward_impl)

    @staticmethod
    def _batch_block(B, cap):
        bt = 1
        for d in range(1, min(B, cap) + 1):
            if B % d == 0:
                bt = d
        return bt

    def _forward_impl(self, x_nchw):
        B, Cin, H, W = x_nchw.shape
        assert (Cin, H, W) == (self.in_chans, *self.img_size)
        C1, C2 = self.inter_chans, self.embed_dim
        H2, W2, H4, W4 = H // 2, W // 2, H // 4, W // 4
        Bt = self._batch_block(B, self.batch_block_cap)
        grid = (B // Bt,)
        x_flat = x_nchw.reshape(B, Cin, H * W)

        kernel = functools.partial(_patch_embed_kernel, H=H, W=W, Bt=Bt)

        def full(a):
            nd = a.ndim
            return pl.BlockSpec(a.shape, lambda i: (0,) * nd)

        def blk(c, n):
            return pl.BlockSpec((Bt, c, n), lambda i: (i, 0, 0))

        out_cn, fea1, idx1, fea2, idx2 = pl.pallas_call(
            kernel,
            out_shape=(
                jax.ShapeDtypeStruct((B, C2, H4 * W4), jnp.float32),
                jax.ShapeDtypeStruct((B, C1, H * W), jnp.float32),
                jax.ShapeDtypeStruct((B, C1, H2 * W2), jnp.int32),
                jax.ShapeDtypeStruct((B, C2, H2 * W2), jnp.float32),
                jax.ShapeDtypeStruct((B, C2, H4 * W4), jnp.int32),
            ),
            grid=grid,
            in_specs=[
                blk(Cin, H * W),
                full(self._w1p), full(self._b1p),
                full(self._w2p), full(self._b2p),
                full(self._w3p), full(self._b3p),
            ],
            out_specs=[
                blk(C2, H4 * W4),
                blk(C1, H * W),
                blk(C1, H2 * W2),
                blk(C2, H2 * W2),
                blk(C2, H4 * W4),
            ],
            scratch_shapes=[
                pltpu.VMEM((max(Cin, C1, C2), 2 * _PAD + Bt * H * W), jnp.float32),
            ],
            compiler_params=pltpu.CompilerParams(
                dimension_semantics=("parallel",),
                vmem_limit_bytes=32 * 1024 * 1024),
        )(x_flat, self._w1p, self._b1p, self._w2p, self._b2p,
          self._w3p, self._b3p)

        out = jnp.transpose(out_cn, (0, 2, 1))           # (B, num_patches, embed_dim)
        # TODO(synk): PyTorch returns int64 pooling indices; JAX (x64 off) uses int32.
        return (out,
                [idx1.reshape(B, C1, H2, W2), idx2.reshape(B, C2, H4, W4)],
                [fea1.reshape(B, C1, H, W), fea2.reshape(B, C2, H2, W2)])

    def __call__(self, x_nchw):
        return self._forward(x_nchw)


# ----------------------------------------------------------------------------
# Pure-JAX f32 reference for validation (NCHW, like PyTorch)
# ----------------------------------------------------------------------------
def _ref_conv(x_nchw, w_hwio, b):
    w_oihw = jnp.transpose(w_hwio, (3, 2, 0, 1))
    y = lax.conv_general_dilated(
        x_nchw, w_oihw, (1, 1), "SAME",
        dimension_numbers=("NCHW", "OIHW", "NCHW"),
        precision=lax.Precision.HIGHEST)
    return y + b[None, :, None, None]


def _ref_pool(x_nchw):
    return lax.reduce_window(x_nchw, -jnp.inf, lax.max,
                             (1, 1, 2, 2), (1, 1, 2, 2), "VALID")


if __name__ == "__main__":
    key = jax.random.PRNGKey(0)
    kx, kp = jax.random.split(key)

    B, Cin, Hs, Ws = 2, 4, 16, 16
    embed_dim = 32
    x = jax.random.normal(kx, (B, Cin, Hs, Ws), jnp.float32)

    model = PatchEmbedPallas(img_size=Hs, patch_size=4, in_chans=Cin,
                             embed_dim=embed_dim, key=kp)
    out, (idx1, idx2), (fea1, fea2) = model(x)
    jax.block_until_ready((out, idx1, idx2, fea1, fea2))

    # ---- reference check (kernel uses bf16 MXU operands -> ~1% tolerance) ----
    r1 = jnp.maximum(_ref_conv(x, model.w1, model.b1), 0.0)
    rp1 = _ref_pool(r1)
    r2 = jnp.maximum(_ref_conv(rp1, model.w2, model.b2), 0.0)
    rp2 = _ref_pool(r2)
    r3 = _ref_conv(rp2, model.w3, model.b3)
    ref_out = jnp.transpose(r3.reshape(B, embed_dim, -1), (0, 2, 1))

    tol = dict(atol=3e-2, rtol=3e-2)
    assert out.shape == (B, model.num_patches, embed_dim)
    assert jnp.allclose(fea1, r1, **tol)
    assert jnp.allclose(fea2, r2, **tol)
    assert jnp.allclose(out, ref_out, **tol)

    # pooling-index sanity: gathering the kernel's own features at the returned
    # indices must reproduce the exact pooled max (argmax is decided in f32)
    g1 = jnp.take_along_axis(fea1.reshape(B, model.inter_chans, -1),
                             idx1.reshape(B, model.inter_chans, -1), axis=2)
    assert jnp.allclose(g1.reshape(idx1.shape), _ref_pool(fea1))
    g2 = jnp.take_along_axis(fea2.reshape(B, embed_dim, -1),
                             idx2.reshape(B, embed_dim, -1), axis=2)
    assert jnp.allclose(g2.reshape(idx2.shape), _ref_pool(fea2))

    print("KERNEL_OK")
</pallas_src>

<mosaic_0001>
module attributes {stable_mosaic.version = 11 : i64} {
  func.func @_patch_embed_kernel(%arg0: i32, %arg1: memref<2x4x256xf32, #tpu.memory_space<vmem>>, %arg2: memref<9x16x4xbf16, #tpu.memory_space<vmem>>, %arg3: memref<16x1xf32, #tpu.memory_space<vmem>>, %arg4: memref<9x32x16xbf16, #tpu.memory_space<vmem>>, %arg5: memref<32x1xf32, #tpu.memory_space<vmem>>, %arg6: memref<9x32x32xbf16, #tpu.memory_space<vmem>>, %arg7: memref<32x1xf32, #tpu.memory_space<vmem>>, %arg8: memref<2x32x16xf32, #tpu.memory_space<vmem>>, %arg9: memref<2x16x256xf32, #tpu.memory_space<vmem>>, %arg10: memref<2x16x64xi32, #tpu.memory_space<vmem>>, %arg11: memref<2x32x64xf32, #tpu.memory_space<vmem>>, %arg12: memref<2x32x16xi32, #tpu.memory_space<vmem>>, %arg13: memref<32x768xf32, #tpu.memory_space<vmem>>) attributes {dimension_semantics = [#tpu.dimension_semantics<parallel>], iteration_bounds = array<i64: 1>, scalar_prefetch = 0 : i64, scratch_operands = 1 : i64, tpu.core_type = #tpu.core_type<tc>, window_params = [{transform_indices = @transform_0, window_bounds = array<i64: 2, 4, 256>}, {pipeline_mode = #tpu.pipeline_mode<synchronous>, transform_indices = @transform_1, window_bounds = array<i64: 9, 16, 4>}, {pipeline_mode = #tpu.pipeline_mode<synchronous>, transform_indices = @transform_2, window_bounds = array<i64: 16, 1>}, {pipeline_mode = #tpu.pipeline_mode<synchronous>, transform_indices = @transform_3, window_bounds = array<i64: 9, 32, 16>}, {pipeline_mode = #tpu.pipeline_mode<synchronous>, transform_indices = @transform_4, window_bounds = array<i64: 32, 1>}, {pipeline_mode = #tpu.pipeline_mode<synchronous>, transform_indices = @transform_5, window_bounds = array<i64: 9, 32, 32>}, {pipeline_mode = #tpu.pipeline_mode<synchronous>, transform_indices = @transform_6, window_bounds = array<i64: 32, 1>}, {transform_indices = @transform_7, window_bounds = array<i64: 2, 32, 16>}, {transform_indices = @transform_8, window_bounds = array<i64: 2, 16, 256>}, {transform_indices = @transform_9, window_bounds = array<i64: 2, 16, 64>}, {transform_indices = @transform_10, window_bounds = array<i64: 2, 32, 64>}, {transform_indices = @transform_11, window_bounds = array<i64: 2, 32, 16>}]} {
    %cst = arith.constant 0.000000e+00 : f32
    %0 = vector.broadcast %cst : f32 to vector<32x128xf32>
    %c0 = arith.constant 0 : index
    %c0_0 = arith.constant 0 : index
    %1 = vector.load %arg13[%c0, %c0_0] : memref<32x768xf32, #tpu.memory_space<vmem>>, vector<32x128xf32>
    tpu.vector_store %arg13[%c0, %c0_0], %0 {strides = array<i32>} : memref<32x768xf32, #tpu.memory_space<vmem>>, vector<32x128xf32>,
    %cst_1 = arith.constant 0.000000e+00 : f32
    %2 = vector.broadcast %cst_1 : f32 to vector<4x128xf32>
    %c0_2 = arith.constant 0 : index
    %c640 = arith.constant 640 : index
    %3 = vector.load %arg13[%c0_2, %c640] : memref<32x768xf32, #tpu.memory_space<vmem>>, vector<4x128xf32>
    tpu.vector_store %arg13[%c0_2, %c640], %2 {strides = array<i32>} : memref<32x768xf32, #tpu.memory_space<vmem>>, vector<4x128xf32>,
    %c0_3 = arith.constant 0 : index
    %c0_4 = arith.constant 0 : index
    %c0_5 = arith.constant 0 : index
    %4 = vector.load %arg1[%c0_3, %c0_4, %c0_5] : memref<2x4x256xf32, #tpu.memory_space<vmem>>, vector<1x4x256xf32>
    %5 = vector.shape_cast %4 : vector<1x4x256xf32> to vector<4x256xf32>
    %c0_6 = arith.constant 0 : index
    %c128 = arith.constant 128 : index
    %6 = vector.load %arg13[%c0_6, %c128] : memref<32x768xf32, #tpu.memory_space<vmem>>, vector<4x256xf32>
    tpu.vector_store %arg13[%c0_6, %c128], %5 {strides = array<i32>} : memref<32x768xf32, #tpu.memory_space<vmem>>, vector<4x256xf32>,
    %c1 = arith.constant 1 : index
    %c0_7 = arith.constant 0 : index
    %c0_8 = arith.constant 0 : index
    %7 = vector.load %arg1[%c1, %c0_7, %c0_8] : memref<2x4x256xf32, #tpu.memory_space<vmem>>, vector<1x4x256xf32>
    %8 = vector.shape_cast %7 : vector<1x4x256xf32> to vector<4x256xf32>
    %c0_9 = arith.constant 0 : index
    %c384 = arith.constant 384 : index
    %9 = vector.load %arg13[%c0_9, %c384] : memref<32x768xf32, #tpu.memory_space<vmem>>, vector<4x256xf32>
    tpu.vector_store %arg13[%c0_9, %c384], %8 {strides = array<i32>} : memref<32x768xf32, #tpu.memory_space<vmem>>, vector<4x256xf32>,
    %10 = tpu.iota {dimensions = array<i32: 1>} : vector<1x512xi32>
    %c15_i32 = arith.constant 15 : i32
    %11 = vector.broadcast %c15_i32 : i32 to vector<1x512xi32>
    %12 = arith.andi %10, %11 : vector<1x512xi32>
    %c4_i32 = arith.constant 4 : i32
    %13 = vector.broadcast %c4_i32 : i32 to vector<1x512xi32>
    %14 = arith.shrsi %10, %13 : vector<1x512xi32>
    %c15_i32_10 = arith.constant 15 : i32
    %15 = vector.broadcast %c15_i32_10 : i32 to vector<1x512xi32>
    %16 = arith.andi %14, %15 : vector<1x512xi32>
    %c1_i32 = arith.constant 1 : i32
    %17 = vector.broadcast %c1_i32 : i32 to vector<1x512xi32>
    %18 = arith.cmpi sge, %16, %17 : vector<1x512xi32>
    %c0_i32 = arith.constant 0 : i32
    %19 = vector.broadcast %c0_i32 : i32 to vector<1x512xi32>
    %20 = arith.cmpi sge, %16, %19 : vector<1x512xi32>
    %c15_i32_11 = arith.constant 15 : i32
    %21 = vector.broadcast %c15_i32_11 : i32 to vector<1x512xi32>
    %22 = arith.cmpi slt, %16, %21 : vector<1x512xi32>
    %c1_i32_12 = arith.constant 1 : i32
    %23 = vector.broadcast %c1_i32_12 : i32 to vector<1x512xi32>
    %24 = arith.cmpi sge, %12, %23 : vector<1x512xi32>
    %c0_i32_13 = arith.constant 0 : i32
    %25 = vector.broadcast %c0_i32_13 : i32 to vector<1x512xi32>
    %26 = arith.cmpi sge, %12, %25 : vector<1x512xi32>
    %c15_i32_14 = arith.constant 15 : i32
    %27 = vector.broadcast %c15_i32_14 : i32 to vector<1x512xi32>
    %28 = arith.cmpi slt, %12, %27 : vector<1x512xi32>
    %c0_15 = arith.constant 0 : index
    %c111 = arith.constant 111 : index
    %29 = vector.load %arg13[%c0_15, %c111] : memref<32x768xf32, #tpu.memory_space<vmem>>, vector<4x512xf32>
    %30 = arith.andi %18, %24 : vector<1x512xi1>
    %cst_16 = arith.constant 0.000000e+00 : f32
    %31 = vector.shape_cast %30 : vector<1x512xi1> to vector<1x512xi1>
    %32 = vector.broadcast %31 : vector<1x512xi1> to vector<4x512xi1>
    %33 = vector.broadcast %cst_16 : f32 to vector<4x512xf32>
    %34 = arith.select %32, %29, %33 : vector<4x512xi1>, vector<4x512xf32>
    %35 = arith.truncf %34 : vector<4x512xf32> to vector<4x512xbf16>
    %c0_17 = arith.constant 0 : index
    %c0_18 = arith.constant 0 : index
    %c0_19 = arith.constant 0 : index
    %36 = vector.load %arg2[%c0_17, %c0_18, %c0_19] : memref<9x16x4xbf16, #tpu.memory_space<vmem>>, vector<1x16x4xbf16>
    %37 = vector.shape_cast %36 : vector<1x16x4xbf16> to vector<16x4xbf16>
    %cst_20 = arith.constant dense<0.000000e+00> : vector<16x512xf32>
    %38 = tpu.matmul %37, %35, %cst_20 {dimension_numbers = #tpu.dot_dimension_numbers<[1], [0], [0], [1], [0, 0, 1, 1], [], []>} : vector<16x4xbf16>, vector<4x512xbf16>, vector<16x512xf32> -> vector<16x512xf32>
    %c0_21 = arith.constant 0 : index
    %c112 = arith.constant 112 : index
    %39 = vector.load %arg13[%c0_21, %c112] : memref<32x768xf32, #tpu.memory_space<vmem>>, vector<4x512xf32>
    %40 = arith.andi %18, %26 : vector<1x512xi1>
    %cst_22 = arith.constant 0.000000e+00 : f32
    %41 = vector.shape_cast %40 : vector<1x512xi1> to vector<1x512xi1>
    %42 = vector.broadcast %41 : vector<1x512xi1> to vector<4x512xi1>
    %43 = vector.broadcast %cst_22 : f32 to vector<4x512xf32>
    %44 = arith.select %42, %39, %43 : vector<4x512xi1>, vector<4x512xf32>
    %45 = arith.truncf %44 : vector<4x512xf32> to vector<4x512xbf16>
    %c1_23 = arith.constant 1 : index
    %c0_24 = arith.constant 0 : index
    %c0_25 = arith.constant 0 : index
    %46 = vector.load %arg2[%c1_23, %c0_24, %c0_25] : memref<9x16x4xbf16, #tpu.memory_space<vmem>>, vector<1x16x4xbf16>
    %47 = vector.shape_cast %46 : vector<1x16x4xbf16> to vector<16x4xbf16>
    %cst_26 = arith.constant dense<0.000000e+00> : vector<16x512xf32>
    %48 = tpu.matmul %47, %45, %cst_26 {dimension_numbers = #tpu.dot_dimension_numbers<[1], [0], [0], [1], [0, 0, 1, 1], [], []>} : vector<16x4xbf16>, vector<4x512xbf16>, vector<16x512xf32> -> vector<16x512xf32>
    %49 = arith.addf %38, %48 : vector<16x512xf32>
    %c0_27 = arith.constant 0 : index
    %c113 = arith.constant 113 : index
    %50 = vector.load %arg13[%c0_27, %c113] : memref<32x768xf32, #tpu.memory_space<vmem>>, vector<4x512xf32>
    %51 = arith.andi %18, %28 : vector<1x512xi1>
    %cst_28 = arith.constant 0.000000e+00 : f32
    %52 = vector.shape_cast %51 : vector<1x512xi1> to vector<1x512xi1>
    %53 = vector.broadcast %52 : vector<1x512xi1> to vector<4x512xi1>
    %54 = vector.broadcast %cst_28 : f32 to vector<4x512xf32>
    %55 = arith.select %53, %50, %54 : vector<4x512xi1>, vector<4x512xf32>
    %56 = arith.truncf %55 : vector<4x512xf32> to vector<4x512xbf16>
    %c2 = arith.constant 2 : index
    %c0_29 = arith.constant 0 : index
    %c0_30 = arith.constant 0 : index
    %57 = vector.load %arg2[%c2, %c0_29, %c0_30] : memref<9x16x4xbf16, #tpu.memory_space<vmem>>, vector<1x16x4xbf16>
    %58 = vector.shape_cast %57 : vector<1x16x4xbf16> to vector<16x4xbf16>
    %cst_31 = arith.constant dense<0.000000e+00> : vector<16x512xf32>
    %59 = tpu.matmul %58, %56, %cst_31 {dimension_numbers = #tpu.dot_dimension_numbers<[1], [0], [0], [1], [0, 0, 1, 1], [], []>} : vector<16x4xbf16>, vector<4x512xbf16>, vector<16x512xf32> -> vector<16x512xf32>
    %60 = arith.addf %49, %59 : vector<16x512xf32>
    %c0_32 = arith.constant 0 : index
    %c127 = arith.constant 127 : index
    %61 = vector.load %arg13[%c0_32, %c127] : memref<32x768xf32, #tpu.memory_space<vmem>>, vector<4x512xf32>
    %62 = arith.andi %20, %24 : vector<1x512xi1>
    %cst_33 = arith.constant 0.000000e+00 : f32
    %63 = vector.shape_cast %62 : vector<1x512xi1> to vector<1x512xi1>
    %64 = vector.broadcast %63 : vector<1x512xi1> to vector<4x512xi1>
    %65 = vector.broadcast %cst_33 : f32 to vector<4x512xf32>
    %66 = arith.select %64, %61, %65 : vector<4x512xi1>, vector<4x512xf32>
    %67 = arith.truncf %66 : vector<4x512xf32> to vector<4x512xbf16>
    %c3 = arith.constant 3 : index
    %c0_34 = arith.constant 0 : index
    %c0_35 = arith.constant 0 : index
    %68 = vector.load %arg2[%c3, %c0_34, %c0_35] : memref<9x16x4xbf16, #tpu.memory_space<vmem>>, vector<1x16x4xbf16>
    %69 = vector.shape_cast %68 : vector<1x16x4xbf16> to vector<16x4xbf16>
    %cst_36 = arith.constant dense<0.000000e+00> : vector<16x512xf32>
    %70 = tpu.matmul %69, %67, %cst_36 {dimension_numbers = #tpu.dot_dimension_numbers<[1], [0], [0], [1], [0, 0, 1, 1], [], []>} : vector<16x4xbf16>, vector<4x512xbf16>, vector<16x512xf32> -> vector<16x512xf32>
    %71 = arith.addf %60, %70 : vector<16x512xf32>
    %c0_37 = arith.constant 0 : index
    %c128_38 = arith.constant 128 : index
    %72 = vector.load %arg13[%c0_37, %c128_38] : memref<32x768xf32, #tpu.memory_space<vmem>>, vector<4x512xf32>
    %73 = arith.andi %20, %26 : vector<1x512xi1>
    %cst_39 = arith.constant 0.000000e+00 : f32
    %74 = vector.shape_cast %73 : vector<1x512xi1> to vector<1x512xi1>
    %75 = vector.broadcast %74 : vector<1x512xi1> to vector<4x512xi1>
    %76 = vector.broadcast %cst_39 : f32 to vector<4x512xf32>
    %77 = arith.select %75, %72, %76 : vector<4x512xi1>, vector<4x512xf32>
    %78 = arith.truncf %77 : vector<4x512xf32> to vector<4x512xbf16>
    %c4 = arith.constant 4 : index
    %c0_40 = arith.constant 0 : index
    %c0_41 = arith.constant 0 : index
    %79 = vector.load %arg2[%c4, %c0_40, %c0_41] : memref<9x16x4xbf16, #tpu.memory_space<vmem>>, vector<1x16x4xbf16>
    %80 = vector.shape_cast %79 : vector<1x16x4xbf16> to vector<16x4xbf16>
    %cst_42 = arith.constant dense<0.000000e+00> : vector<16x512xf32>
    %81 = tpu.matmul %80, %78, %cst_42 {dimension_numbers = #tpu.dot_dimension_numbers<[1], [0], [0], [1], [0, 0, 1, 1], [], []>} : vector<16x4xbf16>, vector<4x512xbf16>, vector<16x512xf32> -> vector<16x512xf32>
    %82 = arith.addf %71, %81 : vector<16x512xf32>
    %c0_43 = arith.constant 0 : index
    %c129 = arith.constant 129 : index
    %83 = vector.load %arg13[%c0_43, %c129] : memref<32x768xf32, #tpu.memory_space<vmem>>, vector<4x512xf32>
    %84 = arith.andi %20, %28 : vector<1x512xi1>
    %cst_44 = arith.constant 0.000000e+00 : f32
    %85 = vector.shape_cast %84 : vector<1x512xi1> to vector<1x512xi1>
    %86 = vector.broadcast %85 : vector<1x512xi1> to vector<4x512xi1>
    %87 = vector.broadcast %cst_44 : f32 to vector<4x512xf32>
    %88 = arith.select %86, %83, %87 : vector<4x512xi1>, vector<4x512xf32>
    %89 = arith.truncf %88 : vector<4x512xf32> to vector<4x512xbf16>
    %c5 = arith.constant 5 : index
    %c0_45 = arith.constant 0 : index
    %c0_46 = arith.constant 0 : index
    %90 = vector.load %arg2[%c5, %c0_45, %c0_46] : memref<9x16x4xbf16, #tpu.memory_space<vmem>>, vector<1x16x4xbf16>
    %91 = vector.shape_cast %90 : vector<1x16x4xbf16> to vector<16x4xbf16>
    %cst_47 = arith.constant dense<0.000000e+00> : vector<16x512xf32>
    %92 = tpu.matmul %91, %89, %cst_47 {dimension_numbers = #tpu.dot_dimension_numbers<[1], [0], [0], [1], [0, 0, 1, 1], [], []>} : vector<16x4xbf16>, vector<4x512xbf16>, vector<16x512xf32> -> vector<16x512xf32>
    %93 = arith.addf %82, %92 : vector<16x512xf32>
    %c0_48 = arith.constant 0 : index
    %c143 = arith.constant 143 : index
    %94 = vector.load %arg13[%c0_48, %c143] : memref<32x768xf32, #tpu.memory_space<vmem>>, vector<4x512xf32>
    %95 = arith.andi %22, %24 : vector<1x512xi1>
    %cst_49 = arith.constant 0.000000e+00 : f32
    %96 = vector.shape_cast %95 : vector<1x512xi1> to vector<1x512xi1>
    %97 = vector.broadcast %96 : vector<1x512xi1> to vector<4x512xi1>
    %98 = vector.broadcast %cst_49 : f32 to vector<4x512xf32>
    %99 = arith.select %97, %94, %98 : vector<4x512xi1>, vector<4x512xf32>
    %100 = arith.truncf %99 : vector<4x512xf32> to vector<4x512xbf16>
    %c6 = arith.constant 6 : index
    %c0_50 = arith.constant 0 : index
    %c0_51 = arith.constant 0 : index
    %101 = vector.load %arg2[%c6, %c0_50, %c0_51] : memref<9x16x4xbf16, #tpu.memory_space<vmem>>, vector<1x16x4xbf16>
    %102 = vector.shape_cast %101 : vector<1x16x4xbf16> to vector<16x4xbf16>
    %cst_52 = arith.constant dense<0.000000e+00> : vector<16x512xf32>
    %103 = tpu.matmul %102, %100, %cst_52 {dimension_numbers = #tpu.dot_dimension_numbers<[1], [0], [0], [1], [0, 0, 1, 1], [], []>} : vector<16x4xbf16>, vector<4x512xbf16>, vector<16x512xf32> -> vector<16x512xf32>
    %104 = arith.addf %93, %103 : vector<16x512xf32>
    %c0_53 = arith.constant 0 : index
    %c144 = arith.constant 144 : index
    %105 = vector.load %arg13[%c0_53, %c144] : memref<32x768xf32, #tpu.memory_space<vmem>>, vector<4x512xf32>
    %106 = arith.andi %22, %26 : vector<1x512xi1>
    %cst_54 = arith.constant 0.000000e+00 : f32
    %107 = vector.shape_cast %106 : vector<1x512xi1> to vector<1x512xi1>
    %108 = vector.broadcast %107 : vector<1x512xi1> to vector<4x512xi1>
    %109 = vector.broadcast %cst_54 : f32 to vector<4x512xf32>
    %110 = arith.select %108, %105, %109 : vector<4x512xi1>, vector<4x512xf32>
    %111 = arith.truncf %110 : vector<4x512xf32> to vector<4x512xbf16>
    %c7 = arith.constant 7 : index
    %c0_55 = arith.constant 0 : index
    %c0_56 = arith.constant 0 : index
    %112 = vector.load %arg2[%c7, %c0_55, %c0_56] : memref<9x16x4xbf16, #tpu.memory_space<vmem>>, vector<1x16x4xbf16>
    %113 = vector.shape_cast %112 : vector<1x16x4xbf16> to vector<16x4xbf16>
    %cst_57 = arith.constant dense<0.000000e+00> : vector<16x512xf32>
    %114 = tpu.matmul %113, %111, %cst_57 {dimension_numbers = #tpu.dot_dimension_numbers<[1], [0], [0], [1], [0, 0, 1, 1], [], []>} : vector<16x4xbf16>, vector<4x512xbf16>, vector<16x512xf32> -> vector<16x512xf32>
    %115 = arith.addf %104, %114 : vector<16x512xf32>
    %c0_58 = arith.constant 0 : index
    %c145 = arith.constant 145 : index
    %116 = vector.load %arg13[%c0_58, %c145] : memref<32x768xf32, #tpu.memory_space<vmem>>, vector<4x512xf32>
    %117 = arith.andi %22, %28 : vector<1x512xi1>
    %cst_59 = arith.constant 0.000000e+00 : f32
    %118 = vector.shape_cast %117 : vector<1x512xi1> to vector<1x512xi1>
    %119 = vector.broadcast %118 : vector<1x512xi1> to vector<4x512xi1>
    %120 = vector.broadcast %cst_59 : f32 to vector<4x512xf32>
    %121 = arith.select %119, %116, %120 : vector<4x512xi1>, vector<4x512xf32>
    %122 = arith.truncf %121 : vector<4x512xf32> to vector<4x512xbf16>
    %c8 = arith.constant 8 : index
    %c0_60 = arith.constant 0 : index
    %c0_61 = arith.constant 0 : index
    %123 = vector.load %arg2[%c8, %c0_60, %c0_61] : memref<9x16x4xbf16, #tpu.memory_space<vmem>>, vector<1x16x4xbf16>
    %124 = vector.shape_cast %123 : vector<1x16x4xbf16> to vector<16x4xbf16>
    %cst_62 = arith.constant dense<0.000000e+00> : vector<16x512xf32>
    %125 = tpu.matmul %124, %122, %cst_62 {dimension_numbers = #tpu.dot_dimension_numbers<[1], [0], [0], [1], [0, 0, 1, 1], [], []>} : vector<16x4xbf16>, vector<4x512xbf16>, vector<16x512xf32> -> vector<16x512xf32>
    %126 = arith.addf %115, %125 : vector<16x512xf32>
    %c0_63 = arith.constant 0 : index
    %c0_64 = arith.constant 0 : index
    %127 = vector.load %arg3[%c0_63, %c0_64] : memref<16x1xf32, #tpu.memory_space<vmem>>, vector<16x1xf32>
    %128 = vector.broadcast %127 : vector<16x1xf32> to vector<16x512xf32>
    %129 = arith.addf %126, %128 : vector<16x512xf32>
    %cst_65 = arith.constant 0.000000e+00 : f32
    %130 = vector.broadcast %cst_65 : f32 to vector<16x512xf32>
    %131 = arith.maximumf %129, %130 : vector<16x512xf32>
    %132 = vector.extract_strided_slice %131 {offsets = [0, 0], sizes = [16, 256], strides = [1, 1]} : vector<16x512xf32> to vector<16x256xf32>
    %c0_66 = arith.constant 0 : index
    %c0_67 = arith.constant 0 : index
    %c0_68 = arith.constant 0 : index
    %133 = vector.load %arg9[%c0_66, %c0_67, %c0_68] : memref<2x16x256xf32, #tpu.memory_space<vmem>>, vector<1x16x256xf32>
    %134 = vector.shape_cast %133 : vector<1x16x256xf32> to vector<16x256xf32>
    %135 = vector.shape_cast %132 : vector<16x256xf32> to vector<1x16x256xf32>
    tpu.vector_store %arg9[%c0_66, %c0_67, %c0_68], %135 {strides = array<i32>} : memref<2x16x256xf32, #tpu.memory_space<vmem>>, vector<1x16x256xf32>,
    %136 = vector.extract_strided_slice %131 {offsets = [0, 256], sizes = [16, 256], strides = [1, 1]} : vector<16x512xf32> to vector<16x256xf32>
    %c1_69 = arith.constant 1 : index
    %c0_70 = arith.constant 0 : index
    %c0_71 = arith.constant 0 : index
    %137 = vector.load %arg9[%c1_69, %c0_70, %c0_71] : memref<2x16x256xf32, #tpu.memory_space<vmem>>, vector<1x16x256xf32>
    %138 = vector.shape_cast %137 : vector<1x16x256xf32> to vector<16x256xf32>
    %139 = vector.shape_cast %136 : vector<16x256xf32> to vector<1x16x256xf32>
    tpu.vector_store %arg9[%c1_69, %c0_70, %c0_71], %139 {strides = array<i32>} : memref<2x16x256xf32, #tpu.memory_space<vmem>>, vector<1x16x256xf32>,
    %cst_72 = arith.constant 0.000000e+00 : f32
    %140 = vector.broadcast %cst_72 : f32 to vector<16x128xf32>
    %c0_73 = arith.constant 0 : index
    %c640_74 = arith.constant 640 : index
    %141 = vector.load %arg13[%c0_73, %c640_74] : memref<32x768xf32, #tpu.memory_space<vmem>>, vector<16x128xf32>
    tpu.vector_store %arg13[%c0_73, %c640_74], %140 {strides = array<i32>} : memref<32x768xf32, #tpu.memory_space<vmem>>, vector<16x128xf32>,
    %c0_75 = arith.constant 0 : index
    %c128_76 = arith.constant 128 : index
    %142 = vector.load %arg13[%c0_75, %c128_76] : memref<32x768xf32, #tpu.memory_space<vmem>>, vector<16x512xf32>
    tpu.vector_store %arg13[%c0_75, %c128_76], %131 {strides = array<i32>} : memref<32x768xf32, #tpu.memory_space<vmem>>, vector<16x512xf32>,
    %cst_77 = arith.constant 0.000000e+00 : f32
    %143 = vector.broadcast %cst_77 : f32 to vector<16x512xf32>
    %c0_78 = arith.constant 0 : index
    %c129_79 = arith.constant 129 : index
    %144 = vector.load %arg13[%c0_78, %c129_79] : memref<32x768xf32, #tpu.memory_space<vmem>>, vector<16x512xf32>
    %145 = arith.cmpf ogt, %144, %131 : vector<16x512xf32>
    %146 = arith.select %145, %144, %131 : vector<16x512xi1>, vector<16x512xf32>
    %cst_80 = arith.constant 1.000000e+00 : f32
    %147 = vector.broadcast %cst_80 : f32 to vector<16x512xf32>
    %148 = arith.select %145, %147, %143 : vector<16x512xi1>, vector<16x512xf32>
    %c0_81 = arith.constant 0 : index
    %c144_82 = arith.constant 144 : index
    %149 = vector.load %arg13[%c0_81, %c144_82] : memref<32x768xf32, #tpu.memory_space<vmem>>, vector<16x512xf32>
    %150 = arith.cmpf ogt, %149, %146 : vector<16x512xf32>
    %151 = arith.select %150, %149, %146 : vector<16x512xi1>, vector<16x512xf32>
    %cst_83 = arith.constant 1.600000e+01 : f32
    %152 = vector.broadcast %cst_83 : f32 to vector<16x512xf32>
    %153 = arith.select %150, %152, %148 : vector<16x512xi1>, vector<16x512xf32>
    %c0_84 = arith.constant 0 : index
    %c145_85 = arith.constant 145 : index
    %154 = vector.load %arg13[%c0_84, %c145_85] : memref<32x768xf32, #tpu.memory_space<vmem>>, vector<16x512xf32>
    %155 = arith.cmpf ogt, %154, %151 : vector<16x512xf32>
    %156 = arith.select %155, %154, %151 : vector<16x512xi1>, vector<16x512xf32>
    %cst_86 = arith.constant 1.700000e+01 : f32
    %157 = vector.broadcast %cst_86 : f32 to vector<16x512xf32>
    %158 = arith.select %155, %157, %153 : vector<16x512xi1>, vector<16x512xf32>
    %159 = tpu.iota {dimensions = array<i32: 0>} : vector<512x128xi32>
    %160 = tpu.iota {dimensions = array<i32: 1>} : vector<512x128xi32>
    %c63_i32 = arith.constant 63 : i32
    %161 = vector.broadcast %c63_i32 : i32 to vector<512x128xi32>
    %162 = arith.andi %160, %161 : vector<512x128xi32>
    %163 = arith.subi %160, %162 : vector<512x128xi32>
    %c2_i32 = arith.constant 2 : i32
    %164 = vector.broadcast %c2_i32 : i32 to vector<512x128xi32>
    %165 = arith.shli %163, %164 : vector<512x128xi32>
    %c3_i32 = arith.constant 3 : i32
    %166 = vector.broadcast %c3_i32 : i32 to vector<512x128xi32>
    %167 = arith.shrsi %162, %166 : vector<512x128xi32>
    %c5_i32 = arith.constant 5 : i32
    %168 = vector.broadcast %c5_i32 : i32 to vector<512x128xi32>
    %169 = arith.shli %167, %168 : vector<512x128xi32>
    %170 = arith.addi %165, %169 : vector<512x128xi32>
    %c7_i32 = arith.constant 7 : i32
    %171 = vector.broadcast %c7_i32 : i32 to vector<512x128xi32>
    %172 = arith.andi %162, %171 : vector<512x128xi32>
    %c1_i32_87 = arith.constant 1 : i32
    %173 = vector.broadcast %c1_i32_87 : i32 to vector<512x128xi32>
    %174 = arith.shli %172, %173 : vector<512x128xi32>
    %175 = arith.addi %170, %174 : vector<512x128xi32>
    %176 = arith.cmpi eq, %159, %175 : vector<512x128xi32>
    %177 = arith.extui %176 : vector<512x128xi1> to vector<512x128xi32>
    %178 = arith.sitofp %177 : vector<512x128xi32> to vector<512x128xf32>
    %179 = arith.truncf %178 : vector<512x128xf32> to vector<512x128xbf16>
    %180 = tpu.concatenate %156, %158 in 0 : vector<16x512xf32>, vector<16x512xf32> -> vector<32x512xf32>
    %181 = arith.truncf %180 : vector<32x512xf32> to vector<32x512xbf16>
    %cst_88 = arith.constant dense<0.000000e+00> : vector<32x128xf32>
    %182 = tpu.matmul %181, %179, %cst_88 {dimension_numbers = #tpu.dot_dimension_numbers<[1], [0], [0], [1], [0, 0, 1, 1], [], []>} : vector<32x512xbf16>, vector<512x128xbf16>, vector<32x128xf32> -> vector<32x128xf32>
    %183 = vector.extract_strided_slice %182 {offsets = [0, 0], sizes = [16, 128], strides = [1, 1]} : vector<32x128xf32> to vector<16x128xf32>
    %184 = vector.extract_strided_slice %182 {offsets = [16, 0], sizes = [16, 128], strides = [1, 1]} : vector<32x128xf32> to vector<16x128xf32>
    %185 = tpu.iota {dimensions = array<i32: 1>} : vector<16x128xi32>
    %c63_i32_89 = arith.constant 63 : i32
    %186 = vector.broadcast %c63_i32_89 : i32 to vector<16x128xi32>
    %187 = arith.andi %185, %186 : vector<16x128xi32>
    %c3_i32_90 = arith.constant 3 : i32
    %188 = vector.broadcast %c3_i32_90 : i32 to vector<16x128xi32>
    %189 = arith.shrsi %187, %188 : vector<16x128xi32>
    %c5_i32_91 = arith.constant 5 : i32
    %190 = vector.broadcast %c5_i32_91 : i32 to vector<16x128xi32>
    %191 = arith.shli %189, %190 : vector<16x128xi32>
    %c7_i32_92 = arith.constant 7 : i32
    %192 = vector.broadcast %c7_i32_92 : i32 to vector<16x128xi32>
    %193 = arith.andi %187, %192 : vector<16x128xi32>
    %c1_i32_93 = arith.constant 1 : i32
    %194 = vector.broadcast %c1_i32_93 : i32 to vector<16x128xi32>
    %195 = arith.shli %193, %194 : vector<16x128xi32>
    %196 = arith.addi %191, %195 : vector<16x128xi32>
    %cst_94 = arith.constant 5.000000e-01 : f32
    %197 = vector.broadcast %cst_94 : f32 to vector<16x128xf32>
    %198 = arith.addf %184, %197 : vector<16x128xf32>
    %199 = arith.fptosi %198 : vector<16x128xf32> to vector<16x128xi32>
    %200 = arith.addi %196, %199 : vector<16x128xi32>
    %201 = vector.extract_strided_slice %200 {offsets = [0, 0], sizes = [16, 64], strides = [1, 1]} : vector<16x128xi32> to vector<16x64xi32>
    %c0_95 = arith.constant 0 : index
    %c0_96 = arith.constant 0 : index
    %c0_97 = arith.constant 0 : index
    %202 = vector.load %arg10[%c0_95, %c0_96, %c0_97] : memref<2x16x64xi32, #tpu.memory_space<vmem>>, vector<1x16x64xi32>
    %203 = vector.shape_cast %202 : vector<1x16x64xi32> to vector<16x64xi32>
    %204 = vector.shape_cast %201 : vector<16x64xi32> to vector<1x16x64xi32>
    tpu.vector_store %arg10[%c0_95, %c0_96, %c0_97], %204 {strides = array<i32>} : memref<2x16x64xi32, #tpu.memory_space<vmem>>, vector<1x16x64xi32>,
    %205 = vector.extract_strided_slice %200 {offsets = [0, 64], sizes = [16, 64], strides = [1, 1]} : vector<16x128xi32> to vector<16x64xi32>
    %c1_98 = arith.constant 1 : index
    %c0_99 = arith.constant 0 : index
    %c0_100 = arith.constant 0 : index
    %206 = vector.load %arg10[%c1_98, %c0_99, %c0_100] : memref<2x16x64xi32, #tpu.memory_space<vmem>>, vector<1x16x64xi32>
    %207 = vector.shape_cast %206 : vector<1x16x64xi32> to vector<16x64xi32>
    %208 = vector.shape_cast %205 : vector<16x64xi32> to vector<1x16x64xi32>
    tpu.vector_store %arg10[%c1_98, %c0_99, %c0_100], %208 {strides = array<i32>} : memref<2x16x64xi32, #tpu.memory_space<vmem>>, vector<1x16x64xi32>,
    %cst_101 = arith.constant 0.000000e+00 : f32
    %209 = vector.broadcast %cst_101 : f32 to vector<16x128xf32>
    %c0_102 = arith.constant 0 : index
    %c256 = arith.constant 256 : index
    %210 = vector.load %arg13[%c0_102, %c256] : memref<32x768xf32, #tpu.memory_space<vmem>>, vector<16x128xf32>
    tpu.vector_store %arg13[%c0_102, %c256], %209 {strides = array<i32>} : memref<32x768xf32, #tpu.memory_space<vmem>>, vector<16x128xf32>,
    %c0_103 = arith.constant 0 : index
    %c128_104 = arith.constant 128 : index
    %211 = vector.load %arg13[%c0_103, %c128_104] : memref<32x768xf32, #tpu.memory_space<vmem>>, vector<16x128xf32>
    tpu.vector_store %arg13[%c0_103, %c128_104], %183 {strides = array<i32>} : memref<32x768xf32, #tpu.memory_space<vmem>>, vector<16x128xf32>,
    %212 = tpu.iota {dimensions = array<i32: 1>} : vector<1x128xi32>
    %c7_i32_105 = arith.constant 7 : i32
    %213 = vector.broadcast %c7_i32_105 : i32 to vector<1x128xi32>
    %214 = arith.andi %212, %213 : vector<1x128xi32>
    %c3_i32_106 = arith.constant 3 : i32
    %215 = vector.broadcast %c3_i32_106 : i32 to vector<1x128xi32>
    %216 = arith.shrsi %212, %215 : vector<1x128xi32>
    %c7_i32_107 = arith.constant 7 : i32
    %217 = vector.broadcast %c7_i32_107 : i32 to vector<1x128xi32>
    %218 = arith.andi %216, %217 : vector<1x128xi32>
    %c1_i32_108 = arith.constant 1 : i32
    %219 = vector.broadcast %c1_i32_108 : i32 to vector<1x128xi32>
    %220 = arith.cmpi sge, %218, %219 : vector<1x128xi32>
    %c0_i32_109 = arith.constant 0 : i32
    %221 = vector.broadcast %c0_i32_109 : i32 to vector<1x128xi32>
    %222 = arith.cmpi sge, %218, %221 : vector<1x128xi32>
    %c7_i32_110 = arith.constant 7 : i32
    %223 = vector.broadcast %c7_i32_110 : i32 to vector<1x128xi32>
    %224 = arith.cmpi slt, %218, %223 : vector<1x128xi32>
    %c1_i32_111 = arith.constant 1 : i32
    %225 = vector.broadcast %c1_i32_111 : i32 to vector<1x128xi32>
    %226 = arith.cmpi sge, %214, %225 : vector<1x128xi32>
    %c0_i32_112 = arith.constant 0 : i32
    %227 = vector.broadcast %c0_i32_112 : i32 to vector<1x128xi32>
    %228 = arith.cmpi sge, %214, %227 : vector<1x128xi32>
    %c7_i32_113 = arith.constant 7 : i32
    %229 = vector.broadcast %c7_i32_113 : i32 to vector<1x128xi32>
    %230 = arith.cmpi slt, %214, %229 : vector<1x128xi32>
    %c0_114 = arith.constant 0 : index
    %c119 = arith.constant 119 : index
    %231 = vector.load %arg13[%c0_114, %c119] : memref<32x768xf32, #tpu.memory_space<vmem>>, vector<16x128xf32>
    %232 = arith.andi %220, %226 : vector<1x128xi1>
    %cst_115 = arith.constant 0.000000e+00 : f32
    %233 = vector.shape_cast %232 : vector<1x128xi1> to vector<1x128xi1>
    %234 = vector.broadcast %233 : vector<1x128xi1> to vector<16x128xi1>
    %235 = vector.broadcast %cst_115 : f32 to vector<16x128xf32>
    %236 = arith.select %234, %231, %235 : vector<16x128xi1>, vector<16x128xf32>
    %237 = arith.truncf %236 : vector<16x128xf32> to vector<16x128xbf16>
    %c0_116 = arith.constant 0 : index
    %c0_117 = arith.constant 0 : index
    %c0_118 = arith.constant 0 : index
    %238 = vector.load %arg4[%c0_116, %c0_117, %c0_118] : memref<9x32x16xbf16, #tpu.memory_space<vmem>>, vector<1x32x16xbf16>
    %239 = vector.shape_cast %238 : vector<1x32x16xbf16> to vector<32x16xbf16>
    %cst_119 = arith.constant dense<0.000000e+00> : vector<32x128xf32>
    %240 = tpu.matmul %239, %237, %cst_119 {dimension_numbers = #tpu.dot_dimension_numbers<[1], [0], [0], [1], [0, 0, 1, 1], [], []>} : vector<32x16xbf16>, vector<16x128xbf16>, vector<32x128xf32> -> vector<32x128xf32>
    %c0_120 = arith.constant 0 : index
    %c120 = arith.constant 120 : index
    %241 = vector.load %arg13[%c0_120, %c120] : memref<32x768xf32, #tpu.memory_space<vmem>>, vector<16x128xf32>
    %242 = arith.andi %220, %228 : vector<1x128xi1>
    %cst_121 = arith.constant 0.000000e+00 : f32
    %243 = vector.shape_cast %242 : vector<1x128xi1> to vector<1x128xi1>
    %244 = vector.broadcast %243 : vector<1x128xi1> to vector<16x128xi1>
    %245 = vector.broadcast %cst_121 : f32 to vector<16x128xf32>
    %246 = arith.select %244, %241, %245 : vector<16x128xi1>, vector<16x128xf32>
    %247 = arith.truncf %246 : vector<16x128xf32> to vector<16x128xbf16>
    %c1_122 = arith.constant 1 : index
    %c0_123 = arith.constant 0 : index
    %c0_124 = arith.constant 0 : index
    %248 = vector.load %arg4[%c1_122, %c0_123, %c0_124] : memref<9x32x16xbf16, #tpu.memory_space<vmem>>, vector<1x32x16xbf16>
    %249 = vector.shape_cast %248 : vector<1x32x16xbf16> to vector<32x16xbf16>
    %cst_125 = arith.constant dense<0.000000e+00> : vector<32x128xf32>
    %250 = tpu.matmul %249, %247, %cst_125 {dimension_numbers = #tpu.dot_dimension_numbers<[1], [0], [0], [1], [0, 0, 1, 1], [], []>} : vector<32x16xbf16>, vector<16x128xbf16>, vector<32x128xf32> -> vector<32x128xf32>
    %251 = arith.addf %240, %250 : vector<32x128xf32>
    %c0_126 = arith.constant 0 : index
    %c121 = arith.constant 121 : index
    %252 = vector.load %arg13[%c0_126, %c121] : memref<32x768xf32, #tpu.memory_space<vmem>>, vector<16x128xf32>
    %253 = arith.andi %220, %230 : vector<1x128xi1>
    %cst_127 = arith.constant 0.000000e+00 : f32
    %254 = vector.shape_cast %253 : vector<1x128xi1> to vector<1x128xi1>
    %255 = vector.broadcast %254 : vector<1x128xi1> to vector<16x128xi1>
    %256 = vector.broadcast %cst_127 : f32 to vector<16x128xf32>
    %257 = arith.select %255, %252, %256 : vector<16x128xi1>, vector<16x128xf32>
    %258 = arith.truncf %257 : vector<16x128xf32> to vector<16x128xbf16>
    %c2_128 = arith.constant 2 : index
    %c0_129 = arith.constant 0 : index
    %c0_130 = arith.constant 0 : index
    %259 = vector.load %arg4[%c2_128, %c0_129, %c0_130] : memref<9x32x16xbf16, #tpu.memory_space<vmem>>, vector<1x32x16xbf16>
    %260 = vector.shape_cast %259 : vector<1x32x16xbf16> to vector<32x16xbf16>
    %cst_131 = arith.constant dense<0.000000e+00> : vector<32x128xf32>
    %261 = tpu.matmul %260, %258, %cst_131 {dimension_numbers = #tpu.dot_dimension_numbers<[1], [0], [0], [1], [0, 0, 1, 1], [], []>} : vector<32x16xbf16>, vector<16x128xbf16>, vector<32x128xf32> -> vector<32x128xf32>
    %262 = arith.addf %251, %261 : vector<32x128xf32>
    %c0_132 = arith.constant 0 : index
    %c127_133 = arith.constant 127 : index
    %263 = vector.load %arg13[%c0_132, %c127_133] : memref<32x768xf32, #tpu.memory_space<vmem>>, vector<16x128xf32>
    %264 = arith.andi %222, %226 : vector<1x128xi1>
    %cst_134 = arith.constant 0.000000e+00 : f32
    %265 = vector.shape_cast %264 : vector<1x128xi1> to vector<1x128xi1>
    %266 = vector.broadcast %265 : vector<1x128xi1> to vector<16x128xi1>
    %267 = vector.broadcast %cst_134 : f32 to vector<16x128xf32>
    %268 = arith.select %266, %263, %267 : vector<16x128xi1>, vector<16x128xf32>
    %269 = arith.truncf %268 : vector<16x128xf32> to vector<16x128xbf16>
    %c3_135 = arith.constant 3 : index
    %c0_136 = arith.constant 0 : index
    %c0_137 = arith.constant 0 : index
    %270 = vector.load %arg4[%c3_135, %c0_136, %c0_137] : memref<9x32x16xbf16, #tpu.memory_space<vmem>>, vector<1x32x16xbf16>
    %271 = vector.shape_cast %270 : vector<1x32x16xbf16> to vector<32x16xbf16>
    %cst_138 = arith.constant dense<0.000000e+00> : vector<32x128xf32>
    %272 = tpu.matmul %271, %269, %cst_138 {dimension_numbers = #tpu.dot_dimension_numbers<[1], [0], [0], [1], [0, 0, 1, 1], [], []>} : vector<32x16xbf16>, vector<16x128xbf16>, vector<32x128xf32> -> vector<32x128xf32>
    %273 = arith.addf %262, %272 : vector<32x128xf32>
    %c0_139 = arith.constant 0 : index
    %c128_140 = arith.constant 128 : index
    %274 = vector.load %arg13[%c0_139, %c128_140] : memref<32x768xf32, #tpu.memory_space<vmem>>, vector<16x128xf32>
    %275 = arith.andi %222, %228 : vector<1x128xi1>
    %cst_141 = arith.constant 0.000000e+00 : f32
    %276 = vector.shape_cast %275 : vector<1x128xi1> to vector<1x128xi1>
    %277 = vector.broadcast %276 : vector<1x128xi1> to vector<16x128xi1>
    %278 = vector.broadcast %cst_141 : f32 to vector<16x128xf32>
    %279 = arith.select %277, %274, %278 : vector<16x128xi1>, vector<16x128xf32>
    %280 = arith.truncf %279 : vector<16x128xf32> to vector<16x128xbf16>
    %c4_142 = arith.constant 4 : index
    %c0_143 = arith.constant 0 : index
    %c0_144 = arith.constant 0 : index
    %281 = vector.load %arg4[%c4_142, %c0_143, %c0_144] : memref<9x32x16xbf16, #tpu.memory_space<vmem>>, vector<1x32x16xbf16>
    %282 = vector.shape_cast %281 : vector<1x32x16xbf16> to vector<32x16xbf16>
    %cst_145 = arith.constant dense<0.000000e+00> : vector<32x128xf32>
    %283 = tpu.matmul %282, %280, %cst_145 {dimension_numbers = #tpu.dot_dimension_numbers<[1], [0], [0], [1], [0, 0, 1, 1], [], []>} : vector<32x16xbf16>, vector<16x128xbf16>, vector<32x128xf32> -> vector<32x128xf32>
    %284 = arith.addf %273, %283 : vector<32x128xf32>
    %c0_146 = arith.constant 0 : index
    %c129_147 = arith.constant 129 : index
    %285 = vector.load %arg13[%c0_146, %c129_147] : memref<32x768xf32, #tpu.memory_space<vmem>>, vector<16x128xf32>
    %286 = arith.andi %222, %230 : vector<1x128xi1>
    %cst_148 = arith.constant 0.000000e+00 : f32
    %287 = vector.shape_cast %286 : vector<1x128xi1> to vector<1x128xi1>
    %288 = vector.broadcast %287 : vector<1x128xi1> to vector<16x128xi1>
    %289 = vector.broadcast %cst_148 : f32 to vector<16x128xf32>
    %290 = arith.select %288, %285, %289 : vector<16x128xi1>, vector<16x128xf32>
    %291 = arith.truncf %290 : vector<16x128xf32> to vector<16x128xbf16>
    %c5_149 = arith.constant 5 : index
    %c0_150 = arith.constant 0 : index
    %c0_151 = arith.constant 0 : index
    %292 = vector.load %arg4[%c5_149, %c0_150, %c0_151] : memref<9x32x16xbf16, #tpu.memory_space<vmem>>, vector<1x32x16xbf16>
    %293 = vector.shape_cast %292 : vector<1x32x16xbf16> to vector<32x16xbf16>
    %cst_152 = arith.constant dense<0.000000e+00> : vector<32x128xf32>
    %294 = tpu.matmul %293, %291, %cst_152 {dimension_numbers = #tpu.dot_dimension_numbers<[1], [0], [0], [1], [0, 0, 1, 1], [], []>} : vector<32x16xbf16>, vector<16x128xbf16>, vector<32x128xf32> -> vector<32x128xf32>
    %295 = arith.addf %284, %294 : vector<32x128xf32>
    %c0_153 = arith.constant 0 : index
    %c135 = arith.constant 135 : index
    %296 = vector.load %arg13[%c0_153, %c135] : memref<32x768xf32, #tpu.memory_space<vmem>>, vector<16x128xf32>
    %297 = arith.andi %224, %226 : vector<1x128xi1>
    %cst_154 = arith.constant 0.000000e+00 : f32
    %298 = vector.shape_cast %297 : vector<1x128xi1> to vector<1x128xi1>
    %299 = vector.broadcast %298 : vector<1x128xi1> to vector<16x128xi1>
    %300 = vector.broadcast %cst_154 : f32 to vector<16x128xf32>
    %301 = arith.select %299, %296, %300 : vector<16x128xi1>, vector<16x128xf32>
    %302 = arith.truncf %301 : vector<16x128xf32> to vector<16x128xbf16>
    %c6_155 = arith.constant 6 : index
    %c0_156 = arith.constant 0 : index
    %c0_157 = arith.constant 0 : index
    %303 = vector.load %arg4[%c6_155, %c0_156, %c0_157] : memref<9x32x16xbf16, #tpu.memory_space<vmem>>, vector<1x32x16xbf16>
    %304 = vector.shape_cast %303 : vector<1x32x16xbf16> to vector<32x16xbf16>
    %cst_158 = arith.constant dense<0.000000e+00> : vector<32x128xf32>
    %305 = tpu.matmul %304, %302, %cst_158 {dimension_numbers = #tpu.dot_dimension_numbers<[1], [0], [0], [1], [0, 0, 1, 1], [], []>} : vector<32x16xbf16>, vector<16x128xbf16>, vector<32x128xf32> -> vector<32x128xf32>
    %306 = arith.addf %295, %305 : vector<32x128xf32>
    %c0_159 = arith.constant 0 : index
    %c136 = arith.constant 136 : index
    %307 = vector.load %arg13[%c0_159, %c136] : memref<32x768xf32, #tpu.memory_space<vmem>>, vector<16x128xf32>
    %308 = arith.andi %224, %228 : vector<1x128xi1>
    %cst_160 = arith.constant 0.000000e+00 : f32
    %309 = vector.shape_cast %308 : vector<1x128xi1> to vector<1x128xi1>
    %310 = vector.broadcast %309 : vector<1x128xi1> to vector<16x128xi1>
    %311 = vector.broadcast %cst_160 : f32 to vector<16x128xf32>
    %312 = arith.select %310, %307, %311 : vector<16x128xi1>, vector<16x128xf32>
    %313 = arith.truncf %312 : vector<16x128xf32> to vector<16x128xbf16>
    %c7_161 = arith.constant 7 : index
    %c0_162 = arith.constant 0 : index
    %c0_163 = arith.constant 0 : index
    %314 = vector.load %arg4[%c7_161, %c0_162, %c0_163] : memref<9x32x16xbf16, #tpu.memory_space<vmem>>, vector<1x32x16xbf16>
    %315 = vector.shape_cast %314 : vector<1x32x16xbf16> to vector<32x16xbf16>
    %cst_164 = arith.constant dense<0.000000e+00> : vector<32x128xf32>
    %316 = tpu.matmul %315, %313, %cst_164 {dimension_numbers = #tpu.dot_dimension_numbers<[1], [0], [0], [1], [0, 0, 1, 1], [], []>} : vector<32x16xbf16>, vector<16x128xbf16>, vector<32x128xf32> -> vector<32x128xf32>
    %317 = arith.addf %306, %316 : vector<32x128xf32>
    %c0_165 = arith.constant 0 : index
    %c137 = arith.constant 137 : index
    %318 = vector.load %arg13[%c0_165, %c137] : memref<32x768xf32, #tpu.memory_space<vmem>>, vector<16x128xf32>
    %319 = arith.andi %224, %230 : vector<1x128xi1>
    %cst_166 = arith.constant 0.000000e+00 : f32
    %320 = vector.shape_cast %319 : vector<1x128xi1> to vector<1x128xi1>
    %321 = vector.broadcast %320 : vector<1x128xi1> to vector<16x128xi1>
    %322 = vector.broadcast %cst_166 : f32 to vector<16x128xf32>
    %323 = arith.select %321, %318, %322 : vector<16x128xi1>, vector<16x128xf32>
    %324 = arith.truncf %323 : vector<16x128xf32> to vector<16x128xbf16>
    %c8_167 = arith.constant 8 : index
    %c0_168 = arith.constant 0 : index
    %c0_169 = arith.constant 0 : index
    %325 = vector.load %arg4[%c8_167, %c0_168, %c0_169] : memref<9x32x16xbf16, #tpu.memory_space<vmem>>, vector<1x32x16xbf16>
    %326 = vector.shape_cast %325 : vector<1x32x16xbf16> to vector<32x16xbf16>
    %cst_170 = arith.constant dense<0.000000e+00> : vector<32x128xf32>
    %327 = tpu.matmul %326, %324, %cst_170 {dimension_numbers = #tpu.dot_dimension_numbers<[1], [0], [0], [1], [0, 0, 1, 1], [], []>} : vector<32x16xbf16>, vector<16x128xbf16>, vector<32x128xf32> -> vector<32x128xf32>
    %328 = arith.addf %317, %327 : vector<32x128xf32>
    %c0_171 = arith.constant 0 : index
    %c0_172 = arith.constant 0 : index
    %329 = vector.load %arg5[%c0_171, %c0_172] : memref<32x1xf32, #tpu.memory_space<vmem>>, vector<32x1xf32>
    %330 = vector.broadcast %329 : vector<32x1xf32> to vector<32x128xf32>
    %331 = arith.addf %328, %330 : vector<32x128xf32>
    %cst_173 = arith.constant 0.000000e+00 : f32
    %332 = vector.broadcast %cst_173 : f32 to vector<32x128xf32>
    %333 = arith.maximumf %331, %332 : vector<32x128xf32>
    %334 = vector.extract_strided_slice %333 {offsets = [0, 0], sizes = [32, 64], strides = [1, 1]} : vector<32x128xf32> to vector<32x64xf32>
    %c0_174 = arith.constant 0 : index
    %c0_175 = arith.constant 0 : index
    %c0_176 = arith.constant 0 : index
    %335 = vector.load %arg11[%c0_174, %c0_175, %c0_176] : memref<2x32x64xf32, #tpu.memory_space<vmem>>, vector<1x32x64xf32>
    %336 = vector.shape_cast %335 : vector<1x32x64xf32> to vector<32x64xf32>
    %337 = vector.shape_cast %334 : vector<32x64xf32> to vector<1x32x64xf32>
    tpu.vector_store %arg11[%c0_174, %c0_175, %c0_176], %337 {strides = array<i32>} : memref<2x32x64xf32, #tpu.memory_space<vmem>>, vector<1x32x64xf32>,
    %338 = vector.extract_strided_slice %333 {offsets = [0, 64], sizes = [32, 64], strides = [1, 1]} : vector<32x128xf32> to vector<32x64xf32>
    %c1_177 = arith.constant 1 : index
    %c0_178 = arith.constant 0 : index
    %c0_179 = arith.constant 0 : index
    %339 = vector.load %arg11[%c1_177, %c0_178, %c0_179] : memref<2x32x64xf32, #tpu.memory_space<vmem>>, vector<1x32x64xf32>
    %340 = vector.shape_cast %339 : vector<1x32x64xf32> to vector<32x64xf32>
    %341 = vector.shape_cast %338 : vector<32x64xf32> to vector<1x32x64xf32>
    tpu.vector_store %arg11[%c1_177, %c0_178, %c0_179], %341 {strides = array<i32>} : memref<2x32x64xf32, #tpu.memory_space<vmem>>, vector<1x32x64xf32>,
    %cst_180 = arith.constant 0.000000e+00 : f32
    %342 = vector.broadcast %cst_180 : f32 to vector<32x128xf32>
    %c0_181 = arith.constant 0 : index
    %c256_182 = arith.constant 256 : index
    %343 = vector.load %arg13[%c0_181, %c256_182] : memref<32x768xf32, #tpu.memory_space<vmem>>, vector<32x128xf32>
    tpu.vector_store %arg13[%c0_181, %c256_182], %342 {strides = array<i32>} : memref<32x768xf32, #tpu.memory_space<vmem>>, vector<32x128xf32>,
    %c0_183 = arith.constant 0 : index
    %c128_184 = arith.constant 128 : index
    %344 = vector.load %arg13[%c0_183, %c128_184] : memref<32x768xf32, #tpu.memory_space<vmem>>, vector<32x128xf32>
    tpu.vector_store %arg13[%c0_183, %c128_184], %333 {strides = array<i32>} : memref<32x768xf32, #tpu.memory_space<vmem>>, vector<32x128xf32>,
    %cst_185 = arith.constant 0.000000e+00 : f32
    %345 = vector.broadcast %cst_185 : f32 to vector<32x128xf32>
    %c0_186 = arith.constant 0 : index
    %c129_187 = arith.constant 129 : index
    %346 = vector.load %arg13[%c0_186, %c129_187] : memref<32x768xf32, #tpu.memory_space<vmem>>, vector<32x128xf32>
    %347 = arith.cmpf ogt, %346, %333 : vector<32x128xf32>
    %348 = arith.select %347, %346, %333 : vector<32x128xi1>, vector<32x128xf32>
    %cst_188 = arith.constant 1.000000e+00 : f32
    %349 = vector.broadcast %cst_188 : f32 to vector<32x128xf32>
    %350 = arith.select %347, %349, %345 : vector<32x128xi1>, vector<32x128xf32>
    %c0_189 = arith.constant 0 : index
    %c136_190 = arith.constant 136 : index
    %351 = vector.load %arg13[%c0_189, %c136_190] : memref<32x768xf32, #tpu.memory_space<vmem>>, vector<32x128xf32>
    %352 = arith.cmpf ogt, %351, %348 : vector<32x128xf32>
    %353 = arith.select %352, %351, %348 : vector<32x128xi1>, vector<32x128xf32>
    %cst_191 = arith.constant 8.000000e+00 : f32
    %354 = vector.broadcast %cst_191 : f32 to vector<32x128xf32>
    %355 = arith.select %352, %354, %350 : vector<32x128xi1>, vector<32x128xf32>
    %c0_192 = arith.constant 0 : index
    %c137_193 = arith.constant 137 : index
    %356 = vector.load %arg13[%c0_192, %c137_193] : memref<32x768xf32, #tpu.memory_space<vmem>>, vector<32x128xf32>
    %357 = arith.cmpf ogt, %356, %353 : vector<32x128xf32>
    %358 = arith.select %357, %356, %353 : vector<32x128xi1>, vector<32x128xf32>
    %cst_194 = arith.constant 9.000000e+00 : f32
    %359 = vector.broadcast %cst_194 : f32 to vector<32x128xf32>
    %360 = arith.select %357, %359, %355 : vector<32x128xi1>, vector<32x128xf32>
    %361 = tpu.iota {dimensions = array<i32: 0>} : vector<128x32xi32>
    %362 = tpu.iota {dimensions = array<i32: 1>} : vector<128x32xi32>
    %c15_i32_195 = arith.constant 15 : i32
    %363 = vector.broadcast %c15_i32_195 : i32 to vector<128x32xi32>
    %364 = arith.andi %362, %363 : vector<128x32xi32>
    %365 = arith.subi %362, %364 : vector<128x32xi32>
    %c2_i32_196 = arith.constant 2 : i32
    %366 = vector.broadcast %c2_i32_196 : i32 to vector<128x32xi32>
    %367 = arith.shli %365, %366 : vector<128x32xi32>
    %c2_i32_197 = arith.constant 2 : i32
    %368 = vector.broadcast %c2_i32_197 : i32 to vector<128x32xi32>
    %369 = arith.shrsi %364, %368 : vector<128x32xi32>
    %c4_i32_198 = arith.constant 4 : i32
    %370 = vector.broadcast %c4_i32_198 : i32 to vector<128x32xi32>
    %371 = arith.shli %369, %370 : vector<128x32xi32>
    %372 = arith.addi %367, %371 : vector<128x32xi32>
    %c3_i32_199 = arith.constant 3 : i32
    %373 = vector.broadcast %c3_i32_199 : i32 to vector<128x32xi32>
    %374 = arith.andi %364, %373 : vector<128x32xi32>
    %c1_i32_200 = arith.constant 1 : i32
    %375 = vector.broadcast %c1_i32_200 : i32 to vector<128x32xi32>
    %376 = arith.shli %374, %375 : vector<128x32xi32>
    %377 = arith.addi %372, %376 : vector<128x32xi32>
    %378 = arith.cmpi eq, %361, %377 : vector<128x32xi32>
    %379 = arith.extui %378 : vector<128x32xi1> to vector<128x32xi32>
    %380 = arith.sitofp %379 : vector<128x32xi32> to vector<128x32xf32>
    %381 = arith.truncf %380 : vector<128x32xf32> to vector<128x32xbf16>
    %382 = tpu.concatenate %358, %360 in 0 : vector<32x128xf32>, vector<32x128xf32> -> vector<64x128xf32>
    %383 = arith.truncf %382 : vector<64x128xf32> to vector<64x128xbf16>
    %cst_201 = arith.constant dense<0.000000e+00> : vector<64x32xf32>
    %384 = tpu.matmul %383, %381, %cst_201 {dimension_numbers = #tpu.dot_dimension_numbers<[1], [0], [0], [1], [0, 0, 1, 1], [], []>} : vector<64x128xbf16>, vector<128x32xbf16>, vector<64x32xf32> -> vector<64x32xf32>
    %385 = vector.extract_strided_slice %384 {offsets = [0, 0], sizes = [32, 32], strides = [1, 1]} : vector<64x32xf32> to vector<32x32xf32>
    %386 = vector.extract_strided_slice %384 {offsets = [32, 0], sizes = [32, 32], strides = [1, 1]} : vector<64x32xf32> to vector<32x32xf32>
    %387 = tpu.iota {dimensions = array<i32: 1>} : vector<32x32xi32>
    %c15_i32_202 = arith.constant 15 : i32
    %388 = vector.broadcast %c15_i32_202 : i32 to vector<32x32xi32>
    %389 = arith.andi %387, %388 : vector<32x32xi32>
    %c2_i32_203 = arith.constant 2 : i32
    %390 = vector.broadcast %c2_i32_203 : i32 to vector<32x32xi32>
    %391 = arith.shrsi %389, %390 : vector<32x32xi32>
    %c4_i32_204 = arith.constant 4 : i32
    %392 = vector.broadcast %c4_i32_204 : i32 to vector<32x32xi32>
    %393 = arith.shli %391, %392 : vector<32x32xi32>
    %c3_i32_205 = arith.constant 3 : i32
    %394 = vector.broadcast %c3_i32_205 : i32 to vector<32x32xi32>
    %395 = arith.andi %389, %394 : vector<32x32xi32>
    %c1_i32_206 = arith.constant 1 : i32
    %396 = vector.broadcast %c1_i32_206 : i32 to vector<32x32xi32>
    %397 = arith.shli %395, %396 : vector<32x32xi32>
    %398 = arith.addi %393, %397 : vector<32x32xi32>
    %cst_207 = arith.constant 5.000000e-01 : f32
    %399 = vector.broadcast %cst_207 : f32 to vector<32x32xf32>
    %400 = arith.addf %386, %399 : vector<32x32xf32>
    %401 = arith.fptosi %400 : vector<32x32xf32> to vector<32x32xi32>
    %402 = arith.addi %398, %401 : vector<32x32xi32>
    %403 = vector.extract_strided_slice %402 {offsets = [0, 0], sizes = [32, 16], strides = [1, 1]} : vector<32x32xi32> to vector<32x16xi32>
    %c0_208 = arith.constant 0 : index
    %c0_209 = arith.constant 0 : index
    %c0_210 = arith.constant 0 : index
    %404 = vector.load %arg12[%c0_208, %c0_209, %c0_210] : memref<2x32x16xi32, #tpu.memory_space<vmem>>, vector<1x32x16xi32>
    %405 = vector.shape_cast %404 : vector<1x32x16xi32> to vector<32x16xi32>
    %406 = vector.shape_cast %403 : vector<32x16xi32> to vector<1x32x16xi32>
    tpu.vector_store %arg12[%c0_208, %c0_209, %c0_210], %406 {strides = array<i32>} : memref<2x32x16xi32, #tpu.memory_space<vmem>>, vector<1x32x16xi32>,
    %407 = vector.extract_strided_slice %402 {offsets = [0, 16], sizes = [32, 16], strides = [1, 1]} : vector<32x32xi32> to vector<32x16xi32>
    %c1_211 = arith.constant 1 : index
    %c0_212 = arith.constant 0 : index
    %c0_213 = arith.constant 0 : index
    %408 = vector.load %arg12[%c1_211, %c0_212, %c0_213] : memref<2x32x16xi32, #tpu.memory_space<vmem>>, vector<1x32x16xi32>
    %409 = vector.shape_cast %408 : vector<1x32x16xi32> to vector<32x16xi32>
    %410 = vector.shape_cast %407 : vector<32x16xi32> to vector<1x32x16xi32>
    tpu.vector_store %arg12[%c1_211, %c0_212, %c0_213], %410 {strides = array<i32>} : memref<2x32x16xi32, #tpu.memory_space<vmem>>, vector<1x32x16xi32>,
    %cst_214 = arith.constant 0.000000e+00 : f32
    %411 = vector.broadcast %cst_214 : f32 to vector<32x128xf32>
    %c0_215 = arith.constant 0 : index
    %c160 = arith.constant 160 : index
    %412 = vector.load %arg13[%c0_215, %c160] : memref<32x768xf32, #tpu.memory_space<vmem>>, vector<32x128xf32>
    tpu.vector_store %arg13[%c0_215, %c160], %411 {strides = array<i32>} : memref<32x768xf32, #tpu.memory_space<vmem>>, vector<32x128xf32>,
    %c0_216 = arith.constant 0 : index
    %c128_217 = arith.constant 128 : index
    %413 = vector.load %arg13[%c0_216, %c128_217] : memref<32x768xf32, #tpu.memory_space<vmem>>, vector<32x32xf32>
    tpu.vector_store %arg13[%c0_216, %c128_217], %385 {strides = array<i32>} : memref<32x768xf32, #tpu.memory_space<vmem>>, vector<32x32xf32>,
    %414 = tpu.iota {dimensions = array<i32: 1>} : vector<1x32xi32>
    %c3_i32_218 = arith.constant 3 : i32
    %415 = vector.broadcast %c3_i32_218 : i32 to vector<1x32xi32>
    %416 = arith.andi %414, %415 : vector<1x32xi32>
    %c2_i32_219 = arith.constant 2 : i32
    %417 = vector.broadcast %c2_i32_219 : i32 to vector<1x32xi32>
    %418 = arith.shrsi %414, %417 : vector<1x32xi32>
    %c3_i32_220 = arith.constant 3 : i32
    %419 = vector.broadcast %c3_i32_220 : i32 to vector<1x32xi32>
    %420 = arith.andi %418, %419 : vector<1x32xi32>
    %c1_i32_221 = arith.constant 1 : i32
    %421 = vector.broadcast %c1_i32_221 : i32 to vector<1x32xi32>
    %422 = arith.cmpi sge, %420, %421 : vector<1x32xi32>
    %c0_i32_222 = arith.constant 0 : i32
    %423 = vector.broadcast %c0_i32_222 : i32 to vector<1x32xi32>
    %424 = arith.cmpi sge, %420, %423 : vector<1x32xi32>
    %c3_i32_223 = arith.constant 3 : i32
    %425 = vector.broadcast %c3_i32_223 : i32 to vector<1x32xi32>
    %426 = arith.cmpi slt, %420, %425 : vector<1x32xi32>
    %c1_i32_224 = arith.constant 1 : i32
    %427 = vector.broadcast %c1_i32_224 : i32 to vector<1x32xi32>
    %428 = arith.cmpi sge, %416, %427 : vector<1x32xi32>
    %c0_i32_225 = arith.constant 0 : i32
    %429 = vector.broadcast %c0_i32_225 : i32 to vector<1x32xi32>
    %430 = arith.cmpi sge, %416, %429 : vector<1x32xi32>
    %c3_i32_226 = arith.constant 3 : i32
    %431 = vector.broadcast %c3_i32_226 : i32 to vector<1x32xi32>
    %432 = arith.cmpi slt, %416, %431 : vector<1x32xi32>
    %c0_227 = arith.constant 0 : index
    %c123 = arith.constant 123 : index
    %433 = vector.load %arg13[%c0_227, %c123] : memref<32x768xf32, #tpu.memory_space<vmem>>, vector<32x32xf32>
    %434 = arith.andi %422, %428 : vector<1x32xi1>
    %cst_228 = arith.constant 0.000000e+00 : f32
    %435 = vector.shape_cast %434 : vector<1x32xi1> to vector<1x32xi1>
    %436 = vector.broadcast %435 : vector<1x32xi1> to vector<32x32xi1>
    %437 = vector.broadcast %cst_228 : f32 to vector<32x32xf32>
    %438 = arith.select %436, %433, %437 : vector<32x32xi1>, vector<32x32xf32>
    %439 = arith.truncf %438 : vector<32x32xf32> to vector<32x32xbf16>
    %c0_229 = arith.constant 0 : index
    %c0_230 = arith.constant 0 : index
    %c0_231 = arith.constant 0 : index
    %440 = vector.load %arg6[%c0_229, %c0_230, %c0_231] : memref<9x32x32xbf16, #tpu.memory_space<vmem>>, vector<1x32x32xbf16>
    %441 = vector.shape_cast %440 : vector<1x32x32xbf16> to vector<32x32xbf16>
    %cst_232 = arith.constant dense<0.000000e+00> : vector<32x32xf32>
    %442 = tpu.matmul %441, %439, %cst_232 {dimension_numbers = #tpu.dot_dimension_numbers<[1], [0], [0], [1], [0, 0, 1, 1], [], []>} : vector<32x32xbf16>, vector<32x32xbf16>, vector<32x32xf32> -> vector<32x32xf32>
    %c0_233 = arith.constant 0 : index
    %c124 = arith.constant 124 : index
    %443 = vector.load %arg13[%c0_233, %c124] : memref<32x768xf32, #tpu.memory_space<vmem>>, vector<32x32xf32>
    %444 = arith.andi %422, %430 : vector<1x32xi1>
    %cst_234 = arith.constant 0.000000e+00 : f32
    %445 = vector.shape_cast %444 : vector<1x32xi1> to vector<1x32xi1>
    %446 = vector.broadcast %445 : vector<1x32xi1> to vector<32x32xi1>
    %447 = vector.broadcast %cst_234 : f32 to vector<32x32xf32>
    %448 = arith.select %446, %443, %447 : vector<32x32xi1>, vector<32x32xf32>
    %449 = arith.truncf %448 : vector<32x32xf32> to vector<32x32xbf16>
    %c1_235 = arith.constant 1 : index
    %c0_236 = arith.constant 0 : index
    %c0_237 = arith.constant 0 : index
    %450 = vector.load %arg6[%c1_235, %c0_236, %c0_237] : memref<9x32x32xbf16, #tpu.memory_space<vmem>>, vector<1x32x32xbf16>
    %451 = vector.shape_cast %450 : vector<1x32x32xbf16> to vector<32x32xbf16>
    %cst_238 = arith.constant dense<0.000000e+00> : vector<32x32xf32>
    %452 = tpu.matmul %451, %449, %cst_238 {dimension_numbers = #tpu.dot_dimension_numbers<[1], [0], [0], [1], [0, 0, 1, 1], [], []>} : vector<32x32xbf16>, vector<32x32xbf16>, vector<32x32xf32> -> vector<32x32xf32>
    %453 = arith.addf %442, %452 : vector<32x32xf32>
    %c0_239 = arith.constant 0 : index
    %c125 = arith.constant 125 : index
    %454 = vector.load %arg13[%c0_239, %c125] : memref<32x768xf32, #tpu.memory_space<vmem>>, vector<32x32xf32>
    %455 = arith.andi %422, %432 : vector<1x32xi1>
    %cst_240 = arith.constant 0.000000e+00 : f32
    %456 = vector.shape_cast %455 : vector<1x32xi1> to vector<1x32xi1>
    %457 = vector.broadcast %456 : vector<1x32xi1> to vector<32x32xi1>
    %458 = vector.broadcast %cst_240 : f32 to vector<32x32xf32>
    %459 = arith.select %457, %454, %458 : vector<32x32xi1>, vector<32x32xf32>
    %460 = arith.truncf %459 : vector<32x32xf32> to vector<32x32xbf16>
    %c2_241 = arith.constant 2 : index
    %c0_242 = arith.constant 0 : index
    %c0_243 = arith.constant 0 : index
    %461 = vector.load %arg6[%c2_241, %c0_242, %c0_243] : memref<9x32x32xbf16, #tpu.memory_space<vmem>>, vector<1x32x32xbf16>
    %462 = vector.shape_cast %461 : vector<1x32x32xbf16> to vector<32x32xbf16>
    %cst_244 = arith.constant dense<0.000000e+00> : vector<32x32xf32>
    %463 = tpu.matmul %462, %460, %cst_244 {dimension_numbers = #tpu.dot_dimension_numbers<[1], [0], [0], [1], [0, 0, 1, 1], [], []>} : vector<32x32xbf16>, vector<32x32xbf16>, vector<32x32xf32> -> vector<32x32xf32>
    %464 = arith.addf %453, %463 : vector<32x32xf32>
    %c0_245 = arith.constant 0 : index
    %c127_246 = arith.constant 127 : index
    %465 = vector.load %arg13[%c0_245, %c127_246] : memref<32x768xf32, #tpu.memory_space<vmem>>, vector<32x32xf32>
    %466 = arith.andi %424, %428 : vector<1x32xi1>
    %cst_247 = arith.constant 0.000000e+00 : f32
    %467 = vector.shape_cast %466 : vector<1x32xi1> to vector<1x32xi1>
    %468 = vector.broadcast %467 : vector<1x32xi1> to vector<32x32xi1>
    %469 = vector.broadcast %cst_247 : f32 to vector<32x32xf32>
    %470 = arith.select %468, %465, %469 : vector<32x32xi1>, vector<32x32xf32>
    %471 = arith.truncf %470 : vector<32x32xf32> to vector<32x32xbf16>
    %c3_248 = arith.constant 3 : index
    %c0_249 = arith.constant 0 : index
    %c0_250 = arith.constant 0 : index
    %472 = vector.load %arg6[%c3_248, %c0_249, %c0_250] : memref<9x32x32xbf16, #tpu.memory_space<vmem>>, vector<1x32x32xbf16>
    %473 = vector.shape_cast %472 : vector<1x32x32xbf16> to vector<32x32xbf16>
    %cst_251 = arith.constant dense<0.000000e+00> : vector<32x32xf32>
    %474 = tpu.matmul %473, %471, %cst_251 {dimension_numbers = #tpu.dot_dimension_numbers<[1], [0], [0], [1], [0, 0, 1, 1], [], []>} : vector<32x32xbf16>, vector<32x32xbf16>, vector<32x32xf32> -> vector<32x32xf32>
    %475 = arith.addf %464, %474 : vector<32x32xf32>
    %c0_252 = arith.constant 0 : index
    %c128_253 = arith.constant 128 : index
    %476 = vector.load %arg13[%c0_252, %c128_253] : memref<32x768xf32, #tpu.memory_space<vmem>>, vector<32x32xf32>
    %477 = arith.andi %424, %430 : vector<1x32xi1>
    %cst_254 = arith.constant 0.000000e+00 : f32
    %478 = vector.shape_cast %477 : vector<1x32xi1> to vector<1x32xi1>
    %479 = vector.broadcast %478 : vector<1x32xi1> to vector<32x32xi1>
    %480 = vector.broadcast %cst_254 : f32 to vector<32x32xf32>
    %481 = arith.select %479, %476, %480 : vector<32x32xi1>, vector<32x32xf32>
    %482 = arith.truncf %481 : vector<32x32xf32> to vector<32x32xbf16>
    %c4_255 = arith.constant 4 : index
    %c0_256 = arith.constant 0 : index
    %c0_257 = arith.constant 0 : index
    %483 = vector.load %arg6[%c4_255, %c0_256, %c0_257] : memref<9x32x32xbf16, #tpu.memory_space<vmem>>, vector<1x32x32xbf16>
    %484 = vector.shape_cast %483 : vector<1x32x32xbf16> to vector<32x32xbf16>
    %cst_258 = arith.constant dense<0.000000e+00> : vector<32x32xf32>
    %485 = tpu.matmul %484, %482, %cst_258 {dimension_numbers = #tpu.dot_dimension_numbers<[1], [0], [0], [1], [0, 0, 1, 1], [], []>} : vector<32x32xbf16>, vector<32x32xbf16>, vector<32x32xf32> -> vector<32x32xf32>
    %486 = arith.addf %475, %485 : vector<32x32xf32>
    %c0_259 = arith.constant 0 : index
    %c129_260 = arith.constant 129 : index
    %487 = vector.load %arg13[%c0_259, %c129_260] : memref<32x768xf32, #tpu.memory_space<vmem>>, vector<32x32xf32>
    %488 = arith.andi %424, %432 : vector<1x32xi1>
    %cst_261 = arith.constant 0.000000e+00 : f32
    %489 = vector.shape_cast %488 : vector<1x32xi1> to vector<1x32xi1>
    %490 = vector.broadcast %489 : vector<1x32xi1> to vector<32x32xi1>
    %491 = vector.broadcast %cst_261 : f32 to vector<32x32xf32>
    %492 = arith.select %490, %487, %491 : vector<32x32xi1>, vector<32x32xf32>
    %493 = arith.truncf %492 : vector<32x32xf32> to vector<32x32xbf16>
    %c5_262 = arith.constant 5 : index
    %c0_263 = arith.constant 0 : index
    %c0_264 = arith.constant 0 : index
    %494 = vector.load %arg6[%c5_262, %c0_263, %c0_264] : memref<9x32x32xbf16, #tpu.memory_space<vmem>>, vector<1x32x32xbf16>
    %495 = vector.shape_cast %494 : vector<1x32x32xbf16> to vector<32x32xbf16>
    %cst_265 = arith.constant dense<0.000000e+00> : vector<32x32xf32>
    %496 = tpu.matmul %495, %493, %cst_265 {dimension_numbers = #tpu.dot_dimension_numbers<[1], [0], [0], [1], [0, 0, 1, 1], [], []>} : vector<32x32xbf16>, vector<32x32xbf16>, vector<32x32xf32> -> vector<32x32xf32>
    %497 = arith.addf %486, %496 : vector<32x32xf32>
    %c0_266 = arith.constant 0 : index
    %c131 = arith.constant 131 : index
    %498 = vector.load %arg13[%c0_266, %c131] : memref<32x768xf32, #tpu.memory_space<vmem>>, vector<32x32xf32>
    %499 = arith.andi %426, %428 : vector<1x32xi1>
    %cst_267 = arith.constant 0.000000e+00 : f32
    %500 = vector.shape_cast %499 : vector<1x32xi1> to vector<1x32xi1>
    %501 = vector.broadcast %500 : vector<1x32xi1> to vector<32x32xi1>
    %502 = vector.broadcast %cst_267 : f32 to vector<32x32xf32>
    %503 = arith.select %501, %498, %502 : vector<32x32xi1>, vector<32x32xf32>
    %504 = arith.truncf %503 : vector<32x32xf32> to vector<32x32xbf16>
    %c6_268 = arith.constant 6 : index
    %c0_269 = arith.constant 0 : index
    %c0_270 = arith.constant 0 : index
    %505 = vector.load %arg6[%c6_268, %c0_269, %c0_270] : memref<9x32x32xbf16, #tpu.memory_space<vmem>>, vector<1x32x32xbf16>
    %506 = vector.shape_cast %505 : vector<1x32x32xbf16> to vector<32x32xbf16>
    %cst_271 = arith.constant dense<0.000000e+00> : vector<32x32xf32>
    %507 = tpu.matmul %506, %504, %cst_271 {dimension_numbers = #tpu.dot_dimension_numbers<[1], [0], [0], [1], [0, 0, 1, 1], [], []>} : vector<32x32xbf16>, vector<32x32xbf16>, vector<32x32xf32> -> vector<32x32xf32>
    %508 = arith.addf %497, %507 : vector<32x32xf32>
    %c0_272 = arith.constant 0 : index
    %c132 = arith.constant 132 : index
    %509 = vector.load %arg13[%c0_272, %c132] : memref<32x768xf32, #tpu.memory_space<vmem>>, vector<32x32xf32>
    %510 = arith.andi %426, %430 : vector<1x32xi1>
    %cst_273 = arith.constant 0.000000e+00 : f32
    %511 = vector.shape_cast %510 : vector<1x32xi1> to vector<1x32xi1>
    %512 = vector.broadcast %511 : vector<1x32xi1> to vector<32x32xi1>
    %513 = vector.broadcast %cst_273 : f32 to vector<32x32xf32>
    %514 = arith.select %512, %509, %513 : vector<32x32xi1>, vector<32x32xf32>
    %515 = arith.truncf %514 : vector<32x32xf32> to vector<32x32xbf16>
    %c7_274 = arith.constant 7 : index
    %c0_275 = arith.constant 0 : index
    %c0_276 = arith.constant 0 : index
    %516 = vector.load %arg6[%c7_274, %c0_275, %c0_276] : memref<9x32x32xbf16, #tpu.memory_space<vmem>>, vector<1x32x32xbf16>
    %517 = vector.shape_cast %516 : vector<1x32x32xbf16> to vector<32x32xbf16>
    %cst_277 = arith.constant dense<0.000000e+00> : vector<32x32xf32>
    %518 = tpu.matmul %517, %515, %cst_277 {dimension_numbers = #tpu.dot_dimension_numbers<[1], [0], [0], [1], [0, 0, 1, 1], [], []>} : vector<32x32xbf16>, vector<32x32xbf16>, vector<32x32xf32> -> vector<32x32xf32>
    %519 = arith.addf %508, %518 : vector<32x32xf32>
    %c0_278 = arith.constant 0 : index
    %c133 = arith.constant 133 : index
    %520 = vector.load %arg13[%c0_278, %c133] : memref<32x768xf32, #tpu.memory_space<vmem>>, vector<32x32xf32>
    %521 = arith.andi %426, %432 : vector<1x32xi1>
    %cst_279 = arith.constant 0.000000e+00 : f32
    %522 = vector.shape_cast %521 : vector<1x32xi1> to vector<1x32xi1>
    %523 = vector.broadcast %522 : vector<1x32xi1> to vector<32x32xi1>
    %524 = vector.broadcast %cst_279 : f32 to vector<32x32xf32>
    %525 = arith.select %523, %520, %524 : vector<32x32xi1>, vector<32x32xf32>
    %526 = arith.truncf %525 : vector<32x32xf32> to vector<32x32xbf16>
    %c8_280 = arith.constant 8 : index
    %c0_281 = arith.constant 0 : index
    %c0_282 = arith.constant 0 : index
    %527 = vector.load %arg6[%c8_280, %c0_281, %c0_282] : memref<9x32x32xbf16, #tpu.memory_space<vmem>>, vector<1x32x32xbf16>
    %528 = vector.shape_cast %527 : vector<1x32x32xbf16> to vector<32x32xbf16>
    %cst_283 = arith.constant dense<0.000000e+00> : vector<32x32xf32>
    %529 = tpu.matmul %528, %526, %cst_283 {dimension_numbers = #tpu.dot_dimension_numbers<[1], [0], [0], [1], [0, 0, 1, 1], [], []>} : vector<32x32xbf16>, vector<32x32xbf16>, vector<32x32xf32> -> vector<32x32xf32>
    %530 = arith.addf %519, %529 : vector<32x32xf32>
    %c0_284 = arith.constant 0 : index
    %c0_285 = arith.constant 0 : index
    %531 = vector.load %arg7[%c0_284, %c0_285] : memref<32x1xf32, #tpu.memory_space<vmem>>, vector<32x1xf32>
    %532 = vector.broadcast %531 : vector<32x1xf32> to vector<32x32xf32>
    %533 = arith.addf %530, %532 : vector<32x32xf32>
    %534 = vector.extract_strided_slice %533 {offsets = [0, 0], sizes = [32, 16], strides = [1, 1]} : vector<32x32xf32> to vector<32x16xf32>
    %c0_286 = arith.constant 0 : index
    %c0_287 = arith.constant 0 : index
    %c0_288 = arith.constant 0 : index
    %535 = vector.load %arg8[%c0_286, %c0_287, %c0_288] : memref<2x32x16xf32, #tpu.memory_space<vmem>>, vector<1x32x16xf32>
    %536 = vector.shape_cast %535 : vector<1x32x16xf32> to vector<32x16xf32>
    %537 = vector.shape_cast %534 : vector<32x16xf32> to vector<1x32x16xf32>
    tpu.vector_store %arg8[%c0_286, %c0_287, %c0_288], %537 {strides = array<i32>} : memref<2x32x16xf32, #tpu.memory_space<vmem>>, vector<1x32x16xf32>,
    %538 = vector.extract_strided_slice %533 {offsets = [0, 16], sizes = [32, 16], strides = [1, 1]} : vector<32x32xf32> to vector<32x16xf32>
    %c1_289 = arith.constant 1 : index
    %c0_290 = arith.constant 0 : index
    %c0_291 = arith.constant 0 : index
    %539 = vector.load %arg8[%c1_289, %c0_290, %c0_291] : memref<2x32x16xf32, #tpu.memory_space<vmem>>, vector<1x32x16xf32>
    %540 = vector.shape_cast %539 : vector<1x32x16xf32> to vector<32x16xf32>
    %541 = vector.shape_cast %538 : vector<32x16xf32> to vector<1x32x16xf32>
    tpu.vector_store %arg8[%c1_289, %c0_290, %c0_291], %541 {strides = array<i32>} : memref<2x32x16xf32, #tpu.memory_space<vmem>>, vector<1x32x16xf32>,
    return
  }
  func.func @transform_0(%arg0: i32) -> (i32, i32, i32) {
    %c0_i32 = arith.constant 0 : i32
    %c0_i32_0 = arith.constant 0 : i32
    %c0_i32_1 = arith.constant 0 : i32
    return %arg0, %c0_i32, %c0_i32_0 : i32, i32, i32
  }
  func.func @transform_1(%arg0: i32) -> (i32, i32, i32) {
    %c0_i32 = arith.constant 0 : i32
    %c0_i32_0 = arith.constant 0 : i32
    %c0_i32_1 = arith.constant 0 : i32
    %c0_i32_2 = arith.constant 0 : i32
    return %c0_i32, %c0_i32_0, %c0_i32_1 : i32, i32, i32
  }
  func.func @transform_2(%arg0: i32) -> (i32, i32) {
    %c0_i32 = arith.constant 0 : i32
    %c0_i32_0 = arith.constant 0 : i32
    %c0_i32_1 = arith.constant 0 : i32
    return %c0_i32, %c0_i32_0 : i32, i32
  }
  func.func @transform_3(%arg0: i32) -> (i32, i32, i32) {
    %c0_i32 = arith.constant 0 : i32
    %c0_i32_0 = arith.constant 0 : i32
    %c0_i32_1 = arith.constant 0 : i32
    %c0_i32_2 = arith.constant 0 : i32
    return %c0_i32, %c0_i32_0, %c0_i32_1 : i32, i32, i32
  }
  func.func @transform_4(%arg0: i32) -> (i32, i32) {
    %c0_i32 = arith.constant 0 : i32
    %c0_i32_0 = arith.constant 0 : i32
    %c0_i32_1 = arith.constant 0 : i32
    return %c0_i32, %c0_i32_0 : i32, i32
  }
  func.func @transform_5(%arg0: i32) -> (i32, i32, i32) {
    %c0_i32 = arith.constant 0 : i32
    %c0_i32_0 = arith.constant 0 : i32
    %c0_i32_1 = arith.constant 0 : i32
    %c0_i32_2 = arith.constant 0 : i32
    return %c0_i32, %c0_i32_0, %c0_i32_1 : i32, i32, i32
  }
  func.func @transform_6(%arg0: i32) -> (i32, i32) {
    %c0_i32 = arith.constant 0 : i32
    %c0_i32_0 = arith.constant 0 : i32
    %c0_i32_1 = arith.constant 0 : i32
    return %c0_i32, %c0_i32_0 : i32, i32
  }
  func.func @transform_7(%arg0: i32) -> (i32, i32, i32) {
    %c0_i32 = arith.constant 0 : i32
    %c0_i32_0 = arith.constant 0 : i32
    %c0_i32_1 = arith.constant 0 : i32
    return %arg0, %c0_i32, %c0_i32_0 : i32, i32, i32
  }
  func.func @transform_8(%arg0: i32) -> (i32, i32, i32) {
    %c0_i32 = arith.constant 0 : i32
    %c0_i32_0 = arith.constant 0 : i32
    %c0_i32_1 = arith.constant 0 : i32
    return %arg0, %c0_i32, %c0_i32_0 : i32, i32, i32
  }
  func.func @transform_9(%arg0: i32) -> (i32, i32, i32) {
    %c0_i32 = arith.constant 0 : i32
    %c0_i32_0 = arith.constant 0 : i32
    %c0_i32_1 = arith.constant 0 : i32
    return %arg0, %c0_i32, %c0_i32_0 : i32, i32, i32
  }
  func.func @transform_10(%arg0: i32) -> (i32, i32, i32) {
    %c0_i32 = arith.constant 0 : i32
    %c0_i32_0 = arith.constant 0 : i32
    %c0_i32_1 = arith.constant 0 : i32
    return %arg0, %c0_i32, %c0_i32_0 : i32, i32, i32
  }
  func.func @transform_11(%arg0: i32) -> (i32, i32, i32) {
    %c0_i32 = arith.constant 0 : i32
    %c0_i32_0 = arith.constant 0 : i32
    %c0_i32_1 = arith.constant 0 : i32
    return %arg0, %c0_i32, %c0_i32_0 : i32, i32, i32
  }
}

</mosaic_0001>

<llo_original>
// kernel: _forward_impl.1
$region0: #{_forward_impl.1}
  #allocation0 [shape = 'u32[]', space=smem, size = 0x4, offset = 0x4, fixed_abs, tag = 'smem constant byte address 0x4 - core index']
  #allocation1 [shape = 'u32[144,128]{1,0:T(1,128)}', space=vmem, size = 0x12000, scoped, tag = 'internal scratch']
  #allocation2 [shape = 'f32[32,768]{1,0:T(8,128)}', space=vmem, size = 0x18000, scoped, tag = 'scratch operand']
  %s0 = inlined_call_operand.vmem [shape: f32[2,4,256], index: 0, kind: input, shape index: {}]
  %s1 = inlined_call_operand.hbm [shape: bf16[9,16,4], index: 1, kind: input, shape index: {}]
  %s2 = inlined_call_operand.hbm [shape: f32[16,1], index: 2, kind: input, shape index: {}]
  %s3 = inlined_call_operand.hbm [shape: bf16[9,32,16], index: 3, kind: input, shape index: {}]
  %s4 = inlined_call_operand.hbm [shape: f32[32,1], index: 4, kind: input, shape index: {}]
  %s5 = inlined_call_operand.vmem [shape: bf16[9,32,32], index: 5, kind: input, shape index: {}]
  %s6 = inlined_call_operand.vmem [shape: f32[32,1], index: 6, kind: input, shape index: {}]
  %s7 = inlined_call_operand.vmem [shape: f32[2,32,16], index: 7, kind: output, shape index: {0}]
  %s8 = inlined_call_operand.vmem [shape: f32[2,16,256], index: 8, kind: output, shape index: {1}]
  %s9 = inlined_call_operand.vmem [shape: s32[2,16,64], index: 9, kind: output, shape index: {2}]
  %s10 = inlined_call_operand.vmem [shape: f32[2,32,64], index: 10, kind: output, shape index: {3}]
  %s11 = inlined_call_operand.vmem [shape: s32[2,32,16], index: 11, kind: output, shape index: {4}]
  %12 = xla_tuple %s7, %s8, %s9, %s10, %s11
  %s13 = sld [smem:[#allocation0]]
  $region86: #{_forward_impl.1} parent=0
    _
  %s15 = ssub.s32 1, %s13
  %s16 = scalar_select 0, %s15, %s13
  $region1: #{_forward_impl.1} parent=0
    #allocation3 [shape = 'u8[36864]{0}', space=vmem, size = 0x9000, scoped, tag = 'input window, operand 1, single buffered']
    #allocation4 [shape = 's32[1]{0}', space=sflag, size = 0x4, scoped, tag = 'scoped memory for _forward_impl.1']
    #allocation5 [shape = 'u8[8192]{0}', space=vmem, size = 0x2000, scoped, tag = 'input window, operand 2, single buffered']
    #allocation6 [shape = 's32[1]{0}', space=sflag, size = 0x4, scoped, tag = 'scoped memory for _forward_impl.1']
    #allocation7 [shape = 'u8[73728]{0}', space=vmem, size = 0x12000, scoped, tag = 'input window, operand 3, single buffered']
    #allocation8 [shape = 'u8[16384]{0}', space=vmem, size = 0x4000, scoped, tag = 'input window, operand 4, single buffered']
    #allocation9 [shape = 's32[1]{0}', space=sflag, size = 0x4, scoped, tag = 'scoped memory for _forward_impl.1']
    %17 = vsyncpa [#allocation4], 0
    %18 = vsyncpa [#allocation6], 0
    %19 = vsyncpa [#allocation9], 0
    // Predicated region
    $region2: #{_forward_impl.1} parent=1 // pred_check
      _
    $region3: #{_forward_impl.1} parent=1 // pred_check_branch
      %21 = sbr.rel (0) target = $region5
    $region4: #{_forward_impl.1} parent=1 // pred_region
      _
    $region5: #{_forward_impl.1} parent=1 // pred_fallthru
      _
    // Predicated region
    $region6: #{_forward_impl.1} parent=1 // pred_check
      _
    $region7: #{_forward_impl.1} parent=1 // pred_check_branch
      %23 = sbr.rel (0) target = $region9
    $region8: #{_forward_impl.1} parent=1 // pred_region
      %s25 = ssub.s32 1152, 1152
      %26 = vsyncadd [#allocation4], %s25
      %s27 = sshll.u32 [#allocation3], 4
      %s28 = int_to_ptr.vmem [resolvable:$true] %s27
      %33 = dma.hbm_to_vmem [thread:$0]  %s1, 1152, %s28, [#allocation4], 64, 64, 4
    $region9: #{_forward_impl.1} parent=1 // pred_fallthru
      _
    // Predicated region
    $region10: #{_forward_impl.1} parent=1 // pred_check
      _
    $region11: #{_forward_impl.1} parent=1 // pred_check_branch
      %35 = sbr.rel (0) target = $region13
    $region12: #{_forward_impl.1} parent=1 // pred_region
      %s37 = ssub.s32 256, 256
      %38 = vsyncadd [#allocation6], %s37
      %s39 = sshll.u32 [#allocation5], 4
      %s40 = int_to_ptr.vmem [resolvable:$true] %s39
      %45 = dma.hbm_to_vmem [thread:$0]  %s2, 256, %s40, [#allocation6], 128, 128, 8
    $region13: #{_forward_impl.1} parent=1 // pred_fallthru
      _
    // Predicated region
    $region14: #{_forward_impl.1} parent=1 // pred_check
      _
    $region15: #{_forward_impl.1} parent=1 // pred_check_branch
      %47 = sbr.rel (0) target = $region17
    $region16: #{_forward_impl.1} parent=1 // pred_region
      %s49 = ssub.s32 2304, 2304
      %50 = vsyncadd [#allocation6], %s49
      %s51 = sshll.u32 [#allocation7], 4
      %s52 = int_to_ptr.vmem [resolvable:$true] %s51
      %57 = dma.hbm_to_vmem [thread:$0]  %s3, 2304, %s52, [#allocation6], 64, 64, 4
    $region17: #{_forward_impl.1} parent=1 // pred_fallthru
      _
    // Predicated region
    $region18: #{_forward_impl.1} parent=1 // pred_check
      _
    $region19: #{_forward_impl.1} parent=1 // pred_check_branch
      %59 = sbr.rel (0) target = $region21
    $region20: #{_forward_impl.1} parent=1 // pred_region
      %s61 = ssub.s32 512, 512
      %62 = vsyncadd [#allocation9], %s61
      %s63 = sshll.u32 [#allocation8], 4
      %s64 = int_to_ptr.vmem [resolvable:$true] %s63
      %69 = dma.hbm_to_vmem [thread:$0]  %s4, 512, %s64, [#allocation9], 128, 128, 8
    $region21: #{_forward_impl.1} parent=1 // pred_fallthru
      _
    // Predicated region
    $region22: #{_forward_impl.1} parent=1 // pred_check
      _
    $region23: #{_forward_impl.1} parent=1 // pred_check_branch
      %71 = sbr.rel (0) target = $region25
    $region24: #{_forward_impl.1} parent=1 // pred_region
      _
    $region25: #{_forward_impl.1} parent=1 // pred_fallthru
      _
    // Predicated region
    $region26: #{_forward_impl.1} parent=1 // pred_check
      _
    $region27: #{_forward_impl.1} parent=1 // pred_check_branch
      %73 = sbr.rel (0) target = $region29
    $region28: #{_forward_impl.1} parent=1 // pred_region
      _
    $region29: #{_forward_impl.1} parent=1 // pred_fallthru
      _
    // Predicated region
    $region30: #{_forward_impl.1} parent=1 // pred_check
      _
    $region31: #{_forward_impl.1} parent=1 // pred_check_branch
      %75 = sbr.rel (0) target = $region33
    $region32: #{_forward_impl.1} parent=1 // pred_region
      %76 = dma.done [#allocation4], 1152
    $region33: #{_forward_impl.1} parent=1 // pred_fallthru
      _
    // Predicated region
    $region34: #{_forward_impl.1} parent=1 // pred_check
      _
    $region35: #{_forward_impl.1} parent=1 // pred_check_branch
      %78 = sbr.rel (0) target = $region37
    $region36: #{_forward_impl.1} parent=1 // pred_region
      %79 = dma.done [#allocation6], 256
    $region37: #{_forward_impl.1} parent=1 // pred_fallthru
      _
    // Predicated region
    $region38: #{_forward_impl.1} parent=1 // pred_check
      _
    $region39: #{_forward_impl.1} parent=1 // pred_check_branch
      %81 = sbr.rel (0) target = $region41
    $region40: #{_forward_impl.1} parent=1 // pred_region
      %82 = dma.done [#allocation6], 2304
    $region41: #{_forward_impl.1} parent=1 // pred_fallthru
      _
    // Predicated region
    $region42: #{_forward_impl.1} parent=1 // pred_check
      _
    $region43: #{_forward_impl.1} parent=1 // pred_check_branch
      %84 = sbr.rel (0) target = $region45
    $region44: #{_forward_impl.1} parent=1 // pred_region
      %85 = dma.done [#allocation9], 512
    $region45: #{_forward_impl.1} parent=1 // pred_fallthru
      _
    %87 = vst [vmem:[#allocation2] sm:$0xff] 0.0
    %88 = vst [vmem:[#allocation2 + $0x30] sm:$0xff] 0.0
    %89 = vst [vmem:[#allocation2 + $0x60] sm:$0xff] 0.0
    %90 = vst [vmem:[#allocation2 + $0x90] sm:$0xff] 0.0
    %91 = vst [vmem:[#allocation2 + $0x28] sm:$0xf] 0.0
    %v92 = vld [vmem:[%s0] sm:$0xff]
    %v94 = vcombine.high %v92, %v92
    %96 = vst [vmem:[#allocation2 + $0x8] sm:$0xf] %v92
    %97 = vst [vmem:[#allocation2 + $0x10] sm:$0xf] %v94
    %s98 = scalar_lea.vmem %s0, 8
    %v99 = vld [vmem:[%s98] sm:$0xff]
    %v101 = vcombine.high %v99, %v99
    %103 = vst [vmem:[#allocation2 + $0x18] sm:$0xf] %v99
    %104 = vst [vmem:[#allocation2 + $0x20] sm:$0xf] %v101
    %v105 = vlaneseq
    %v106 = vand.u32 %v105, 127
    %v107 = vadd.s32 %v106, 128
    %v108 = vadd.s32 %v106, 256
    %v109 = vadd.s32 %v106, 384
    %v110 = vand.u32 %v106, 15
    %v111 = vand.u32 %v107, 15
    %v112 = vand.u32 %v108, 15
    %v113 = vand.u32 %v109, 15
    %v114 = vshra.s32 %v106, 4
    %v115 = vshra.s32 %v107, 4
    %v116 = vshra.s32 %v108, 4
    %v117 = vshra.s32 %v109, 4
    %v118 = vand.u32 %v114, 15
    %v119 = vand.u32 %v115, 15
    %v120 = vand.u32 %v116, 15
    %v121 = vand.u32 %v117, 15
    %vm122 = vcmp.ge.s32.totalorder %v118, 1
    %vm123 = vcmp.ge.s32.totalorder %v119, 1
    %vm124 = vcmp.ge.s32.totalorder %v120, 1
    %vm125 = vcmp.ge.s32.totalorder %v121, 1
    %vm126 = vcmp.ge.s32.totalorder %v118, 0
    %vm127 = vcmp.ge.s32.totalorder %v119, 0
    %vm128 = vcmp.ge.s32.totalorder %v120, 0
    %vm129 = vcmp.ge.s32.totalorder %v121, 0
    %vm130 = vcmp.lt.s32.totalorder %v118, 15
    %vm131 = vcmp.lt.s32.totalorder %v119, 15
    %vm132 = vcmp.lt.s32.totalorder %v120, 15
    %vm133 = vcmp.lt.s32.totalorder %v121, 15
    %vm134 = vcmp.ge.s32.totalorder %v110, 1
    %vm135 = vcmp.ge.s32.totalorder %v111, 1
    %vm136 = vcmp.ge.s32.totalorder %v112, 1
    %vm137 = vcmp.ge.s32.totalorder %v113, 1
    %vm138 = vcmp.ge.s32.totalorder %v110, 0
    %vm139 = vcmp.ge.s32.totalorder %v111, 0
    %vm140 = vcmp.ge.s32.totalorder %v112, 0
    %vm141 = vcmp.ge.s32.totalorder %v113, 0
    %vm142 = vcmp.lt.s32.totalorder %v110, 15
    %vm143 = vcmp.lt.s32.totalorder %v111, 15
    %vm144 = vcmp.lt.s32.totalorder %v112, 15
    %vm145 = vcmp.lt.s32.totalorder %v113, 15
    %v146 = vld [vmem:[#allocation2] sm:$0xf]
    %v147 = vld [vmem:[#allocation2 + $0x8] sm:$0xf]
    %v148 = vld [vmem:[#allocation2 + $0x10] sm:$0xf]
    %v149 = vld [vmem:[#allocation2 + $0x18] sm:$0xf]
    %v150 = vld [vmem:[#allocation2 + $0x20] sm:$0xf]
    %vm151 = vmand %vm122, %vm134
    %vm152 = vmand %vm123, %vm135
    %vm153 = vmand %vm124, %vm136
    %vm154 = vmand %vm125, %vm137
    %v155 = vsel %vm151, 1, 0
    %v156 = vsel %vm152, 1, 0
    %v157 = vsel %vm153, 1, 0
    %v158 = vsel %vm154, 1, 0
    %vm159 = vcmp.eq.s32.totalorder %v155, 1
    %vm160 = vcmp.eq.s32.totalorder %v156, 1
    %vm161 = vcmp.eq.s32.totalorder %v157, 1
    %vm162 = vcmp.eq.s32.totalorder %v158, 1
    %168 = vrot.lane.b32.xlu0 %v146, 17
    %v169 = vpop.permute.xlu0 %168
    %170 = vrot.lane.b32.xlu0 %v147, 17
    %v171 = vpop.permute.xlu0 %170
    %172 = vrot.lane.b32.xlu0 %v148, 17
    %v173 = vpop.permute.xlu0 %172
    %174 = vrot.lane.b32.xlu0 %v149, 17
    %v175 = vpop.permute.xlu0 %174
    %176 = vrot.lane.b32.xlu0 %v150, 17
    %v177 = vpop.permute.xlu0 %176
    %vm178 = vcmask 138240
    %v179 = vsel %vm178, %v169, %v171
    %v180 = vsel %vm178, %v171, %v173
    %v181 = vsel %vm178, %v173, %v175
    %v182 = vsel %vm178, %v175, %v177
    %v187 = vsel %vm159, %v179, 0.0
    %v188 = vsel %vm160, %v180, 0.0
    %v189 = vsel %vm161, %v181, 0.0
    %v190 = vsel %vm162, %v182, 0.0
    %v191 = vpack.c.bf16 %v187, %v187
    %v192 = vpack.c.bf16 %v188, %v188
    %v193 = vpack.c.bf16 %v189, %v189
    %v194 = vpack.c.bf16 %v190, %v190
    %v195 = vld [vmem:[#allocation3] sm:$0xf]
    %v196 = vld [vmem:[#allocation3 + $0x4] sm:$0xf]
    %vm197 = vmand %vm122, %vm138
    %vm198 = vmand %vm123, %vm139
    %vm199 = vmand %vm124, %vm140
    %vm200 = vmand %vm125, %vm141
    %v201 = vsel %vm197, 1, 0
    %v202 = vsel %vm198, 1, 0
    %v203 = vsel %vm199, 1, 0
    %v204 = vsel %vm200, 1, 0
    %vm205 = vcmp.eq.s32.totalorder %v201, 1
    %vm206 = vcmp.eq.s32.totalorder %v202, 1
    %vm207 = vcmp.eq.s32.totalorder %v203, 1
    %vm208 = vcmp.eq.s32.totalorder %v204, 1
    %209 = vrot.lane.b32.xlu0 %v146, 16
    %v210 = vpop.permute.xlu0 %209
    %211 = vrot.lane.b32.xlu0 %v147, 16
    %v212 = vpop.permute.xlu0 %211
    %213 = vrot.lane.b32.xlu0 %v148, 16
    %v214 = vpop.permute.xlu0 %213
    %215 = vrot.lane.b32.xlu0 %v149, 16
    %v216 = vpop.permute.xlu0 %215
    %217 = vrot.lane.b32.xlu0 %v150, 16
    %v218 = vpop.permute.xlu0 %217
    %vm219 = vcmask 130048
    %v220 = vsel %vm219, %v210, %v212
    %v221 = vsel %vm219, %v212, %v214
    %v222 = vsel %vm219, %v214, %v216
    %v223 = vsel %vm219, %v216, %v218
    %v228 = vsel %vm205, %v220, 0.0
    %v229 = vsel %vm206, %v221, 0.0
    %v230 = vsel %vm207, %v222, 0.0
    %v231 = vsel %vm208, %v223, 0.0
    %v232 = vpack.c.bf16 %v228, %v228
    %v233 = vpack.c.bf16 %v229, %v229
    %v234 = vpack.c.bf16 %v230, %v230
    %v235 = vpack.c.bf16 %v231, %v231
    %s236 = scalar_lea.vmem [#allocation3], 8
    %v237 = vld [vmem:[%s236] sm:$0xf]
    %v238 = vld [vmem:[%s236 + $0x4] sm:$0xf]
    %v241 = vunpack.c.l.b16 %v237
    %v242 = vunpack.c.l.b16 %v238
    %v243 = vpack.c.b16 %v242, %v241
    %vm244 = vcmask 31744
    %v246 = vsel %vm244, %v243, 0
    %vm248 = vcmask 1041408
    %v250 = vsel %vm248, %v232, 0
    %v253 = vsel %vm248, %v233, 0
    %v256 = vsel %vm248, %v234, 0
    %v259 = vsel %vm248, %v235, 0
    %261 = vmatprep.subr.bf16.mxu0 %v253
    %262 = vmatpush1.bf16.msra.mxu0 %v250
    %263 = vmatprep.subr.bf16.mxu0 0
    %264 = vmatpush1.bf16.msra.mxu0 0
    %265 = vmatprep.subr.bf16.mxu0 0
    %266 = vmatpush1.bf16.msra.mxu0 0
    %267 = vmatprep.subr.bf16.mxu0 0
    %268 = vmatpush1.bf16.msra.mxu0 0
    %269 = vmatprep.subr.bf16.mxu0 0
    %270 = vmatpush1.bf16.msra.mxu0 0
    %271 = vmatprep.subr.bf16.mxu0 0
    %272 = vmatpush1.bf16.msra.mxu0 0
    %273 = vmatprep.subr.bf16.mxu0 0
    %274 = vmatpush1.bf16.msra.mxu0 0
    %275 = vmatprep.subr.bf16.mxu0 0
    %276 = vmatpush1.bf16.msra.mxu0 0
    %277 = vmatprep.subr.bf16.mxu0 0
    %278 = vmatpush1.bf16.msra.mxu0 0
    %279 = vmatprep.subr.bf16.mxu0 0
    %280 = vmatpush1.bf16.msra.mxu0 0
    %281 = vmatprep.subr.bf16.mxu0 0
    %282 = vmatpush1.bf16.msra.mxu0 0
    %283 = vmatprep.subr.bf16.mxu0 0
    %284 = vmatpush1.bf16.msra.mxu0 0
    %285 = vmatprep.subr.bf16.mxu0 0
    %286 = vmatpush1.bf16.msra.mxu0 0
    %287 = vmatprep.subr.bf16.mxu0 0
    %288 = vmatpush1.bf16.msra.mxu0 0
    %289 = vmatprep.subr.bf16.mxu0 0
    %290 = vmatpush1.bf16.msra.mxu0 0
    %291 = vmatprep.subr.bf16.mxu0 0
    %292 = vmatpush1.bf16.msra.mxu0 0
    %293 = vmatprep.mubr.bf16.mxu0 0
    %294 = vmatmul.mubr.bf16.gmra.mrb[0].mxu0 %v246
    %v295 = vpop.f32.mrb[0].mxu0
    %v296 = vadd.f32 0.0, %v295
    %v297 = vpop.f32.mrb[0].mxu0
    %v298 = vadd.f32 0.0, %v297
    %v299 = vpop.f32.mrb[0].mxu0
    %v300 = vadd.f32 0.0, %v299
    %v301 = vpop.f32.mrb[0].mxu0
    %v302 = vadd.f32 0.0, %v301
    %303 = vdwg.mxu0
    %304 = vmatprep.subr.bf16.mxu0 %v259
    %305 = vmatpush1.bf16.msra.mxu0 %v256
    %306 = vmatprep.subr.bf16.mxu0 0
    %307 = vmatpush1.bf16.msra.mxu0 0
    %308 = vmatprep.subr.bf16.mxu0 0
    %309 = vmatpush1.bf16.msra.mxu0 0
    %310 = vmatprep.subr.bf16.mxu0 0
    %311 = vmatpush1.bf16.msra.mxu0 0
    %312 = vmatprep.subr.bf16.mxu0 0
    %313 = vmatpush1.bf16.msra.mxu0 0
    %314 = vmatprep.subr.bf16.mxu0 0
    %315 = vmatpush1.bf16.msra.mxu0 0
    %316 = vmatprep.subr.bf16.mxu0 0
    %317 = vmatpush1.bf16.msra.mxu0 0
    %318 = vmatprep.subr.bf16.mxu0 0
    %319 = vmatpush1.bf16.msra.mxu0 0
    %320 = vmatprep.subr.bf16.mxu0 0
    %321 = vmatpush1.bf16.msra.mxu0 0
    %322 = vmatprep.subr.bf16.mxu0 0
    %323 = vmatpush1.bf16.msra.mxu0 0
    %324 = vmatprep.subr.bf16.mxu0 0
    %325 = vmatpush1.bf16.msra.mxu0 0
    %326 = vmatprep.subr.bf16.mxu0 0
    %327 = vmatpush1.bf16.msra.mxu0 0
    %328 = vmatprep.subr.bf16.mxu0 0
    %329 = vmatpush1.bf16.msra.mxu0 0
    %330 = vmatprep.subr.bf16.mxu0 0
    %331 = vmatpush1.bf16.msra.mxu0 0
    %332 = vmatprep.subr.bf16.mxu0 0
    %333 = vmatpush1.bf16.msra.mxu0 0
    %334 = vmatprep.subr.bf16.mxu0 0
    %335 = vmatpush1.bf16.msra.mxu0 0
    %336 = vmatprep.mubr.bf16.mxu0 0
    %337 = vmatmul.mubr.bf16.gmra.mrb[0].mxu0 %v246
    %v338 = vpop.f32.mrb[0].mxu0
    %v339 = vadd.f32 0.0, %v338
    %v340 = vpop.f32.mrb[0].mxu0
    %v341 = vadd.f32 0.0, %v340
    %v342 = vpop.f32.mrb[0].mxu0
    %v343 = vadd.f32 0.0, %v342
    %v344 = vpop.f32.mrb[0].mxu0
    %v345 = vadd.f32 0.0, %v344
    %346 = vdwg.mxu0
    %v349 = vunpack.c.l.b16 %v195
    %v350 = vunpack.c.l.b16 %v196
    %v351 = vpack.c.b16 %v350, %v349
    %v353 = vsel %vm244, %v351, 0
    %v356 = vsel %vm248, %v191, 0
    %v359 = vsel %vm248, %v192, 0
    %v362 = vsel %vm248, %v193, 0
    %v365 = vsel %vm248, %v194, 0
    %367 = vmatprep.subr.bf16.mxu0 %v359
    %368 = vmatpush1.bf16.msra.mxu0 %v356
    %369 = vmatprep.subr.bf16.mxu0 0
    %370 = vmatpush1.bf16.msra.mxu0 0
    %371 = vmatprep.subr.bf16.mxu0 0
    %372 = vmatpush1.bf16.msra.mxu0 0
    %373 = vmatprep.subr.bf16.mxu0 0
    %374 = vmatpush1.bf16.msra.mxu0 0
    %375 = vmatprep.subr.bf16.mxu0 0
    %376 = vmatpush1.bf16.msra.mxu0 0
    %377 = vmatprep.subr.bf16.mxu0 0
    %378 = vmatpush1.bf16.msra.mxu0 0
    %379 = vmatprep.subr.bf16.mxu0 0
    %380 = vmatpush1.bf16.msra.mxu0 0
    %381 = vmatprep.subr.bf16.mxu0 0
    %382 = vmatpush1.bf16.msra.mxu0 0
    %383 = vmatprep.subr.bf16.mxu0 0
    %384 = vmatpush1.bf16.msra.mxu0 0
    %385 = vmatprep.subr.bf16.mxu0 0
    %386 = vmatpush1.bf16.msra.mxu0 0
    %387 = vmatprep.subr.bf16.mxu0 0
    %388 = vmatpush1.bf16.msra.mxu0 0
    %389 = vmatprep.subr.bf16.mxu0 0
    %390 = vmatpush1.bf16.msra.mxu0 0
    %391 = vmatprep.subr.bf16.mxu0 0
    %392 = vmatpush1.bf16.msra.mxu0 0
    %393 = vmatprep.subr.bf16.mxu0 0
    %394 = vmatpush1.bf16.msra.mxu0 0
    %395 = vmatprep.subr.bf16.mxu0 0
    %396 = vmatpush1.bf16.msra.mxu0 0
    %397 = vmatprep.subr.bf16.mxu0 0
    %398 = vmatpush1.bf16.msra.mxu0 0
    %399 = vmatprep.mubr.bf16.mxu0 0
    %400 = vmatmul.mubr.bf16.gmra.mrb[0].mxu0 %v353
    %v401 = vpop.f32.mrb[0].mxu0
    %v402 = vadd.f32 %v296, %v401
    %v403 = vpop.f32.mrb[0].mxu0
    %v404 = vadd.f32 %v298, %v403
    %v405 = vpop.f32.mrb[0].mxu0
    %v406 = vadd.f32 %v300, %v405
    %v407 = vpop.f32.mrb[0].mxu0
    %v408 = vadd.f32 %v302, %v407
    %409 = vdwg.mxu0
    %410 = vmatprep.subr.bf16.mxu0 %v365
    %411 = vmatpush1.bf16.msra.mxu0 %v362
    %412 = vmatprep.subr.bf16.mxu0 0
    %413 = vmatpush1.bf16.msra.mxu0 0
    %414 = vmatprep.subr.bf16.mxu0 0
    %415 = vmatpush1.bf16.msra.mxu0 0
    %416 = vmatprep.subr.bf16.mxu0 0
    %417 = vmatpush1.bf16.msra.mxu0 0
    %418 = vmatprep.subr.bf16.mxu0 0
    %419 = vmatpush1.bf16.msra.mxu0 0
    %420 = vmatprep.subr.bf16.mxu0 0
    %421 = vmatpush1.bf16.msra.mxu0 0
    %422 = vmatprep.subr.bf16.mxu0 0
    %423 = vmatpush1.bf16.msra.mxu0 0
    %424 = vmatprep.subr.bf16.mxu0 0
    %425 = vmatpush1.bf16.msra.mxu0 0
    %426 = vmatprep.subr.bf16.mxu0 0
    %427 = vmatpush1.bf16.msra.mxu0 0
    %428 = vmatprep.subr.bf16.mxu0 0
    %429 = vmatpush1.bf16.msra.mxu0 0
    %430 = vmatprep.subr.bf16.mxu0 0
    %431 = vmatpush1.bf16.msra.mxu0 0
    %432 = vmatprep.subr.bf16.mxu0 0
    %433 = vmatpush1.bf16.msra.mxu0 0
    %434 = vmatprep.subr.bf16.mxu0 0
    %435 = vmatpush1.bf16.msra.mxu0 0
    %436 = vmatprep.subr.bf16.mxu0 0
    %437 = vmatpush1.bf16.msra.mxu0 0
    %438 = vmatprep.subr.bf16.mxu0 0
    %439 = vmatpush1.bf16.msra.mxu0 0
    %440 = vmatprep.subr.bf16.mxu0 0
    %441 = vmatpush1.bf16.msra.mxu0 0
    %442 = vmatprep.mubr.bf16.mxu0 0
    %443 = vmatmul.mubr.bf16.gmra.mrb[0].mxu0 %v353
    %v444 = vpop.f32.mrb[0].mxu0
    %v445 = vadd.f32 %v339, %v444
    %v446 = vpop.f32.mrb[0].mxu0
    %v447 = vadd.f32 %v341, %v446
    %v448 = vpop.f32.mrb[0].mxu0
    %v449 = vadd.f32 %v343, %v448
    %v450 = vpop.f32.mrb[0].mxu0
    %v451 = vadd.f32 %v345, %v450
    %452 = vdwg.mxu0
    %vm453 = vmand %vm122, %vm142
    %vm454 = vmand %vm123, %vm143
    %vm455 = vmand %vm124, %vm144
    %vm456 = vmand %vm125, %vm145
    %v457 = vsel %vm453, 1, 0
    %v458 = vsel %vm454, 1, 0
    %v459 = vsel %vm455, 1, 0
    %v460 = vsel %vm456, 1, 0
    %vm461 = vcmp.eq.s32.totalorder %v457, 1
    %vm462 = vcmp.eq.s32.totalorder %v458, 1
    %vm463 = vcmp.eq.s32.totalorder %v459, 1
    %vm464 = vcmp.eq.s32.totalorder %v460, 1
    %465 = vrot.lane.b32.xlu0 %v146, 15
    %v466 = vpop.permute.xlu0 %465
    %467 = vrot.lane.b32.xlu0 %v147, 15
    %v468 = vpop.permute.xlu0 %467
    %469 = vrot.lane.b32.xlu0 %v148, 15
    %v470 = vpop.permute.xlu0 %469
    %471 = vrot.lane.b32.xlu0 %v149, 15
    %v472 = vpop.permute.xlu0 %471
    %473 = vrot.lane.b32.xlu0 %v150, 15
    %v474 = vpop.permute.xlu0 %473
    %vm475 = vcmask 121856
    %v476 = vsel %vm475, %v466, %v468
    %v477 = vsel %vm475, %v468, %v470
    %v478 = vsel %vm475, %v470, %v472
    %v479 = vsel %vm475, %v472, %v474
    %v484 = vsel %vm461, %v476, 0.0
    %v485 = vsel %vm462, %v477, 0.0
    %v486 = vsel %vm463, %v478, 0.0
    %v487 = vsel %vm464, %v479, 0.0
    %v488 = vpack.c.bf16 %v484, %v484
    %v489 = vpack.c.bf16 %v485, %v485
    %v490 = vpack.c.bf16 %v486, %v486
    %v491 = vpack.c.bf16 %v487, %v487
    %s492 = scalar_lea.vmem [#allocation3], 16
    %v493 = vld [vmem:[%s492] sm:$0xf]
    %v494 = vld [vmem:[%s492 + $0x4] sm:$0xf]
    %v497 = vunpack.c.l.b16 %v493
    %v498 = vunpack.c.l.b16 %v494
    %v499 = vpack.c.b16 %v498, %v497
    %v501 = vsel %vm244, %v499, 0
    %v504 = vsel %vm248, %v488, 0
    %v507 = vsel %vm248, %v489, 0
    %v510 = vsel %vm248, %v490, 0
    %v513 = vsel %vm248, %v491, 0
    %515 = vmatprep.subr.bf16.mxu0 %v507
    %516 = vmatpush1.bf16.msra.mxu0 %v504
    %517 = vmatprep.subr.bf16.mxu0 0
    %518 = vmatpush1.bf16.msra.mxu0 0
    %519 = vmatprep.subr.bf16.mxu0 0
    %520 = vmatpush1.bf16.msra.mxu0 0
    %521 = vmatprep.subr.bf16.mxu0 0
    %522 = vmatpush1.bf16.msra.mxu0 0
    %523 = vmatprep.subr.bf16.mxu0 0
    %524 = vmatpush1.bf16.msra.mxu0 0
    %525 = vmatprep.subr.bf16.mxu0 0
    %526 = vmatpush1.bf16.msra.mxu0 0
    %527 = vmatprep.subr.bf16.mxu0 0
    %528 = vmatpush1.bf16.msra.mxu0 0
    %529 = vmatprep.subr.bf16.mxu0 0
    %530 = vmatpush1.bf16.msra.mxu0 0
    %531 = vmatprep.subr.bf16.mxu0 0
    %532 = vmatpush1.bf16.msra.mxu0 0
    %533 = vmatprep.subr.bf16.mxu0 0
    %534 = vmatpush1.bf16.msra.mxu0 0
    %535 = vmatprep.subr.bf16.mxu0 0
    %536 = vmatpush1.bf16.msra.mxu0 0
    %537 = vmatprep.subr.bf16.mxu0 0
    %538 = vmatpush1.bf16.msra.mxu0 0
    %539 = vmatprep.subr.bf16.mxu0 0
    %540 = vmatpush1.bf16.msra.mxu0 0
    %541 = vmatprep.subr.bf16.mxu0 0
    %542 = vmatpush1.bf16.msra.mxu0 0
    %543 = vmatprep.subr.bf16.mxu0 0
    %544 = vmatpush1.bf16.msra.mxu0 0
    %545 = vmatprep.subr.bf16.mxu0 0
    %546 = vmatpush1.bf16.msra.mxu0 0
    %547 = vmatprep.mubr.bf16.mxu0 0
    %548 = vmatmul.mubr.bf16.gmra.mrb[0].mxu0 %v501
    %v549 = vpop.f32.mrb[0].mxu0
    %v550 = vadd.f32 0.0, %v549
    %v551 = vpop.f32.mrb[0].mxu0
    %v552 = vadd.f32 0.0, %v551
    %v553 = vpop.f32.mrb[0].mxu0
    %v554 = vadd.f32 0.0, %v553
    %v555 = vpop.f32.mrb[0].mxu0
    %v556 = vadd.f32 0.0, %v555
    %557 = vdwg.mxu0
    %558 = vmatprep.subr.bf16.mxu0 %v513
    %559 = vmatpush1.bf16.msra.mxu0 %v510
    %560 = vmatprep.subr.bf16.mxu0 0
    %561 = vmatpush1.bf16.msra.mxu0 0
    %562 = vmatprep.subr.bf16.mxu0 0
    %563 = vmatpush1.bf16.msra.mxu0 0
    %564 = vmatprep.subr.bf16.mxu0 0
    %565 = vmatpush1.bf16.msra.mxu0 0
    %566 = vmatprep.subr.bf16.mxu0 0
    %567 = vmatpush1.bf16.msra.mxu0 0
    %568 = vmatprep.subr.bf16.mxu0 0
    %569 = vmatpush1.bf16.msra.mxu0 0
    %570 = vmatprep.subr.bf16.mxu0 0
    %571 = vmatpush1.bf16.msra.mxu0 0
    %572 = vmatprep.subr.bf16.mxu0 0
    %573 = vmatpush1.bf16.msra.mxu0 0
    %574 = vmatprep.subr.bf16.mxu0 0
    %575 = vmatpush1.bf16.msra.mxu0 0
    %576 = vmatprep.subr.bf16.mxu0 0
    %577 = vmatpush1.bf16.msra.mxu0 0
    %578 = vmatprep.subr.bf16.mxu0 0
    %579 = vmatpush1.bf16.msra.mxu0 0
    %580 = vmatprep.subr.bf16.mxu0 0
    %581 = vmatpush1.bf16.msra.mxu0 0
    %582 = vmatprep.subr.bf16.mxu0 0
    %583 = vmatpush1.bf16.msra.mxu0 0
    %584 = vmatprep.subr.bf16.mxu0 0
    %585 = vmatpush1.bf16.msra.mxu0 0
    %586 = vmatprep.subr.bf16.mxu0 0
    %587 = vmatpush1.bf16.msra.mxu0 0
    %588 = vmatprep.subr.bf16.mxu0 0
    %589 = vmatpush1.bf16.msra.mxu0 0
    %590 = vmatprep.mubr.bf16.mxu0 0
    %591 = vmatmul.mubr.bf16.gmra.mrb[0].mxu0 %v501
    %v592 = vpop.f32.mrb[0].mxu0
    %v593 = vadd.f32 0.0, %v592
    %v594 = vpop.f32.mrb[0].mxu0
    %v595 = vadd.f32 0.0, %v594
    %v596 = vpop.f32.mrb[0].mxu0
    %v597 = vadd.f32 0.0, %v596
    %v598 = vpop.f32.mrb[0].mxu0
    %v599 = vadd.f32 0.0, %v598
    %600 = vdwg.mxu0
    %v601 = vadd.f32 %v402, %v550
    %v602 = vadd.f32 %v404, %v552
    %v603 = vadd.f32 %v445, %v593
    %v604 = vadd.f32 %v447, %v595
    %v605 = vadd.f32 %v406, %v554
    %v606 = vadd.f32 %v408, %v556
    %v607 = vadd.f32 %v449, %v597
    %v608 = vadd.f32 %v451, %v599
    %vm609 = vmand %vm126, %vm134
    %vm610 = vmand %vm127, %vm135
    %vm611 = vmand %vm128, %vm136
    %vm612 = vmand %vm129, %vm137
    %v613 = vsel %vm609, 1, 0
    %v614 = vsel %vm610, 1, 0
    %v615 = vsel %vm611, 1, 0
    %v616 = vsel %vm612, 1, 0
    %vm617 = vcmp.eq.s32.totalorder %v613, 1
    %vm618 = vcmp.eq.s32.totalorder %v614, 1
    %vm619 = vcmp.eq.s32.totalorder %v615, 1
    %vm620 = vcmp.eq.s32.totalorder %v616, 1
    %621 = vrot.lane.b32.xlu0 %v146, 1
    %v622 = vpop.permute.xlu0 %621
    %623 = vrot.lane.b32.xlu0 %v147, 1
    %v624 = vpop.permute.xlu0 %623
    %625 = vrot.lane.b32.xlu0 %v148, 1
    %v626 = vpop.permute.xlu0 %625
    %627 = vrot.lane.b32.xlu0 %v149, 1
    %v628 = vpop.permute.xlu0 %627
    %629 = vrot.lane.b32.xlu0 %v150, 1
    %v630 = vpop.permute.xlu0 %629
    %vm631 = vcmask 7168
    %v632 = vsel %vm631, %v622, %v624
    %v633 = vsel %vm631, %v624, %v626
    %v634 = vsel %vm631, %v626, %v628
    %v635 = vsel %vm631, %v628, %v630
    %v640 = vsel %vm617, %v632, 0.0
    %v641 = vsel %vm618, %v633, 0.0
    %v642 = vsel %vm619, %v634, 0.0
    %v643 = vsel %vm620, %v635, 0.0
    %v644 = vpack.c.bf16 %v640, %v640
    %v645 = vpack.c.bf16 %v641, %v641
    %v646 = vpack.c.bf16 %v642, %v642
    %v647 = vpack.c.bf16 %v643, %v643
    %s648 = scalar_lea.vmem [#allocation3], 24
    %v649 = vld [vmem:[%s648] sm:$0xf]
    %v650 = vld [vmem:[%s648 + $0x4] sm:$0xf]
    %v653 = vunpack.c.l.b16 %v649
    %v654 = vunpack.c.l.b16 %v650
    %v655 = vpack.c.b16 %v654, %v653
    %v657 = vsel %vm244, %v655, 0
    %v660 = vsel %vm248, %v644, 0
    %v663 = vsel %vm248, %v645, 0
    %v666 = vsel %vm248, %v646, 0
    %v669 = vsel %vm248, %v647, 0
    %671 = vmatprep.subr.bf16.mxu0 %v663
    %672 = vmatpush1.bf16.msra.mxu0 %v660
    %673 = vmatprep.subr.bf16.mxu0 0
    %674 = vmatpush1.bf16.msra.mxu0 0
    %675 = vmatprep.subr.bf16.mxu0 0
    %676 = vmatpush1.bf16.msra.mxu0 0
    %677 = vmatprep.subr.bf16.mxu0 0
    %678 = vmatpush1.bf16.msra.mxu0 0
    %679 = vmatprep.subr.bf16.mxu0 0
    %680 = vmatpush1.bf16.msra.mxu0 0
    %681 = vmatprep.subr.bf16.mxu0 0
    %682 = vmatpush1.bf16.msra.mxu0 0
    %683 = vmatprep.subr.bf16.mxu0 0
    %684 = vmatpush1.bf16.msra.mxu0 0
    %685 = vmatprep.subr.bf16.mxu0 0
    %686 = vmatpush1.bf16.msra.mxu0 0
    %687 = vmatprep.subr.bf16.mxu0 0
    %688 = vmatpush1.bf16.msra.mxu0 0
    %689 = vmatprep.subr.bf16.mxu0 0
    %690 = vmatpush1.bf16.msra.mxu0 0
    %691 = vmatprep.subr.bf16.mxu0 0
    %692 = vmatpush1.bf16.msra.mxu0 0
    %693 = vmatprep.subr.bf16.mxu0 0
    %694 = vmatpush1.bf16.msra.mxu0 0
    %695 = vmatprep.subr.bf16.mxu0 0
    %696 = vmatpush1.bf16.msra.mxu0 0
    %697 = vmatprep.subr.bf16.mxu0 0
    %698 = vmatpush1.bf16.msra.mxu0 0
    %699 = vmatprep.subr.bf16.mxu0 0
    %700 = vmatpush1.bf16.msra.mxu0 0
    %701 = vmatprep.subr.bf16.mxu0 0
    %702 = vmatpush1.bf16.msra.mxu0 0
    %703 = vmatprep.mubr.bf16.mxu0 0
    %704 = vmatmul.mubr.bf16.gmra.mrb[0].mxu0 %v657
    %v705 = vpop.f32.mrb[0].mxu0
    %v706 = vadd.f32 0.0, %v705
    %v707 = vpop.f32.mrb[0].mxu0
    %v708 = vadd.f32 0.0, %v707
    %v709 = vpop.f32.mrb[0].mxu0
    %v710 = vadd.f32 0.0, %v709
    %v711 = vpop.f32.mrb[0].mxu0
    %v712 = vadd.f32 0.0, %v711
    %713 = vdwg.mxu0
    %714 = vmatprep.subr.bf16.mxu0 %v669
    %715 = vmatpush1.bf16.msra.mxu0 %v666
    %716 = vmatprep.subr.bf16.mxu0 0
    %717 = vmatpush1.bf16.msra.mxu0 0
    %718 = vmatprep.subr.bf16.mxu0 0
    %719 = vmatpush1.bf16.msra.mxu0 0
    %720 = vmatprep.subr.bf16.mxu0 0
    %721 = vmatpush1.bf16.msra.mxu0 0
    %722 = vmatprep.subr.bf16.mxu0 0
    %723 = vmatpush1.bf16.msra.mxu0 0
    %724 = vmatprep.subr.bf16.mxu0 0
    %725 = vmatpush1.bf16.msra.mxu0 0
    %726 = vmatprep.subr.bf16.mxu0 0
    %727 = vmatpush1.bf16.msra.mxu0 0
    %728 = vmatprep.subr.bf16.mxu0 0
    %729 = vmatpush1.bf16.msra.mxu0 0
    %730 = vmatprep.subr.bf16.mxu0 0
    %731 = vmatpush1.bf16.msra.mxu0 0
    %732 = vmatprep.subr.bf16.mxu0 0
    %733 = vmatpush1.bf16.msra.mxu0 0
    %734 = vmatprep.subr.bf16.mxu0 0
    %735 = vmatpush1.bf16.msra.mxu0 0
    %736 = vmatprep.subr.bf16.mxu0 0
    %737 = vmatpush1.bf16.msra.mxu0 0
    %738 = vmatprep.subr.bf16.mxu0 0
    %739 = vmatpush1.bf16.msra.mxu0 0
    %740 = vmatprep.subr.bf16.mxu0 0
    %741 = vmatpush1.bf16.msra.mxu0 0
    %742 = vmatprep.subr.bf16.mxu0 0
    %743 = vmatpush1.bf16.msra.mxu0 0
    %744 = vmatprep.subr.bf16.mxu0 0
    %745 = vmatpush1.bf16.msra.mxu0 0
    %746 = vmatprep.mubr.bf16.mxu0 0
    %747 = vmatmul.mubr.bf16.gmra.mrb[0].mxu0 %v657
    %v748 = vpop.f32.mrb[0].mxu0
    %v749 = vadd.f32 0.0, %v748
    %v750 = vpop.f32.mrb[0].mxu0
    %v751 = vadd.f32 0.0, %v750
    %v752 = vpop.f32.mrb[0].mxu0
    %v753 = vadd.f32 0.0, %v752
    %v754 = vpop.f32.mrb[0].mxu0
    %v755 = vadd.f32 0.0, %v754
    %756 = vdwg.mxu0
    %v757 = vadd.f32 %v601, %v706
    %v758 = vadd.f32 %v602, %v708
    %v759 = vadd.f32 %v603, %v749
    %v760 = vadd.f32 %v604, %v751
    %v761 = vadd.f32 %v605, %v710
    %v762 = vadd.f32 %v606, %v712
    %v763 = vadd.f32 %v607, %v753
    %v764 = vadd.f32 %v608, %v755
    %vm765 = vmand %vm126, %vm138
    %vm766 = vmand %vm127, %vm139
    %vm767 = vmand %vm128, %vm140
    %vm768 = vmand %vm129, %vm141
    %v769 = vsel %vm765, 1, 0
    %v770 = vsel %vm766, 1, 0
    %v771 = vsel %vm767, 1, 0
    %v772 = vsel %vm768, 1, 0
    %vm773 = vcmp.eq.s32.totalorder %v769, 1
    %vm774 = vcmp.eq.s32.totalorder %v770, 1
    %vm775 = vcmp.eq.s32.totalorder %v771, 1
    %vm776 = vcmp.eq.s32.totalorder %v772, 1
    %v777 = vsel %vm773, %v147, 0.0
    %v778 = vsel %vm774, %v148, 0.0
    %v779 = vsel %vm775, %v149, 0.0
    %v780 = vsel %vm776, %v150, 0.0
    %v781 = vpack.c.bf16 %v777, %v777
    %v782 = vpack.c.bf16 %v778, %v778
    %v783 = vpack.c.bf16 %v779, %v779
    %v784 = vpack.c.bf16 %v780, %v780
    %s785 = scalar_lea.vmem [#allocation3], 32
    %v786 = vld [vmem:[%s785] sm:$0xf]
    %v787 = vld [vmem:[%s785 + $0x4] sm:$0xf]
    %v790 = vunpack.c.l.b16 %v786
    %v791 = vunpack.c.l.b16 %v787
    %v792 = vpack.c.b16 %v791, %v790
    %v794 = vsel %vm244, %v792, 0
    %v797 = vsel %vm248, %v781, 0
    %v800 = vsel %vm248, %v782, 0
    %v803 = vsel %vm248, %v783, 0
    %v806 = vsel %vm248, %v784, 0
    %808 = vmatprep.subr.bf16.mxu0 %v800
    %809 = vmatpush1.bf16.msra.mxu0 %v797
    %810 = vmatprep.subr.bf16.mxu0 0
    %811 = vmatpush1.bf16.msra.mxu0 0
    %812 = vmatprep.subr.bf16.mxu0 0
    %813 = vmatpush1.bf16.msra.mxu0 0
    %814 = vmatprep.subr.bf16.mxu0 0
    %815 = vmatpush1.bf16.msra.mxu0 0
    %816 = vmatprep.subr.bf16.mxu0 0
    %817 = vmatpush1.bf16.msra.mxu0 0
    %818 = vmatprep.subr.bf16.mxu0 0
    %819 = vmatpush1.bf16.msra.mxu0 0
    %820 = vmatprep.subr.bf16.mxu0 0
    %821 = vmatpush1.bf16.msra.mxu0 0
    %822 = vmatprep.subr.bf16.mxu0 0
    %823 = vmatpush1.bf16.msra.mxu0 0
    %824 = vmatprep.subr.bf16.mxu0 0
    %825 = vmatpush1.bf16.msra.mxu0 0
    %826 = vmatprep.subr.bf16.mxu0 0
    %827 = vmatpush1.bf16.msra.mxu0 0
    %828 = vmatprep.subr.bf16.mxu0 0
    %829 = vmatpush1.bf16.msra.mxu0 0
    %830 = vmatprep.subr.bf16.mxu0 0
    %831 = vmatpush1.bf16.msra.mxu0 0
    %832 = vmatprep.subr.bf16.mxu0 0
    %833 = vmatpush1.bf16.msra.mxu0 0
    %834 = vmatprep.subr.bf16.mxu0 0
    %835 = vmatpush1.bf16.msra.mxu0 0
    %836 = vmatprep.subr.bf16.mxu0 0
    %837 = vmatpush1.bf16.msra.mxu0 0
    %838 = vmatprep.subr.bf16.mxu0 0
    %839 = vmatpush1.bf16.msra.mxu0 0
    %840 = vmatprep.mubr.bf16.mxu0 0
    %841 = vmatmul.mubr.bf16.gmra.mrb[0].mxu0 %v794
    %v842 = vpop.f32.mrb[0].mxu0
    %v843 = vadd.f32 0.0, %v842
    %v844 = vpop.f32.mrb[0].mxu0
    %v845 = vadd.f32 0.0, %v844
    %v846 = vpop.f32.mrb[0].mxu0
    %v847 = vadd.f32 0.0, %v846
    %v848 = vpop.f32.mrb[0].mxu0
    %v849 = vadd.f32 0.0, %v848
    %850 = vdwg.mxu0
    %851 = vmatprep.subr.bf16.mxu0 %v806
    %852 = vmatpush1.bf16.msra.mxu0 %v803
    %853 = vmatprep.subr.bf16.mxu0 0
    %854 = vmatpush1.bf16.msra.mxu0 0
    %855 = vmatprep.subr.bf16.mxu0 0
    %856 = vmatpush1.bf16.msra.mxu0 0
    %857 = vmatprep.subr.bf16.mxu0 0
    %858 = vmatpush1.bf16.msra.mxu0 0
    %859 = vmatprep.subr.bf16.mxu0 0
    %860 = vmatpush1.bf16.msra.mxu0 0
    %861 = vmatprep.subr.bf16.mxu0 0
    %862 = vmatpush1.bf16.msra.mxu0 0
    %863 = vmatprep.subr.bf16.mxu0 0
    %864 = vmatpush1.bf16.msra.mxu0 0
    %865 = vmatprep.subr.bf16.mxu0 0
    %866 = vmatpush1.bf16.msra.mxu0 0
    %867 = vmatprep.subr.bf16.mxu0 0
    %868 = vmatpush1.bf16.msra.mxu0 0
    %869 = vmatprep.subr.bf16.mxu0 0
    %870 = vmatpush1.bf16.msra.mxu0 0
    %871 = vmatprep.subr.bf16.mxu0 0
    %872 = vmatpush1.bf16.msra.mxu0 0
    %873 = vmatprep.subr.bf16.mxu0 0
    %874 = vmatpush1.bf16.msra.mxu0 0
    %875 = vmatprep.subr.bf16.mxu0 0
    %876 = vmatpush1.bf16.msra.mxu0 0
    %877 = vmatprep.subr.bf16.mxu0 0
    %878 = vmatpush1.bf16.msra.mxu0 0
    %879 = vmatprep.subr.bf16.mxu0 0
    %880 = vmatpush1.bf16.msra.mxu0 0
    %881 = vmatprep.subr.bf16.mxu0 0
    %882 = vmatpush1.bf16.msra.mxu0 0
    %883 = vmatprep.mubr.bf16.mxu0 0
    %884 = vmatmul.mubr.bf16.gmra.mrb[0].mxu0 %v794
    %v885 = vpop.f32.mrb[0].mxu0
    %v886 = vadd.f32 0.0, %v885
    %v887 = vpop.f32.mrb[0].mxu0
    %v888 = vadd.f32 0.0, %v887
    %v889 = vpop.f32.mrb[0].mxu0
    %v890 = vadd.f32 0.0, %v889
    %v891 = vpop.f32.mrb[0].mxu0
    %v892 = vadd.f32 0.0, %v891
    %893 = vdwg.mxu0
    %v894 = vadd.f32 %v757, %v843
    %v895 = vadd.f32 %v758, %v845
    %v896 = vadd.f32 %v759, %v886
    %v897 = vadd.f32 %v760, %v888
    %v898 = vadd.f32 %v761, %v847
    %v899 = vadd.f32 %v762, %v849
    %v900 = vadd.f32 %v763, %v890
    %v901 = vadd.f32 %v764, %v892
    %v902 = vld [vmem:[#allocation2 + $0x8] sm:$0xf]
    %v903 = vld [vmem:[#allocation2 + $0x10] sm:$0xf]
    %v904 = vld [vmem:[#allocation2 + $0x18] sm:$0xf]
    %v905 = vld [vmem:[#allocation2 + $0x20] sm:$0xf]
    %v906 = vld [vmem:[#allocation2 + $0x28] sm:$0xf]
    %vm907 = vmand %vm126, %vm142
    %vm908 = vmand %vm127, %vm143
    %vm909 = vmand %vm128, %vm144
    %vm910 = vmand %vm129, %vm145
    %v911 = vsel %vm907, 1, 0
    %v912 = vsel %vm908, 1, 0
    %v913 = vsel %vm909, 1, 0
    %v914 = vsel %vm910, 1, 0
    %vm915 = vcmp.eq.s32.totalorder %v911, 1
    %vm916 = vcmp.eq.s32.totalorder %v912, 1
    %vm917 = vcmp.eq.s32.totalorder %v913, 1
    %vm918 = vcmp.eq.s32.totalorder %v914, 1
    %924 = vrot.lane.b32.xlu0 %v902, 127
    %v925 = vpop.permute.xlu0 %924
    %926 = vrot.lane.b32.xlu0 %v903, 127
    %v927 = vpop.permute.xlu0 %926
    %928 = vrot.lane.b32.xlu0 %v904, 127
    %v929 = vpop.permute.xlu0 %928
    %930 = vrot.lane.b32.xlu0 %v905, 127
    %v931 = vpop.permute.xlu0 %930
    %932 = vrot.lane.b32.xlu0 %v906, 127
    %v933 = vpop.permute.xlu0 %932
    %vm934 = vcmask 1039360
    %v935 = vsel %vm934, %v925, %v927
    %v936 = vsel %vm934, %v927, %v929
    %v937 = vsel %vm934, %v929, %v931
    %v938 = vsel %vm934, %v931, %v933
    %v943 = vsel %vm915, %v935, 0.0
    %v944 = vsel %vm916, %v936, 0.0
    %v945 = vsel %vm917, %v937, 0.0
    %v946 = vsel %vm918, %v938, 0.0
    %v947 = vpack.c.bf16 %v943, %v943
    %v948 = vpack.c.bf16 %v944, %v944
    %v949 = vpack.c.bf16 %v945, %v945
    %v950 = vpack.c.bf16 %v946, %v946
    %s951 = scalar_lea.vmem [#allocation3], 40
    %v952 = vld [vmem:[%s951] sm:$0xf]
    %v953 = vld [vmem:[%s951 + $0x4] sm:$0xf]
    %v956 = vunpack.c.l.b16 %v952
    %v957 = vunpack.c.l.b16 %v953
    %v958 = vpack.c.b16 %v957, %v956
    %v960 = vsel %vm244, %v958, 0
    %v963 = vsel %vm248, %v947, 0
    %v966 = vsel %vm248, %v948, 0
    %v969 = vsel %vm248, %v949, 0
    %v972 = vsel %vm248, %v950, 0
    %974 = vmatprep.subr.bf16.mxu0 %v966
    %975 = vmatpush1.bf16.msra.mxu0 %v963
    %976 = vmatprep.subr.bf16.mxu0 0
    %977 = vmatpush1.bf16.msra.mxu0 0
    %978 = vmatprep.subr.bf16.mxu0 0
    %979 = vmatpush1.bf16.msra.mxu0 0
    %980 = vmatprep.subr.bf16.mxu0 0
    %981 = vmatpush1.bf16.msra.mxu0 0
    %982 = vmatprep.subr.bf16.mxu0 0
    %983 = vmatpush1.bf16.msra.mxu0 0
    %984 = vmatprep.subr.bf16.mxu0 0
    %985 = vmatpush1.bf16.msra.mxu0 0
    %986 = vmatprep.subr.bf16.mxu0 0
    %987 = vmatpush1.bf16.msra.mxu0 0
    %988 = vmatprep.subr.bf16.mxu0 0
    %989 = vmatpush1.bf16.msra.mxu0 0
    %990 = vmatprep.subr.bf16.mxu0 0
    %991 = vmatpush1.bf16.msra.mxu0 0
    %992 = vmatprep.subr.bf16.mxu0 0
    %993 = vmatpush1.bf16.msra.mxu0 0
    %994 = vmatprep.subr.bf16.mxu0 0
    %995 = vmatpush1.bf16.msra.mxu0 0
    %996 = vmatprep.subr.bf16.mxu0 0
    %997 = vmatpush1.bf16.msra.mxu0 0
    %998 = vmatprep.subr.bf16.mxu0 0
    %999 = vmatpush1.bf16.msra.mxu0 0
    %1000 = vmatprep.subr.bf16.mxu0 0
    %1001 = vmatpush1.bf16.msra.mxu0 0
    %1002 = vmatprep.subr.bf16.mxu0 0
    %1003 = vmatpush1.bf16.msra.mxu0 0
    %1004 = vmatprep.subr.bf16.mxu0 0
    %1005 = vmatpush1.bf16.msra.mxu0 0
    %1006 = vmatprep.mubr.bf16.mxu0 0
    %1007 = vmatmul.mubr.bf16.gmra.mrb[0].mxu0 %v960
    %v1008 = vpop.f32.mrb[0].mxu0
    %v1009 = vadd.f32 0.0, %v1008
    %v1010 = vpop.f32.mrb[0].mxu0
    %v1011 = vadd.f32 0.0, %v1010
    %v1012 = vpop.f32.mrb[0].mxu0
    %v1013 = vadd.f32 0.0, %v1012
    %v1014 = vpop.f32.mrb[0].mxu0
    %v1015 = vadd.f32 0.0, %v1014
    %1016 = vdwg.mxu0
    %1017 = vmatprep.subr.bf16.mxu0 %v972
    %1018 = vmatpush1.bf16.msra.mxu0 %v969
    %1019 = vmatprep.subr.bf16.mxu0 0
    %1020 = vmatpush1.bf16.msra.mxu0 0
    %1021 = vmatprep.subr.bf16.mxu0 0
    %1022 = vmatpush1.bf16.msra.mxu0 0
    %1023 = vmatprep.subr.bf16.mxu0 0
    %1024 = vmatpush1.bf16.msra.mxu0 0
    %1025 = vmatprep.subr.bf16.mxu0 0
    %1026 = vmatpush1.bf16.msra.mxu0 0
    %1027 = vmatprep.subr.bf16.mxu0 0
    %1028 = vmatpush1.bf16.msra.mxu0 0
    %1029 = vmatprep.subr.bf16.mxu0 0
    %1030 = vmatpush1.bf16.msra.mxu0 0
    %1031 = vmatprep.subr.bf16.mxu0 0
    %1032 = vmatpush1.bf16.msra.mxu0 0
    %1033 = vmatprep.subr.bf16.mxu0 0
    %1034 = vmatpush1.bf16.msra.mxu0 0
    %1035 = vmatprep.subr.bf16.mxu0 0
    %1036 = vmatpush1.bf16.msra.mxu0 0
    %1037 = vmatprep.subr.bf16.mxu0 0
    %1038 = vmatpush1.bf16.msra.mxu0 0
    %1039 = vmatprep.subr.bf16.mxu0 0
    %1040 = vmatpush1.bf16.msra.mxu0 0
    %1041 = vmatprep.subr.bf16.mxu0 0
    %1042 = vmatpush1.bf16.msra.mxu0 0
    %1043 = vmatprep.subr.bf16.mxu0 0
    %1044 = vmatpush1.bf16.msra.mxu0 0
    %1045 = vmatprep.subr.bf16.mxu0 0
    %1046 = vmatpush1.bf16.msra.mxu0 0
    %1047 = vmatprep.subr.bf16.mxu0 0
    %1048 = vmatpush1.bf16.msra.mxu0 0
    %1049 = vmatprep.mubr.bf16.mxu0 0
    %1050 = vmatmul.mubr.bf16.gmra.mrb[0].mxu0 %v960
    %v1051 = vpop.f32.mrb[0].mxu0
    %v1052 = vadd.f32 0.0, %v1051
    %v1053 = vpop.f32.mrb[0].mxu0
    %v1054 = vadd.f32 0.0, %v1053
    %v1055 = vpop.f32.mrb[0].mxu0
    %v1056 = vadd.f32 0.0, %v1055
    %v1057 = vpop.f32.mrb[0].mxu0
    %v1058 = vadd.f32 0.0, %v1057
    %1059 = vdwg.mxu0
    %v1060 = vadd.f32 %v894, %v1009
    %v1061 = vadd.f32 %v895, %v1011
    %v1062 = vadd.f32 %v896, %v1052
    %v1063 = vadd.f32 %v897, %v1054
    %v1064 = vadd.f32 %v898, %v1013
    %v1065 = vadd.f32 %v899, %v1015
    %v1066 = vadd.f32 %v900, %v1056
    %v1067 = vadd.f32 %v901, %v1058
    %vm1068 = vmand %vm130, %vm134
    %vm1069 = vmand %vm131, %vm135
    %vm1070 = vmand %vm132, %vm136
    %vm1071 = vmand %vm133, %vm137
    %v1072 = vsel %vm1068, 1, 0
    %v1073 = vsel %vm1069, 1, 0
    %v1074 = vsel %vm1070, 1, 0
    %v1075 = vsel %vm1071, 1, 0
    %vm1076 = vcmp.eq.s32.totalorder %v1072, 1
    %vm1077 = vcmp.eq.s32.totalorder %v1073, 1
    %vm1078 = vcmp.eq.s32.totalorder %v1074, 1
    %vm1079 = vcmp.eq.s32.totalorder %v1075, 1
    %1080 = vrot.lane.b32.xlu0 %v902, 113
    %v1081 = vpop.permute.xlu0 %1080
    %1082 = vrot.lane.b32.xlu0 %v903, 113
    %v1083 = vpop.permute.xlu0 %1082
    %1084 = vrot.lane.b32.xlu0 %v904, 113
    %v1085 = vpop.permute.xlu0 %1084
    %1086 = vrot.lane.b32.xlu0 %v905, 113
    %v1087 = vpop.permute.xlu0 %1086
    %1088 = vrot.lane.b32.xlu0 %v906, 113
    %v1089 = vpop.permute.xlu0 %1088
    %vm1090 = vcmask 924672
    %v1091 = vsel %vm1090, %v1081, %v1083
    %v1092 = vsel %vm1090, %v1083, %v1085
    %v1093 = vsel %vm1090, %v1085, %v1087
    %v1094 = vsel %vm1090, %v1087, %v1089
    %v1099 = vsel %vm1076, %v1091, 0.0
    %v1100 = vsel %vm1077, %v1092, 0.0
    %v1101 = vsel %vm1078, %v1093, 0.0
    %v1102 = vsel %vm1079, %v1094, 0.0
    %v1103 = vpack.c.bf16 %v1099, %v1099
    %v1104 = vpack.c.bf16 %v1100, %v1100
    %v1105 = vpack.c.bf16 %v1101, %v1101
    %v1106 = vpack.c.bf16 %v1102, %v1102
    %s1107 = scalar_lea.vmem [#allocation3], 48
    %v1108 = vld [vmem:[%s1107] sm:$0xf]
    %v1109 = vld [vmem:[%s1107 + $0x4] sm:$0xf]
    %v1112 = vunpack.c.l.b16 %v1108
    %v1113 = vunpack.c.l.b16 %v1109
    %v1114 = vpack.c.b16 %v1113, %v1112
    %v1116 = vsel %vm244, %v1114, 0
    %v1119 = vsel %vm248, %v1103, 0
    %v1122 = vsel %vm248, %v1104, 0
    %v1125 = vsel %vm248, %v1105, 0
    %v1128 = vsel %vm248, %v1106, 0
    %1130 = vmatprep.subr.bf16.mxu0 %v1122
    %1131 = vmatpush1.bf16.msra.mxu0 %v1119
    %1132 = vmatprep.subr.bf16.mxu0 0
    %1133 = vmatpush1.bf16.msra.mxu0 0
    %1134 = vmatprep.subr.bf16.mxu0 0
    %1135 = vmatpush1.bf16.msra.mxu0 0
    %1136 = vmatprep.subr.bf16.mxu0 0
    %1137 = vmatpush1.bf16.msra.mxu0 0
    %1138 = vmatprep.subr.bf16.mxu0 0
    %1139 = vmatpush1.bf16.msra.mxu0 0
    %1140 = vmatprep.subr.bf16.mxu0 0
    %1141 = vmatpush1.bf16.msra.mxu0 0
    %1142 = vmatprep.subr.bf16.mxu0 0
    %1143 = vmatpush1.bf16.msra.mxu0 0
    %1144 = vmatprep.subr.bf16.mxu0 0
    %1145 = vmatpush1.bf16.msra.mxu0 0
    %1146 = vmatprep.subr.bf16.mxu0 0
    %1147 = vmatpush1.bf16.msra.mxu0 0
    %1148 = vmatprep.subr.bf16.mxu0 0
    %1149 = vmatpush1.bf16.msra.mxu0 0
    %1150 = vmatprep.subr.bf16.mxu0 0
    %1151 = vmatpush1.bf16.msra.mxu0 0
    %1152 = vmatprep.subr.bf16.mxu0 0
    %1153 = vmatpush1.bf16.msra.mxu0 0
    %1154 = vmatprep.subr.bf16.mxu0 0
    %1155 = vmatpush1.bf16.msra.mxu0 0
    %1156 = vmatprep.subr.bf16.mxu0 0
    %1157 = vmatpush1.bf16.msra.mxu0 0
    %1158 = vmatprep.subr.bf16.mxu0 0
    %1159 = vmatpush1.bf16.msra.mxu0 0
    %1160 = vmatprep.subr.bf16.mxu0 0
    %1161 = vmatpush1.bf16.msra.mxu0 0
    %1162 = vmatprep.mubr.bf16.mxu0 0
    %1163 = vmatmul.mubr.bf16.gmra.mrb[0].mxu0 %v1116
    %v1164 = vpop.f32.mrb[0].mxu0
    %v1165 = vadd.f32 0.0, %v1164
    %v1166 = vpop.f32.mrb[0].mxu0
    %v1167 = vadd.f32 0.0, %v1166
    %v1168 = vpop.f32.mrb[0].mxu0
    %v1169 = vadd.f32 0.0, %v1168
    %v1170 = vpop.f32.mrb[0].mxu0
    %v1171 = vadd.f32 0.0, %v1170
    %1172 = vdwg.mxu0
    %1173 = vmatprep.subr.bf16.mxu0 %v1128
    %1174 = vmatpush1.bf16.msra.mxu0 %v1125
    %1175 = vmatprep.subr.bf16.mxu0 0
    %1176 = vmatpush1.bf16.msra.mxu0 0
    %1177 = vmatprep.subr.bf16.mxu0 0
    %1178 = vmatpush1.bf16.msra.mxu0 0
    %1179 = vmatprep.subr.bf16.mxu0 0
    %1180 = vmatpush1.bf16.msra.mxu0 0
    %1181 = vmatprep.subr.bf16.mxu0 0
    %1182 = vmatpush1.bf16.msra.mxu0 0
    %1183 = vmatprep.subr.bf16.mxu0 0
    %1184 = vmatpush1.bf16.msra.mxu0 0
    %1185 = vmatprep.subr.bf16.mxu0 0
    %1186 = vmatpush1.bf16.msra.mxu0 0
    %1187 = vmatprep.subr.bf16.mxu0 0
    %1188 = vmatpush1.bf16.msra.mxu0 0
    %1189 = vmatprep.subr.bf16.mxu0 0
    %1190 = vmatpush1.bf16.msra.mxu0 0
    %1191 = vmatprep.subr.bf16.mxu0 0
    %1192 = vmatpush1.bf16.msra.mxu0 0
    %1193 = vmatprep.subr.bf16.mxu0 0
    %1194 = vmatpush1.bf16.msra.mxu0 0
    %1195 = vmatprep.subr.bf16.mxu0 0
    %1196 = vmatpush1.bf16.msra.mxu0 0
    %1197 = vmatprep.subr.bf16.mxu0 0
    %1198 = vmatpush1.bf16.msra.mxu0 0
    %1199 = vmatprep.subr.bf16.mxu0 0
    %1200 = vmatpush1.bf16.msra.mxu0 0
    %1201 = vmatprep.subr.bf16.mxu0 0
    %1202 = vmatpush1.bf16.msra.mxu0 0
    %1203 = vmatprep.subr.bf16.mxu0 0
    %1204 = vmatpush1.bf16.msra.mxu0 0
    %1205 = vmatprep.mubr.bf16.mxu0 0
    %1206 = vmatmul.mubr.bf16.gmra.mrb[0].mxu0 %v1116
    %v1207 = vpop.f32.mrb[0].mxu0
    %v1208 = vadd.f32 0.0, %v1207
    %v1209 = vpop.f32.mrb[0].mxu0
    %v1210 = vadd.f32 0.0, %v1209
    %v1211 = vpop.f32.mrb[0].mxu0
    %v1212 = vadd.f32 0.0, %v1211
    %v1213 = vpop.f32.mrb[0].mxu0
    %v1214 = vadd.f32 0.0, %v1213
    %1215 = vdwg.mxu0
    %v1216 = vadd.f32 %v1060, %v1165
    %v1217 = vadd.f32 %v1061, %v1167
    %v1218 = vadd.f32 %v1062, %v1208
    %v1219 = vadd.f32 %v1063, %v1210
    %v1220 = vadd.f32 %v1064, %v1169
    %v1221 = vadd.f32 %v1065, %v1171
    %v1222 = vadd.f32 %v1066, %v1212
    %v1223 = vadd.f32 %v1067, %v1214
    %vm1224 = vmand %vm130, %vm138
    %vm1225 = vmand %vm131, %vm139
    %vm1226 = vmand %vm132, %vm140
    %vm1227 = vmand %vm133, %vm141
    %v1228 = vsel %vm1224, 1, 0
    %v1229 = vsel %vm1225, 1, 0
    %v1230 = vsel %vm1226, 1, 0
    %v1231 = vsel %vm1227, 1, 0
    %vm1232 = vcmp.eq.s32.totalorder %v1228, 1
    %vm1233 = vcmp.eq.s32.totalorder %v1229, 1
    %vm1234 = vcmp.eq.s32.totalorder %v1230, 1
    %vm1235 = vcmp.eq.s32.totalorder %v1231, 1
    %1236 = vrot.lane.b32.xlu0 %v902, 112
    %v1237 = vpop.permute.xlu0 %1236
    %1238 = vrot.lane.b32.xlu0 %v903, 112
    %v1239 = vpop.permute.xlu0 %1238
    %1240 = vrot.lane.b32.xlu0 %v904, 112
    %v1241 = vpop.permute.xlu0 %1240
    %1242 = vrot.lane.b32.xlu0 %v905, 112
    %v1243 = vpop.permute.xlu0 %1242
    %1244 = vrot.lane.b32.xlu0 %v906, 112
    %v1245 = vpop.permute.xlu0 %1244
    %vm1246 = vcmask 916480
    %v1247 = vsel %vm1246, %v1237, %v1239
    %v1248 = vsel %vm1246, %v1239, %v1241
    %v1249 = vsel %vm1246, %v1241, %v1243
    %v1250 = vsel %vm1246, %v1243, %v1245
    %v1255 = vsel %vm1232, %v1247, 0.0
    %v1256 = vsel %vm1233, %v1248, 0.0
    %v1257 = vsel %vm1234, %v1249, 0.0
    %v1258 = vsel %vm1235, %v1250, 0.0
    %v1259 = vpack.c.bf16 %v1255, %v1255
    %v1260 = vpack.c.bf16 %v1256, %v1256
    %v1261 = vpack.c.bf16 %v1257, %v1257
    %v1262 = vpack.c.bf16 %v1258, %v1258
    %s1263 = scalar_lea.vmem [#allocation3], 56
    %v1264 = vld [vmem:[%s1263] sm:$0xf]
    %v1265 = vld [vmem:[%s1263 + $0x4] sm:$0xf]
    %v1268 = vunpack.c.l.b16 %v1264
    %v1269 = vunpack.c.l.b16 %v1265
    %v1270 = vpack.c.b16 %v1269, %v1268
    %v1272 = vsel %vm244, %v1270, 0
    %v1275 = vsel %vm248, %v1259, 0
    %v1278 = vsel %vm248, %v1260, 0
    %v1281 = vsel %vm248, %v1261, 0
    %v1284 = vsel %vm248, %v1262, 0
    %1286 = vmatprep.subr.bf16.mxu0 %v1278
    %1287 = vmatpush1.bf16.msra.mxu0 %v1275
    %1288 = vmatprep.subr.bf16.mxu0 0
    %1289 = vmatpush1.bf16.msra.mxu0 0
    %1290 = vmatprep.subr.bf16.mxu0 0
    %1291 = vmatpush1.bf16.msra.mxu0 0
    %1292 = vmatprep.subr.bf16.mxu0 0
    %1293 = vmatpush1.bf16.msra.mxu0 0
    %1294 = vmatprep.subr.bf16.mxu0 0
    %1295 = vmatpush1.bf16.msra.mxu0 0
    %1296 = vmatprep.subr.bf16.mxu0 0
    %1297 = vmatpush1.bf16.msra.mxu0 0
    %1298 = vmatprep.subr.bf16.mxu0 0
    %1299 = vmatpush1.bf16.msra.mxu0 0
    %1300 = vmatprep.subr.bf16.mxu0 0
    %1301 = vmatpush1.bf16.msra.mxu0 0
    %1302 = vmatprep.subr.bf16.mxu0 0
    %1303 = vmatpush1.bf16.msra.mxu0 0
    %1304 = vmatprep.subr.bf16.mxu0 0
    %1305 = vmatpush1.bf16.msra.mxu0 0
    %1306 = vmatprep.subr.bf16.mxu0 0
    %1307 = vmatpush1.bf16.msra.mxu0 0
    %1308 = vmatprep.subr.bf16.mxu0 0
    %1309 = vmatpush1.bf16.msra.mxu0 0
    %1310 = vmatprep.subr.bf16.mxu0 0
    %1311 = vmatpush1.bf16.msra.mxu0 0
    %1312 = vmatprep.subr.bf16.mxu0 0
    %1313 = vmatpush1.bf16.msra.mxu0 0
    %1314 = vmatprep.subr.bf16.mxu0 0
    %1315 = vmatpush1.bf16.msra.mxu0 0
    %1316 = vmatprep.subr.bf16.mxu0 0
    %1317 = vmatpush1.bf16.msra.mxu0 0
    %1318 = vmatprep.mubr.bf16.mxu0 0
    %1319 = vmatmul.mubr.bf16.gmra.mrb[0].mxu0 %v1272
    %v1320 = vpop.f32.mrb[0].mxu0
    %v1321 = vadd.f32 0.0, %v1320
    %v1322 = vpop.f32.mrb[0].mxu0
    %v1323 = vadd.f32 0.0, %v1322
    %v1324 = vpop.f32.mrb[0].mxu0
    %v1325 = vadd.f32 0.0, %v1324
    %v1326 = vpop.f32.mrb[0].mxu0
    %v1327 = vadd.f32 0.0, %v1326
    %1328 = vdwg.mxu0
    %1329 = vmatprep.subr.bf16.mxu0 %v1284
    %1330 = vmatpush1.bf16.msra.mxu0 %v1281
    %1331 = vmatprep.subr.bf16.mxu0 0
    %1332 = vmatpush1.bf16.msra.mxu0 0
    %1333 = vmatprep.subr.bf16.mxu0 0
    %1334 = vmatpush1.bf16.msra.mxu0 0
    %1335 = vmatprep.subr.bf16.mxu0 0
    %1336 = vmatpush1.bf16.msra.mxu0 0
    %1337 = vmatprep.subr.bf16.mxu0 0
    %1338 = vmatpush1.bf16.msra.mxu0 0
    %1339 = vmatprep.subr.bf16.mxu0 0
    %1340 = vmatpush1.bf16.msra.mxu0 0
    %1341 = vmatprep.subr.bf16.mxu0 0
    %1342 = vmatpush1.bf16.msra.mxu0 0
    %1343 = vmatprep.subr.bf16.mxu0 0
    %1344 = vmatpush1.bf16.msra.mxu0 0
    %1345 = vmatprep.subr.bf16.mxu0 0
    %1346 = vmatpush1.bf16.msra.mxu0 0
    %1347 = vmatprep.subr.bf16.mxu0 0
    %1348 = vmatpush1.bf16.msra.mxu0 0
    %1349 = vmatprep.subr.bf16.mxu0 0
    %1350 = vmatpush1.bf16.msra.mxu0 0
    %1351 = vmatprep.subr.bf16.mxu0 0
    %1352 = vmatpush1.bf16.msra.mxu0 0
    %1353 = vmatprep.subr.bf16.mxu0 0
    %1354 = vmatpush1.bf16.msra.mxu0 0
    %1355 = vmatprep.subr.bf16.mxu0 0
    %1356 = vmatpush1.bf16.msra.mxu0 0
    %1357 = vmatprep.subr.bf16.mxu0 0
    %1358 = vmatpush1.bf16.msra.mxu0 0
    %1359 = vmatprep.subr.bf16.mxu0 0
    %1360 = vmatpush1.bf16.msra.mxu0 0
    %1361 = vmatprep.mubr.bf16.mxu0 0
    %1362 = vmatmul.mubr.bf16.gmra.mrb[0].mxu0 %v1272
    %v1363 = vpop.f32.mrb[0].mxu0
    %v1364 = vadd.f32 0.0, %v1363
    %v1365 = vpop.f32.mrb[0].mxu0
    %v1366 = vadd.f32 0.0, %v1365
    %v1367 = vpop.f32.mrb[0].mxu0
    %v1368 = vadd.f32 0.0, %v1367
    %v1369 = vpop.f32.mrb[0].mxu0
    %v1370 = vadd.f32 0.0, %v1369
    %1371 = vdwg.mxu0
    %v1372 = vadd.f32 %v1216, %v1321
    %v1373 = vadd.f32 %v1217, %v1323
    %v1374 = vadd.f32 %v1218, %v1364
    %v1375 = vadd.f32 %v1219, %v1366
    %v1376 = vadd.f32 %v1220, %v1325
    %v1377 = vadd.f32 %v1221, %v1327
    %v1378 = vadd.f32 %v1222, %v1368
    %v1379 = vadd.f32 %v1223, %v1370
    %vm1380 = vmand %vm130, %vm142
    %vm1381 = vmand %vm131, %vm143
    %vm1382 = vmand %vm132, %vm144
    %vm1383 = vmand %vm133, %vm145
    %v1384 = vsel %vm1380, 1, 0
    %v1385 = vsel %vm1381, 1, 0
    %v1386 = vsel %vm1382, 1, 0
    %v1387 = vsel %vm1383, 1, 0
    %vm1388 = vcmp.eq.s32.totalorder %v1384, 1
    %vm1389 = vcmp.eq.s32.totalorder %v1385, 1
    %vm1390 = vcmp.eq.s32.totalorder %v1386, 1
    %vm1391 = vcmp.eq.s32.totalorder %v1387, 1
    %1392 = vrot.lane.b32.xlu0 %v902, 111
    %v1393 = vpop.permute.xlu0 %1392
    %1394 = vrot.lane.b32.xlu0 %v903, 111
    %v1395 = vpop.permute.xlu0 %1394
    %1396 = vrot.lane.b32.xlu0 %v904, 111
    %v1397 = vpop.permute.xlu0 %1396
    %1398 = vrot.lane.b32.xlu0 %v905, 111
    %v1399 = vpop.permute.xlu0 %1398
    %1400 = vrot.lane.b32.xlu0 %v906, 111
    %v1401 = vpop.permute.xlu0 %1400
    %vm1402 = vcmask 908288
    %v1403 = vsel %vm1402, %v1393, %v1395
    %v1404 = vsel %vm1402, %v1395, %v1397
    %v1405 = vsel %vm1402, %v1397, %v1399
    %v1406 = vsel %vm1402, %v1399, %v1401
    %v1411 = vsel %vm1388, %v1403, 0.0
    %v1412 = vsel %vm1389, %v1404, 0.0
    %v1413 = vsel %vm1390, %v1405, 0.0
    %v1414 = vsel %vm1391, %v1406, 0.0
    %v1415 = vpack.c.bf16 %v1411, %v1411
    %v1416 = vpack.c.bf16 %v1412, %v1412
    %v1417 = vpack.c.bf16 %v1413, %v1413
    %v1418 = vpack.c.bf16 %v1414, %v1414
    %s1419 = scalar_lea.vmem [#allocation3], 64
    %v1420 = vld [vmem:[%s1419] sm:$0xf]
    %v1421 = vld [vmem:[%s1419 + $0x4] sm:$0xf]
    %v1424 = vunpack.c.l.b16 %v1420
    %v1425 = vunpack.c.l.b16 %v1421
    %v1426 = vpack.c.b16 %v1425, %v1424
    %v1428 = vsel %vm244, %v1426, 0
    %v1431 = vsel %vm248, %v1415, 0
    %v1434 = vsel %vm248, %v1416, 0
    %v1437 = vsel %vm248, %v1417, 0
    %v1440 = vsel %vm248, %v1418, 0
    %1442 = vmatprep.subr.bf16.mxu0 %v1434
    %1443 = vmatpush1.bf16.msra.mxu0 %v1431
    %1444 = vmatprep.subr.bf16.mxu0 0
    %1445 = vmatpush1.bf16.msra.mxu0 0
    %1446 = vmatprep.subr.bf16.mxu0 0
    %1447 = vmatpush1.bf16.msra.mxu0 0
    %1448 = vmatprep.subr.bf16.mxu0 0
    %1449 = vmatpush1.bf16.msra.mxu0 0
    %1450 = vmatprep.subr.bf16.mxu0 0
    %1451 = vmatpush1.bf16.msra.mxu0 0
    %1452 = vmatprep.subr.bf16.mxu0 0
    %1453 = vmatpush1.bf16.msra.mxu0 0
    %1454 = vmatprep.subr.bf16.mxu0 0
    %1455 = vmatpush1.bf16.msra.mxu0 0
    %1456 = vmatprep.subr.bf16.mxu0 0
    %1457 = vmatpush1.bf16.msra.mxu0 0
    %1458 = vmatprep.subr.bf16.mxu0 0
    %1459 = vmatpush1.bf16.msra.mxu0 0
    %1460 = vmatprep.subr.bf16.mxu0 0
    %1461 = vmatpush1.bf16.msra.mxu0 0
    %1462 = vmatprep.subr.bf16.mxu0 0
    %1463 = vmatpush1.bf16.msra.mxu0 0
    %1464 = vmatprep.subr.bf16.mxu0 0
    %1465 = vmatpush1.bf16.msra.mxu0 0
    %1466 = vmatprep.subr.bf16.mxu0 0
    %1467 = vmatpush1.bf16.msra.mxu0 0
    %1468 = vmatprep.subr.bf16.mxu0 0
    %1469 = vmatpush1.bf16.msra.mxu0 0
    %1470 = vmatprep.subr.bf16.mxu0 0
    %1471 = vmatpush1.bf16.msra.mxu0 0
    %1472 = vmatprep.subr.bf16.mxu0 0
    %1473 = vmatpush1.bf16.msra.mxu0 0
    %1474 = vmatprep.mubr.bf16.mxu0 0
    %1475 = vmatmul.mubr.bf16.gmra.mrb[0].mxu0 %v1428
    %v1476 = vpop.f32.mrb[0].mxu0
    %v1477 = vadd.f32 0.0, %v1476
    %v1478 = vpop.f32.mrb[0].mxu0
    %v1479 = vadd.f32 0.0, %v1478
    %v1480 = vpop.f32.mrb[0].mxu0
    %v1481 = vadd.f32 0.0, %v1480
    %v1482 = vpop.f32.mrb[0].mxu0
    %v1483 = vadd.f32 0.0, %v1482
    %1484 = vdwg.mxu0
    %1485 = vmatprep.subr.bf16.mxu0 %v1440
    %1486 = vmatpush1.bf16.msra.mxu0 %v1437
    %1487 = vmatprep.subr.bf16.mxu0 0
    %1488 = vmatpush1.bf16.msra.mxu0 0
    %1489 = vmatprep.subr.bf16.mxu0 0
    %1490 = vmatpush1.bf16.msra.mxu0 0
    %1491 = vmatprep.subr.bf16.mxu0 0
    %1492 = vmatpush1.bf16.msra.mxu0 0
    %1493 = vmatprep.subr.bf16.mxu0 0
    %1494 = vmatpush1.bf16.msra.mxu0 0
    %1495 = vmatprep.subr.bf16.mxu0 0
    %1496 = vmatpush1.bf16.msra.mxu0 0
    %1497 = vmatprep.subr.bf16.mxu0 0
    %1498 = vmatpush1.bf16.msra.mxu0 0
    %1499 = vmatprep.subr.bf16.mxu0 0
    %1500 = vmatpush1.bf16.msra.mxu0 0
    %1501 = vmatprep.subr.bf16.mxu0 0
    %1502 = vmatpush1.bf16.msra.mxu0 0
    %1503 = vmatprep.subr.bf16.mxu0 0
    %1504 = vmatpush1.bf16.msra.mxu0 0
    %1505 = vmatprep.subr.bf16.mxu0 0
    %1506 = vmatpush1.bf16.msra.mxu0 0
    %1507 = vmatprep.subr.bf16.mxu0 0
    %1508 = vmatpush1.bf16.msra.mxu0 0
    %1509 = vmatprep.subr.bf16.mxu0 0
    %1510 = vmatpush1.bf16.msra.mxu0 0
    %1511 = vmatprep.subr.bf16.mxu0 0
    %1512 = vmatpush1.bf16.msra.mxu0 0
    %1513 = vmatprep.subr.bf16.mxu0 0
    %1514 = vmatpush1.bf16.msra.mxu0 0
    %1515 = vmatprep.subr.bf16.mxu0 0
    %1516 = vmatpush1.bf16.msra.mxu0 0
    %1517 = vmatprep.mubr.bf16.mxu0 0
    %1518 = vmatmul.mubr.bf16.gmra.mrb[0].mxu0 %v1428
    %v1519 = vpop.f32.mrb[0].mxu0
    %v1520 = vadd.f32 0.0, %v1519
    %v1521 = vpop.f32.mrb[0].mxu0
    %v1522 = vadd.f32 0.0, %v1521
    %v1523 = vpop.f32.mrb[0].mxu0
    %v1524 = vadd.f32 0.0, %v1523
    %v1525 = vpop.f32.mrb[0].mxu0
    %v1526 = vadd.f32 0.0, %v1525
    %1527 = vdwg.mxu0
    %v1528 = vadd.f32 %v1372, %v1477
    %v1529 = vadd.f32 %v1373, %v1479
    %v1530 = vadd.f32 %v1374, %v1520
    %v1531 = vadd.f32 %v1375, %v1522
    %v1532 = vadd.f32 %v1376, %v1481
    %v1533 = vadd.f32 %v1377, %v1483
    %v1534 = vadd.f32 %v1378, %v1524
    %v1535 = vadd.f32 %v1379, %v1526
    %v1536 = vld [vmem:[#allocation5] sm:$0xff]
    %v1537 = vld [vmem:[#allocation5 + $0x8] sm:$0xff]
    %1539 = vset.pattern.permute.xlu0 0
    %1540 = vperm.xlu0 %1539, %v1536
    %v1541 = vpop.permute.xlu0 %1540
    %1544 = vset.pattern.permute.xlu0 0
    %1545 = vperm.xlu0 %1544, %v1537
    %v1546 = vpop.permute.xlu0 %1545
    %v1548 = vadd.f32 %v1528, %v1541
    %v1549 = vadd.f32 %v1529, %v1541
    %v1550 = vadd.f32 %v1530, %v1541
    %v1551 = vadd.f32 %v1531, %v1541
    %v1552 = vadd.f32 %v1532, %v1546
    %v1553 = vadd.f32 %v1533, %v1546
    %v1554 = vadd.f32 %v1534, %v1546
    %v1555 = vadd.f32 %v1535, %v1546
    %v1556 = vmax.f32 %v1548, 0.0
    %v1557 = vmax.f32 %v1549, 0.0
    %v1558 = vmax.f32 %v1550, 0.0
    %v1559 = vmax.f32 %v1551, 0.0
    %v1560 = vmax.f32 %v1552, 0.0
    %v1561 = vmax.f32 %v1553, 0.0
    %v1562 = vmax.f32 %v1554, 0.0
    %v1563 = vmax.f32 %v1555, 0.0
    %1564 = vst [vmem:[%s8] sm:$0xff] %v1556
    %1565 = vst [vmem:[%s8 + $0x8] sm:$0xff] %v1557
    %1566 = vst [vmem:[%s8 + $0x10] sm:$0xff] %v1560
    %1567 = vst [vmem:[%s8 + $0x18] sm:$0xff] %v1561
    %s1568 = scalar_lea.vmem %s8, 32
    %1569 = vst [vmem:[%s1568] sm:$0xff] %v1558
    %1570 = vst [vmem:[%s1568 + $0x8] sm:$0xff] %v1559
    %1571 = vst [vmem:[%s1568 + $0x10] sm:$0xff] %v1562
    %1572 = vst [vmem:[%s1568 + $0x18] sm:$0xff] %v1563
    %1573 = vst [vmem:[#allocation2 + $0x28] sm:$0xff] 0.0
    %1574 = vst [vmem:[#allocation2 + $0x58] sm:$0xff] 0.0
    %1575 = vst [vmem:[#allocation2 + $0x8] sm:$0xff] %v1556
    %1576 = vst [vmem:[#allocation2 + $0x10] sm:$0xff] %v1557
    %1577 = vst [vmem:[#allocation2 + $0x18] sm:$0xff] %v1558
    %1578 = vst [vmem:[#allocation2 + $0x20] sm:$0xff] %v1559
    %1579 = vst [vmem:[#allocation2 + $0x38] sm:$0xff] %v1560
    %1580 = vst [vmem:[#allocation2 + $0x40] sm:$0xff] %v1561
    %1581 = vst [vmem:[#allocation2 + $0x48] sm:$0xff] %v1562
    %1582 = vst [vmem:[#allocation2 + $0x50] sm:$0xff] %v1563
    %v1583 = vld [vmem:[#allocation2 + $0x8] sm:$0xff]
    %v1584 = vld [vmem:[#allocation2 + $0x10] sm:$0xff]
    %v1585 = vld [vmem:[#allocation2 + $0x18] sm:$0xff]
    %v1586 = vld [vmem:[#allocation2 + $0x20] sm:$0xff]
    %v1587 = vld [vmem:[#allocation2 + $0x28] sm:$0xff]
    %v1588 = vld [vmem:[#allocation2 + $0x38] sm:$0xff]
    %v1589 = vld [vmem:[#allocation2 + $0x40] sm:$0xff]
    %v1590 = vld [vmem:[#allocation2 + $0x48] sm:$0xff]
    %v1591 = vld [vmem:[#allocation2 + $0x50] sm:$0xff]
    %v1592 = vld [vmem:[#allocation2 + $0x58] sm:$0xff]
    %1601 = vrot.lane.b32.xlu0 %v1556, 1
    %v1602 = vpop.permute.xlu0 %1601
    %1603 = vrot.lane.b32.xlu0 %v1557, 1
    %v1604 = vpop.permute.xlu0 %1603
    %1605 = vrot.lane.b32.xlu0 %v1558, 1
    %v1606 = vpop.permute.xlu0 %1605
    %1607 = vrot.lane.b32.xlu0 %v1559, 1
    %v1608 = vpop.permute.xlu0 %1607
    %1609 = vrot.lane.b32.xlu0 %v1560, 1
    %v1610 = vpop.permute.xlu0 %1609
    %1611 = vrot.lane.b32.xlu0 %v1561, 1
    %v1612 = vpop.permute.xlu0 %1611
    %1613 = vrot.lane.b32.xlu0 %v1562, 1
    %v1614 = vpop.permute.xlu0 %1613
    %1615 = vrot.lane.b32.xlu0 %v1563, 1
    %v1616 = vpop.permute.xlu0 %1615
    %v1617 = vsel %vm631, %v1602, %v1604
    %v1618 = vsel %vm631, %v1604, %v1606
    %v1619 = vsel %vm631, %v1606, %v1608
    %v1620 = vsel %vm631, %v1610, %v1612
    %v1621 = vsel %vm631, %v1612, %v1614
    %v1622 = vsel %vm631, %v1614, %v1616
    %vm1633 = vcmp.gt.f32.partialorder %v1583, %v1602
    %vm1634 = vcmp.gt.f32.partialorder %v1584, %v1617
    %vm1635 = vcmp.gt.f32.partialorder %v1585, %v1618
    %vm1636 = vcmp.gt.f32.partialorder %v1586, %v1619
    %vm1637 = vcmp.gt.f32.partialorder %v1587, %v1608
    %vm1638 = vcmp.gt.f32.partialorder %v1588, %v1610
    %vm1639 = vcmp.gt.f32.partialorder %v1589, %v1620
    %vm1640 = vcmp.gt.f32.partialorder %v1590, %v1621
    %vm1641 = vcmp.gt.f32.partialorder %v1591, %v1622
    %vm1642 = vcmp.gt.f32.partialorder %v1592, %v1616
    %v1643 = vsel %vm1633, %v1583, %v1602
    %v1644 = vsel %vm1634, %v1584, %v1617
    %v1645 = vsel %vm1635, %v1585, %v1618
    %v1646 = vsel %vm1636, %v1586, %v1619
    %v1647 = vsel %vm1637, %v1587, %v1608
    %v1648 = vsel %vm1638, %v1588, %v1610
    %v1649 = vsel %vm1639, %v1589, %v1620
    %v1650 = vsel %vm1640, %v1590, %v1621
    %v1651 = vsel %vm1641, %v1591, %v1622
    %v1652 = vsel %vm1642, %v1592, %v1616
    %v1653 = vsel %vm1633, 1.0, 0.0
    %v1654 = vsel %vm1634, 1.0, 0.0
    %v1655 = vsel %vm1635, 1.0, 0.0
    %v1656 = vsel %vm1636, 1.0, 0.0
    %v1657 = vsel %vm1637, 1.0, 0.0
    %v1658 = vsel %vm1638, 1.0, 0.0
    %v1659 = vsel %vm1639, 1.0, 0.0
    %v1660 = vsel %vm1640, 1.0, 0.0
    %v1661 = vsel %vm1641, 1.0, 0.0
    %v1662 = vsel %vm1642, 1.0, 0.0
    %1673 = vrot.lane.b32.xlu0 %v1643, 15
    %v1674 = vpop.permute.xlu0 %1673
    %1675 = vrot.lane.b32.xlu0 %v1644, 15
    %v1676 = vpop.permute.xlu0 %1675
    %1677 = vrot.lane.b32.xlu0 %v1645, 15
    %v1678 = vpop.permute.xlu0 %1677
    %1679 = vrot.lane.b32.xlu0 %v1646, 15
    %v1680 = vpop.permute.xlu0 %1679
    %1681 = vrot.lane.b32.xlu0 %v1647, 15
    %v1682 = vpop.permute.xlu0 %1681
    %1683 = vrot.lane.b32.xlu0 %v1648, 15
    %v1684 = vpop.permute.xlu0 %1683
    %1685 = vrot.lane.b32.xlu0 %v1649, 15
    %v1686 = vpop.permute.xlu0 %1685
    %1687 = vrot.lane.b32.xlu0 %v1650, 15
    %v1688 = vpop.permute.xlu0 %1687
    %1689 = vrot.lane.b32.xlu0 %v1651, 15
    %v1690 = vpop.permute.xlu0 %1689
    %1691 = vrot.lane.b32.xlu0 %v1652, 15
    %v1692 = vpop.permute.xlu0 %1691
    %v1693 = vsel %vm475, %v1674, %v1676
    %v1694 = vsel %vm475, %v1676, %v1678
    %v1695 = vsel %vm475, %v1678, %v1680
    %v1696 = vsel %vm475, %v1680, %v1682
    %v1697 = vsel %vm475, %v1684, %v1686
    %v1698 = vsel %vm475, %v1686, %v1688
    %v1699 = vsel %vm475, %v1688, %v1690
    %v1700 = vsel %vm475, %v1690, %v1692
    %vm1711 = vcmp.gt.f32.partialorder %v1583, %v1674
    %vm1712 = vcmp.gt.f32.partialorder %v1584, %v1693
    %vm1713 = vcmp.gt.f32.partialorder %v1585, %v1694
    %vm1714 = vcmp.gt.f32.partialorder %v1586, %v1695
    %vm1715 = vcmp.gt.f32.partialorder %v1587, %v1696
    %vm1716 = vcmp.gt.f32.partialorder %v1588, %v1684
    %vm1717 = vcmp.gt.f32.partialorder %v1589, %v1697
    %vm1718 = vcmp.gt.f32.partialorder %v1590, %v1698
    %vm1719 = vcmp.gt.f32.partialorder %v1591, %v1699
    %vm1720 = vcmp.gt.f32.partialorder %v1592, %v1700
    %v1721 = vsel %vm1711, %v1583, %v1674
    %v1722 = vsel %vm1712, %v1584, %v1693
    %v1723 = vsel %vm1713, %v1585, %v1694
    %v1724 = vsel %vm1714, %v1586, %v1695
    %v1725 = vsel %vm1715, %v1587, %v1696
    %v1726 = vsel %vm1716, %v1588, %v1684
    %v1727 = vsel %vm1717, %v1589, %v1697
    %v1728 = vsel %vm1718, %v1590, %v1698
    %v1729 = vsel %vm1719, %v1591, %v1699
    %v1730 = vsel %vm1720, %v1592, %v1700
    %1741 = vrot.lane.b32.xlu0 %v1653, 15
    %v1742 = vpop.permute.xlu0 %1741
    %1743 = vrot.lane.b32.xlu0 %v1654, 15
    %v1744 = vpop.permute.xlu0 %1743
    %1745 = vrot.lane.b32.xlu0 %v1655, 15
    %v1746 = vpop.permute.xlu0 %1745
    %1747 = vrot.lane.b32.xlu0 %v1656, 15
    %v1748 = vpop.permute.xlu0 %1747
    %1749 = vrot.lane.b32.xlu0 %v1657, 15
    %v1750 = vpop.permute.xlu0 %1749
    %1751 = vrot.lane.b32.xlu0 %v1658, 15
    %v1752 = vpop.permute.xlu0 %1751
    %1753 = vrot.lane.b32.xlu0 %v1659, 15
    %v1754 = vpop.permute.xlu0 %1753
    %1755 = vrot.lane.b32.xlu0 %v1660, 15
    %v1756 = vpop.permute.xlu0 %1755
    %1757 = vrot.lane.b32.xlu0 %v1661, 15
    %v1758 = vpop.permute.xlu0 %1757
    %1759 = vrot.lane.b32.xlu0 %v1662, 15
    %v1760 = vpop.permute.xlu0 %1759
    %v1761 = vsel %vm475, %v1742, %v1744
    %v1762 = vsel %vm475, %v1744, %v1746
    %v1763 = vsel %vm475, %v1746, %v1748
    %v1764 = vsel %vm475, %v1748, %v1750
    %v1765 = vsel %vm475, %v1752, %v1754
    %v1766 = vsel %vm475, %v1754, %v1756
    %v1767 = vsel %vm475, %v1756, %v1758
    %v1768 = vsel %vm475, %v1758, %v1760
    %v1779 = vsel %vm1711, 16.0, %v1742
    %v1780 = vsel %vm1712, 16.0, %v1761
    %v1781 = vsel %vm1713, 16.0, %v1762
    %v1782 = vsel %vm1714, 16.0, %v1763
    %v1783 = vsel %vm1715, 16.0, %v1764
    %v1784 = vsel %vm1716, 16.0, %v1752
    %v1785 = vsel %vm1717, 16.0, %v1765
    %v1786 = vsel %vm1718, 16.0, %v1766
    %v1787 = vsel %vm1719, 16.0, %v1767
    %v1788 = vsel %vm1720, 16.0, %v1768
    %1799 = vrot.lane.b32.xlu0 %v1721, 1
    %v1800 = vpop.permute.xlu0 %1799
    %1801 = vrot.lane.b32.xlu0 %v1722, 1
    %v1802 = vpop.permute.xlu0 %1801
    %1803 = vrot.lane.b32.xlu0 %v1723, 1
    %v1804 = vpop.permute.xlu0 %1803
    %1805 = vrot.lane.b32.xlu0 %v1724, 1
    %v1806 = vpop.permute.xlu0 %1805
    %1807 = vrot.lane.b32.xlu0 %v1725, 1
    %v1808 = vpop.permute.xlu0 %1807
    %1809 = vrot.lane.b32.xlu0 %v1726, 1
    %v1810 = vpop.permute.xlu0 %1809
    %1811 = vrot.lane.b32.xlu0 %v1727, 1
    %v1812 = vpop.permute.xlu0 %1811
    %1813 = vrot.lane.b32.xlu0 %v1728, 1
    %v1814 = vpop.permute.xlu0 %1813
    %1815 = vrot.lane.b32.xlu0 %v1729, 1
    %v1816 = vpop.permute.xlu0 %1815
    %1817 = vrot.lane.b32.xlu0 %v1730, 1
    %v1818 = vpop.permute.xlu0 %1817
    %v1819 = vsel %vm631, %v1800, %v1802
    %v1820 = vsel %vm631, %v1802, %v1804
    %v1821 = vsel %vm631, %v1804, %v1806
    %v1822 = vsel %vm631, %v1806, %v1808
    %v1823 = vsel %vm631, %v1810, %v1812
    %v1824 = vsel %vm631, %v1812, %v1814
    %v1825 = vsel %vm631, %v1814, %v1816
    %v1826 = vsel %vm631, %v1816, %v1818
    %vm1837 = vcmp.gt.f32.partialorder %v1583, %v1800
    %vm1838 = vcmp.gt.f32.partialorder %v1584, %v1819
    %vm1839 = vcmp.gt.f32.partialorder %v1585, %v1820
    %vm1840 = vcmp.gt.f32.partialorder %v1586, %v1821
    %vm1841 = vcmp.gt.f32.partialorder %v1587, %v1822
    %vm1842 = vcmp.gt.f32.partialorder %v1588, %v1810
    %vm1843 = vcmp.gt.f32.partialorder %v1589, %v1823
    %vm1844 = vcmp.gt.f32.partialorder %v1590, %v1824
    %vm1845 = vcmp.gt.f32.partialorder %v1591, %v1825
    %vm1846 = vcmp.gt.f32.partialorder %v1592, %v1826
    %v1847 = vsel %vm1837, %v1583, %v1800
    %v1848 = vsel %vm1838, %v1584, %v1819
    %v1849 = vsel %vm1839, %v1585, %v1820
    %v1850 = vsel %vm1840, %v1586, %v1821
    %v1851 = vsel %vm1841, %v1587, %v1822
    %v1852 = vsel %vm1842, %v1588, %v1810
    %v1853 = vsel %vm1843, %v1589, %v1823
    %v1854 = vsel %vm1844, %v1590, %v1824
    %v1855 = vsel %vm1845, %v1591, %v1825
    %v1856 = vsel %vm1846, %v1592, %v1826
    %1867 = vrot.lane.b32.xlu0 %v1779, 1
    %v1868 = vpop.permute.xlu0 %1867
    %1869 = vrot.lane.b32.xlu0 %v1780, 1
    %v1870 = vpop.permute.xlu0 %1869
    %1871 = vrot.lane.b32.xlu0 %v1781, 1
    %v1872 = vpop.permute.xlu0 %1871
    %1873 = vrot.lane.b32.xlu0 %v1782, 1
    %v1874 = vpop.permute.xlu0 %1873
    %1875 = vrot.lane.b32.xlu0 %v1783, 1
    %v1876 = vpop.permute.xlu0 %1875
    %1877 = vrot.lane.b32.xlu0 %v1784, 1
    %v1878 = vpop.permute.xlu0 %1877
    %1879 = vrot.lane.b32.xlu0 %v1785, 1
    %v1880 = vpop.permute.xlu0 %1879
    %1881 = vrot.lane.b32.xlu0 %v1786, 1
    %v1882 = vpop.permute.xlu0 %1881
    %1883 = vrot.lane.b32.xlu0 %v1787, 1
    %v1884 = vpop.permute.xlu0 %1883
    %1885 = vrot.lane.b32.xlu0 %v1788, 1
    %v1886 = vpop.permute.xlu0 %1885
    %v1887 = vsel %vm631, %v1868, %v1870
    %v1888 = vsel %vm631, %v1870, %v1872
    %v1889 = vsel %vm631, %v1872, %v1874
    %v1890 = vsel %vm631, %v1874, %v1876
    %v1891 = vsel %vm631, %v1878, %v1880
    %v1892 = vsel %vm631, %v1880, %v1882
    %v1893 = vsel %vm631, %v1882, %v1884
    %v1894 = vsel %vm631, %v1884, %v1886
    %v1905 = vsel %vm1837, 17.0, %v1868
    %v1906 = vsel %vm1838, 17.0, %v1887
    %v1907 = vsel %vm1839, 17.0, %v1888
    %v1908 = vsel %vm1840, 17.0, %v1889
    %v1909 = vsel %vm1841, 17.0, %v1890
    %v1910 = vsel %vm1842, 17.0, %v1878
    %v1911 = vsel %vm1843, 17.0, %v1891
    %v1912 = vsel %vm1844, 17.0, %v1892
    %v1913 = vsel %vm1845, 17.0, %v1893
    %v1914 = vsel %vm1846, 17.0, %v1894
    %v1915 = vlaneseq
    %v1916 = vshrl.u32 %v1915, 7
    %v1917 = vadd.s32 %v1916, 8
    %v1918 = vadd.s32 %v1916, 16
    %v1919 = vadd.s32 %v1916, 24
    %v1920 = vadd.s32 %v1916, 32
    %v1921 = vadd.s32 %v1916, 40
    %v1922 = vadd.s32 %v1916, 48
    %v1923 = vadd.s32 %v1916, 56
    %v1924 = vadd.s32 %v1916, 64
    %v1925 = vadd.s32 %v1916, 72
    %v1926 = vadd.s32 %v1916, 80
    %v1927 = vadd.s32 %v1916, 88
    %v1928 = vadd.s32 %v1916, 96
    %v1929 = vadd.s32 %v1916, 104
    %v1930 = vadd.s32 %v1916, 112
    %v1931 = vadd.s32 %v1916, 120
    %v1932 = vadd.s32 %v1916, 128
    %v1933 = vadd.s32 %v1916, 136
    %v1934 = vadd.s32 %v1916, 144
    %v1935 = vadd.s32 %v1916, 152
    %v1936 = vadd.s32 %v1916, 160
    %v1937 = vadd.s32 %v1916, 168
    %v1938 = vadd.s32 %v1916, 176
    %v1939 = vadd.s32 %v1916, 184
    %v1940 = vadd.s32 %v1916, 192
    %v1941 = vadd.s32 %v1916, 200
    %v1942 = vadd.s32 %v1916, 208
    %v1943 = vadd.s32 %v1916, 216
    %v1944 = vadd.s32 %v1916, 224
    %v1945 = vadd.s32 %v1916, 232
    %v1946 = vadd.s32 %v1916, 240
    %v1947 = vadd.s32 %v1916, 248
    %v1948 = vadd.s32 %v1916, 256
    %v1949 = vadd.s32 %v1916, 264
    %v1950 = vadd.s32 %v1916, 272
    %v1951 = vadd.s32 %v1916, 280
    %v1952 = vadd.s32 %v1916, 288
    %v1953 = vadd.s32 %v1916, 296
    %v1954 = vadd.s32 %v1916, 304
    %v1955 = vadd.s32 %v1916, 312
    %v1956 = vadd.s32 %v1916, 320
    %v1957 = vadd.s32 %v1916, 328
    %v1958 = vadd.s32 %v1916, 336
    %v1959 = vadd.s32 %v1916, 344
    %v1960 = vadd.s32 %v1916, 352
    %v1961 = vadd.s32 %v1916, 360
    %v1962 = vadd.s32 %v1916, 368
    %v1963 = vadd.s32 %v1916, 376
    %v1964 = vadd.s32 %v1916, 384
    %v1965 = vadd.s32 %v1916, 392
    %v1966 = vadd.s32 %v1916, 400
    %v1967 = vadd.s32 %v1916, 408
    %v1968 = vadd.s32 %v1916, 416
    %v1969 = vadd.s32 %v1916, 424
    %v1970 = vadd.s32 %v1916, 432
    %v1971 = vadd.s32 %v1916, 440
    %v1972 = vadd.s32 %v1916, 448
    %v1973 = vadd.s32 %v1916, 456
    %v1974 = vadd.s32 %v1916, 464
    %v1975 = vadd.s32 %v1916, 472
    %v1976 = vadd.s32 %v1916, 480
    %v1977 = vadd.s32 %v1916, 488
    %v1978 = vadd.s32 %v1916, 496
    %v1979 = vadd.s32 %v1916, 504
    %v1980 = vand.u32 %v106, 63
    %v1981 = vsub.s32 %v106, %v1980
    %v1982 = vshll.u32 %v1981, 2
    %v1983 = vshra.s32 %v1980, 3
    %v1984 = vshll.u32 %v1983, 5
    %v1985 = vadd.s32 %v1982, %v1984
    %v1986 = vand.u32 %v1980, 7
    %v1987 = vshll.u32 %v1986, 1
    %v1988 = vadd.s32 %v1985, %v1987
    %vm1989 = vcmp.eq.s32.totalorder %v1916, %v1988
    %vm1990 = vcmp.eq.s32.totalorder %v1917, %v1988
    %vm1991 = vcmp.eq.s32.totalorder %v1918, %v1988
    %vm1992 = vcmp.eq.s32.totalorder %v1919, %v1988
    %vm1993 = vcmp.eq.s32.totalorder %v1920, %v1988
    %vm1994 = vcmp.eq.s32.totalorder %v1921, %v1988
    %vm1995 = vcmp.eq.s32.totalorder %v1922, %v1988
    %vm1996 = vcmp.eq.s32.totalorder %v1923, %v1988
    %vm1997 = vcmp.eq.s32.totalorder %v1924, %v1988
    %vm1998 = vcmp.eq.s32.totalorder %v1925, %v1988
    %vm1999 = vcmp.eq.s32.totalorder %v1926, %v1988
    %vm2000 = vcmp.eq.s32.totalorder %v1927, %v1988
    %vm2001 = vcmp.eq.s32.totalorder %v1928, %v1988
    %vm2002 = vcmp.eq.s32.totalorder %v1929, %v1988
    %vm2003 = vcmp.eq.s32.totalorder %v1930, %v1988
    %vm2004 = vcmp.eq.s32.totalorder %v1931, %v1988
    %vm2005 = vcmp.eq.s32.totalorder %v1932, %v1988
    %vm2006 = vcmp.eq.s32.totalorder %v1933, %v1988
    %vm2007 = vcmp.eq.s32.totalorder %v1934, %v1988
    %vm2008 = vcmp.eq.s32.totalorder %v1935, %v1988
    %vm2009 = vcmp.eq.s32.totalorder %v1936, %v1988
    %vm2010 = vcmp.eq.s32.totalorder %v1937, %v1988
    %vm2011 = vcmp.eq.s32.totalorder %v1938, %v1988
    %vm2012 = vcmp.eq.s32.totalorder %v1939, %v1988
    %vm2013 = vcmp.eq.s32.totalorder %v1940, %v1988
    %vm2014 = vcmp.eq.s32.totalorder %v1941, %v1988
    %vm2015 = vcmp.eq.s32.totalorder %v1942, %v1988
    %vm2016 = vcmp.eq.s32.totalorder %v1943, %v1988
    %vm2017 = vcmp.eq.s32.totalorder %v1944, %v1988
    %vm2018 = vcmp.eq.s32.totalorder %v1945, %v1988
    %vm2019 = vcmp.eq.s32.totalorder %v1946, %v1988
    %vm2020 = vcmp.eq.s32.totalorder %v1947, %v1988
    %vm2021 = vcmp.eq.s32.totalorder %v1948, %v1988
    %vm2022 = vcmp.eq.s32.totalorder %v1949, %v1988
    %vm2023 = vcmp.eq.s32.totalorder %v1950, %v1988
    %vm2024 = vcmp.eq.s32.totalorder %v1951, %v1988
    %vm2025 = vcmp.eq.s32.totalorder %v1952, %v1988
    %vm2026 = vcmp.eq.s32.totalorder %v1953, %v1988
    %vm2027 = vcmp.eq.s32.totalorder %v1954, %v1988
    %vm2028 = vcmp.eq.s32.totalorder %v1955, %v1988
    %vm2029 = vcmp.eq.s32.totalorder %v1956, %v1988
    %vm2030 = vcmp.eq.s32.totalorder %v1957, %v1988
    %vm2031 = vcmp.eq.s32.totalorder %v1958, %v1988
    %vm2032 = vcmp.eq.s32.totalorder %v1959, %v1988
    %vm2033 = vcmp.eq.s32.totalorder %v1960, %v1988
    %vm2034 = vcmp.eq.s32.totalorder %v1961, %v1988
    %vm2035 = vcmp.eq.s32.totalorder %v1962, %v1988
    %vm2036 = vcmp.eq.s32.totalorder %v1963, %v1988
    %vm2037 = vcmp.eq.s32.totalorder %v1964, %v1988
    %vm2038 = vcmp.eq.s32.totalorder %v1965, %v1988
    %vm2039 = vcmp.eq.s32.totalorder %v1966, %v1988
    %vm2040 = vcmp.eq.s32.totalorder %v1967, %v1988
    %vm2041 = vcmp.eq.s32.totalorder %v1968, %v1988
    %vm2042 = vcmp.eq.s32.totalorder %v1969, %v1988
    %vm2043 = vcmp.eq.s32.totalorder %v1970, %v1988
    %vm2044 = vcmp.eq.s32.totalorder %v1971, %v1988
    %vm2045 = vcmp.eq.s32.totalorder %v1972, %v1988
    %vm2046 = vcmp.eq.s32.totalorder %v1973, %v1988
    %vm2047 = vcmp.eq.s32.totalorder %v1974, %v1988
    %vm2048 = vcmp.eq.s32.totalorder %v1975, %v1988
    %vm2049 = vcmp.eq.s32.totalorder %v1976, %v1988
    %vm2050 = vcmp.eq.s32.totalorder %v1977, %v1988
    %vm2051 = vcmp.eq.s32.totalorder %v1978, %v1988
    %vm2052 = vcmp.eq.s32.totalorder %v1979, %v1988
    %v2053 = vsel %vm1989, 1, 0
    %v2054 = vsel %vm1990, 1, 0
    %v2055 = vsel %vm1991, 1, 0
    %v2056 = vsel %vm1992, 1, 0
    %v2057 = vsel %vm1993, 1, 0
    %v2058 = vsel %vm1994, 1, 0
    %v2059 = vsel %vm1995, 1, 0
    %v2060 = vsel %vm1996, 1, 0
    %v2061 = vsel %vm1997, 1, 0
    %v2062 = vsel %vm1998, 1, 0
    %v2063 = vsel %vm1999, 1, 0
    %v2064 = vsel %vm2000, 1, 0
    %v2065 = vsel %vm2001, 1, 0
    %v2066 = vsel %vm2002, 1, 0
    %v2067 = vsel %vm2003, 1, 0
    %v2068 = vsel %vm2004, 1, 0
    %v2069 = vsel %vm2005, 1, 0
    %v2070 = vsel %vm2006, 1, 0
    %v2071 = vsel %vm2007, 1, 0
    %v2072 = vsel %vm2008, 1, 0
    %v2073 = vsel %vm2009, 1, 0
    %v2074 = vsel %vm2010, 1, 0
    %v2075 = vsel %vm2011, 1, 0
    %v2076 = vsel %vm2012, 1, 0
    %v2077 = vsel %vm2013, 1, 0
    %v2078 = vsel %vm2014, 1, 0
    %v2079 = vsel %vm2015, 1, 0
    %v2080 = vsel %vm2016, 1, 0
    %v2081 = vsel %vm2017, 1, 0
    %v2082 = vsel %vm2018, 1, 0
    %v2083 = vsel %vm2019, 1, 0
    %v2084 = vsel %vm2020, 1, 0
    %v2085 = vsel %vm2021, 1, 0
    %v2086 = vsel %vm2022, 1, 0
    %v2087 = vsel %vm2023, 1, 0
    %v2088 = vsel %vm2024, 1, 0
    %v2089 = vsel %vm2025, 1, 0
    %v2090 = vsel %vm2026, 1, 0
    %v2091 = vsel %vm2027, 1, 0
    %v2092 = vsel %vm2028, 1, 0
    %v2093 = vsel %vm2029, 1, 0
    %v2094 = vsel %vm2030, 1, 0
    %v2095 = vsel %vm2031, 1, 0
    %v2096 = vsel %vm2032, 1, 0
    %v2097 = vsel %vm2033, 1, 0
    %v2098 = vsel %vm2034, 1, 0
    %v2099 = vsel %vm2035, 1, 0
    %v2100 = vsel %vm2036, 1, 0
    %v2101 = vsel %vm2037, 1, 0
    %v2102 = vsel %vm2038, 1, 0
    %v2103 = vsel %vm2039, 1, 0
    %v2104 = vsel %vm2040, 1, 0
    %v2105 = vsel %vm2041, 1, 0
    %v2106 = vsel %vm2042, 1, 0
    %v2107 = vsel %vm2043, 1, 0
    %v2108 = vsel %vm2044, 1, 0
    %v2109 = vsel %vm2045, 1, 0
    %v2110 = vsel %vm2046, 1, 0
    %v2111 = vsel %vm2047, 1, 0
    %v2112 = vsel %vm2048, 1, 0
    %v2113 = vsel %vm2049, 1, 0
    %v2114 = vsel %vm2050, 1, 0
    %v2115 = vsel %vm2051, 1, 0
    %v2116 = vsel %vm2052, 1, 0
    %v2117 = vcvt.s32.f32 %v2053
    %v2118 = vcvt.s32.f32 %v2054
    %v2119 = vcvt.s32.f32 %v2055
    %v2120 = vcvt.s32.f32 %v2056
    %v2121 = vcvt.s32.f32 %v2057
    %v2122 = vcvt.s32.f32 %v2058
    %v2123 = vcvt.s32.f32 %v2059
    %v2124 = vcvt.s32.f32 %v2060
    %v2125 = vcvt.s32.f32 %v2061
    %v2126 = vcvt.s32.f32 %v2062
    %v2127 = vcvt.s32.f32 %v2063
    %v2128 = vcvt.s32.f32 %v2064
    %v2129 = vcvt.s32.f32 %v2065
    %v2130 = vcvt.s32.f32 %v2066
    %v2131 = vcvt.s32.f32 %v2067
    %v2132 = vcvt.s32.f32 %v2068
    %v2133 = vcvt.s32.f32 %v2069
    %v2134 = vcvt.s32.f32 %v2070
    %v2135 = vcvt.s32.f32 %v2071
    %v2136 = vcvt.s32.f32 %v2072
    %v2137 = vcvt.s32.f32 %v2073
    %v2138 = vcvt.s32.f32 %v2074
    %v2139 = vcvt.s32.f32 %v2075
    %v2140 = vcvt.s32.f32 %v2076
    %v2141 = vcvt.s32.f32 %v2077
    %v2142 = vcvt.s32.f32 %v2078
    %v2143 = vcvt.s32.f32 %v2079
    %v2144 = vcvt.s32.f32 %v2080
    %v2145 = vcvt.s32.f32 %v2081
    %v2146 = vcvt.s32.f32 %v2082
    %v2147 = vcvt.s32.f32 %v2083
    %v2148 = vcvt.s32.f32 %v2084
    %v2149 = vcvt.s32.f32 %v2085
    %v2150 = vcvt.s32.f32 %v2086
    %v2151 = vcvt.s32.f32 %v2087
    %v2152 = vcvt.s32.f32 %v2088
    %v2153 = vcvt.s32.f32 %v2089
    %v2154 = vcvt.s32.f32 %v2090
    %v2155 = vcvt.s32.f32 %v2091
    %v2156 = vcvt.s32.f32 %v2092
    %v2157 = vcvt.s32.f32 %v2093
    %v2158 = vcvt.s32.f32 %v2094
    %v2159 = vcvt.s32.f32 %v2095
    %v2160 = vcvt.s32.f32 %v2096
    %v2161 = vcvt.s32.f32 %v2097
    %v2162 = vcvt.s32.f32 %v2098
    %v2163 = vcvt.s32.f32 %v2099
    %v2164 = vcvt.s32.f32 %v2100
    %v2165 = vcvt.s32.f32 %v2101
    %v2166 = vcvt.s32.f32 %v2102
    %v2167 = vcvt.s32.f32 %v2103
    %v2168 = vcvt.s32.f32 %v2104
    %v2169 = vcvt.s32.f32 %v2105
    %v2170 = vcvt.s32.f32 %v2106
    %v2171 = vcvt.s32.f32 %v2107
    %v2172 = vcvt.s32.f32 %v2108
    %v2173 = vcvt.s32.f32 %v2109
    %v2174 = vcvt.s32.f32 %v2110
    %v2175 = vcvt.s32.f32 %v2111
    %v2176 = vcvt.s32.f32 %v2112
    %v2177 = vcvt.s32.f32 %v2113
    %v2178 = vcvt.s32.f32 %v2114
    %v2179 = vcvt.s32.f32 %v2115
    %v2180 = vcvt.s32.f32 %v2116
    %v2181 = vpack.c.bf16 %v2118, %v2117
    %v2182 = vpack.c.bf16 %v2120, %v2119
    %v2183 = vpack.c.bf16 %v2122, %v2121
    %v2184 = vpack.c.bf16 %v2124, %v2123
    %v2185 = vpack.c.bf16 %v2126, %v2125
    %v2186 = vpack.c.bf16 %v2128, %v2127
    %v2187 = vpack.c.bf16 %v2130, %v2129
    %v2188 = vpack.c.bf16 %v2132, %v2131
    %v2189 = vpack.c.bf16 %v2134, %v2133
    %v2190 = vpack.c.bf16 %v2136, %v2135
    %v2191 = vpack.c.bf16 %v2138, %v2137
    %v2192 = vpack.c.bf16 %v2140, %v2139
    %v2193 = vpack.c.bf16 %v2142, %v2141
    %v2194 = vpack.c.bf16 %v2144, %v2143
    %v2195 = vpack.c.bf16 %v2146, %v2145
    %v2196 = vpack.c.bf16 %v2148, %v2147
    %v2197 = vpack.c.bf16 %v2150, %v2149
    %v2198 = vpack.c.bf16 %v2152, %v2151
    %v2199 = vpack.c.bf16 %v2154, %v2153
    %v2200 = vpack.c.bf16 %v2156, %v2155
    %v2201 = vpack.c.bf16 %v2158, %v2157
    %v2202 = vpack.c.bf16 %v2160, %v2159
    %v2203 = vpack.c.bf16 %v2162, %v2161
    %v2204 = vpack.c.bf16 %v2164, %v2163
    %v2205 = vpack.c.bf16 %v2166, %v2165
    %v2206 = vpack.c.bf16 %v2168, %v2167
    %v2207 = vpack.c.bf16 %v2170, %v2169
    %v2208 = vpack.c.bf16 %v2172, %v2171
    %v2209 = vpack.c.bf16 %v2174, %v2173
    %v2210 = vpack.c.bf16 %v2176, %v2175
    %v2211 = vpack.c.bf16 %v2178, %v2177
    %v2212 = vpack.c.bf16 %v2180, %v2179
    %v2213 = vpack.c.bf16 %v1852, %v1847
    %v2214 = vpack.c.bf16 %v1853, %v1848
    %v2215 = vpack.c.bf16 %v1854, %v1849
    %v2216 = vpack.c.bf16 %v1855, %v1850
    %v2217 = vpack.c.bf16 %v1856, %v1851
    %v2218 = vpack.c.bf16 %v1910, %v1905
    %v2219 = vpack.c.bf16 %v1911, %v1906
    %v2220 = vpack.c.bf16 %v1912, %v1907
    %v2221 = vpack.c.bf16 %v1913, %v1908
    %v2222 = vpack.c.bf16 %v1914, %v1909
    %2233 = vrot.lane.b32.xlu0 %v2213, 111
    %v2234 = vpop.permute.xlu0 %2233
    %2235 = vrot.lane.b32.xlu0 %v2214, 111
    %v2236 = vpop.permute.xlu0 %2235
    %2237 = vrot.lane.b32.xlu0 %v2215, 111
    %v2238 = vpop.permute.xlu0 %2237
    %2239 = vrot.lane.b32.xlu0 %v2216, 111
    %v2240 = vpop.permute.xlu0 %2239
    %2241 = vrot.lane.b32.xlu0 %v2217, 111
    %v2242 = vpop.permute.xlu0 %2241
    %2243 = vrot.lane.b32.xlu0 %v2218, 111
    %v2244 = vpop.permute.xlu0 %2243
    %2245 = vrot.lane.b32.xlu0 %v2219, 111
    %v2246 = vpop.permute.xlu0 %2245
    %2247 = vrot.lane.b32.xlu0 %v2220, 111
    %v2248 = vpop.permute.xlu0 %2247
    %2249 = vrot.lane.b32.xlu0 %v2221, 111
    %v2250 = vpop.permute.xlu0 %2249
    %2251 = vrot.lane.b32.xlu0 %v2222, 111
    %v2252 = vpop.permute.xlu0 %2251
    %vm2253 = vcmask 908288
    %v2254 = vsel %vm2253, %v2234, %v2236
    %v2255 = vsel %vm2253, %v2236, %v2238
    %v2256 = vsel %vm2253, %v2238, %v2240
    %v2257 = vsel %vm2253, %v2240, %v2242
    %v2258 = vsel %vm2253, %v2244, %v2246
    %v2259 = vsel %vm2253, %v2246, %v2248
    %v2260 = vsel %vm2253, %v2248, %v2250
    %v2261 = vsel %vm2253, %v2250, %v2252
    %2270 = vmatprep.subr.bf16.mxu0 0
    %2271 = vmatpush1.bf16.msra.mxu0 %v2181
    %2272 = vmatprep.subr.bf16.mxu0 0
    %2273 = vmatpush1.bf16.msra.mxu0 %v2182
    %2274 = vmatprep.subr.bf16.mxu0 0
    %2275 = vmatpush1.bf16.msra.mxu0 %v2183
    %2276 = vmatprep.subr.bf16.mxu0 0
    %2277 = vmatpush1.bf16.msra.mxu0 %v2184
    %2278 = vmatprep.subr.bf16.mxu0 0
    %2279 = vmatpush1.bf16.msra.mxu0 %v2185
    %2280 = vmatprep.subr.bf16.mxu0 0
    %2281 = vmatpush1.bf16.msra.mxu0 %v2186
    %2282 = vmatprep.subr.bf16.mxu0 0
    %2283 = vmatpush1.bf16.msra.mxu0 %v2187
    %2284 = vmatprep.subr.bf16.mxu0 0
    %2285 = vmatpush1.bf16.msra.mxu0 %v2188
    %2286 = vmatprep.subr.bf16.mxu0 0
    %2287 = vmatpush1.bf16.msra.mxu0 %v2189
    %2288 = vmatprep.subr.bf16.mxu0 0
    %2289 = vmatpush1.bf16.msra.mxu0 %v2190
    %2290 = vmatprep.subr.bf16.mxu0 0
    %2291 = vmatpush1.bf16.msra.mxu0 %v2191
    %2292 = vmatprep.subr.bf16.mxu0 0
    %2293 = vmatpush1.bf16.msra.mxu0 %v2192
    %2294 = vmatprep.subr.bf16.mxu0 0
    %2295 = vmatpush1.bf16.msra.mxu0 %v2193
    %2296 = vmatprep.subr.bf16.mxu0 0
    %2297 = vmatpush1.bf16.msra.mxu0 %v2194
    %2298 = vmatprep.subr.bf16.mxu0 0
    %2299 = vmatpush1.bf16.msra.mxu0 %v2195
    %2300 = vmatprep.subr.bf16.mxu0 0
    %2301 = vmatpush1.bf16.msra.mxu0 %v2196
    %2302 = vmatprep.mubr.bf16.mxu0 %v2255
    %2303 = vmatmul.mubr.bf16.gmra.mrb[0].mxu0 %v2254
    %v2304 = vpop.f32.mrb[0].mxu0
    %v2305 = vadd.f32 0.0, %v2304
    %v2306 = vpop.f32.mrb[0].mxu0
    %v2307 = vpop.f32.mrb[0].mxu0
    %v2308 = vadd.f32 0.0, %v2307
    %v2309 = vpop.f32.mrb[0].mxu0
    %2310 = vmatprep.mubr.bf16.mxu0 %v2259
    %2311 = vmatmul.mubr.bf16.gmra.mrb[0].mxu0 %v2258
    %v2312 = vpop.f32.mrb[0].mxu0
    %v2313 = vadd.f32 0.0, %v2312
    %v2314 = vpop.f32.mrb[0].mxu0
    %v2315 = vpop.f32.mrb[0].mxu0
    %v2316 = vadd.f32 0.0, %v2315
    %v2317 = vpop.f32.mrb[0].mxu0
    %2318 = vdwg.mxu0
    %2319 = vmatprep.subr.bf16.mxu0 0
    %2320 = vmatpush1.bf16.msra.mxu0 %v2197
    %2321 = vmatprep.subr.bf16.mxu0 0
    %2322 = vmatpush1.bf16.msra.mxu0 %v2198
    %2323 = vmatprep.subr.bf16.mxu0 0
    %2324 = vmatpush1.bf16.msra.mxu0 %v2199
    %2325 = vmatprep.subr.bf16.mxu0 0
    %2326 = vmatpush1.bf16.msra.mxu0 %v2200
    %2327 = vmatprep.subr.bf16.mxu0 0
    %2328 = vmatpush1.bf16.msra.mxu0 %v2201
    %2329 = vmatprep.subr.bf16.mxu0 0
    %2330 = vmatpush1.bf16.msra.mxu0 %v2202
    %2331 = vmatprep.subr.bf16.mxu0 0
    %2332 = vmatpush1.bf16.msra.mxu0 %v2203
    %2333 = vmatprep.subr.bf16.mxu0 0
    %2334 = vmatpush1.bf16.msra.mxu0 %v2204
    %2335 = vmatprep.subr.bf16.mxu0 0
    %2336 = vmatpush1.bf16.msra.mxu0 %v2205
    %2337 = vmatprep.subr.bf16.mxu0 0
    %2338 = vmatpush1.bf16.msra.mxu0 %v2206
    %2339 = vmatprep.subr.bf16.mxu0 0
    %2340 = vmatpush1.bf16.msra.mxu0 %v2207
    %2341 = vmatprep.subr.bf16.mxu0 0
    %2342 = vmatpush1.bf16.msra.mxu0 %v2208
    %2343 = vmatprep.subr.bf16.mxu0 0
    %2344 = vmatpush1.bf16.msra.mxu0 %v2209
    %2345 = vmatprep.subr.bf16.mxu0 0
    %2346 = vmatpush1.bf16.msra.mxu0 %v2210
    %2347 = vmatprep.subr.bf16.mxu0 0
    %2348 = vmatpush1.bf16.msra.mxu0 %v2211
    %2349 = vmatprep.subr.bf16.mxu0 0
    %2350 = vmatpush1.bf16.msra.mxu0 %v2212
    %2351 = vmatprep.mubr.bf16.mxu0 %v2257
    %2352 = vmatmul.mubr.bf16.gmra.mrb[0].mxu0 %v2256
    %v2353 = vpop.f32.mrb[0].mxu0
    %v2354 = vadd.f32 %v2305, %v2353
    %v2355 = vpop.f32.mrb[0].mxu0
    %v2356 = vpop.f32.mrb[0].mxu0
    %v2357 = vadd.f32 %v2308, %v2356
    %v2358 = vpop.f32.mrb[0].mxu0
    %2359 = vmatprep.mubr.bf16.mxu0 %v2261
    %2360 = vmatmul.mubr.bf16.gmra.mrb[0].mxu0 %v2260
    %v2361 = vpop.f32.mrb[0].mxu0
    %v2362 = vadd.f32 %v2313, %v2361
    %v2363 = vpop.f32.mrb[0].mxu0
    %v2364 = vpop.f32.mrb[0].mxu0
    %v2365 = vadd.f32 %v2316, %v2364
    %v2366 = vpop.f32.mrb[0].mxu0
    %2367 = vdwg.mxu0
    %v2368 = vadd.s32 %v1984, %v1987
    %v2369 = vadd.f32 %v2362, 0.5
    %v2370 = vadd.f32 %v2365, 0.5
    %v2371 = vcvt.f32.s32.to.zero.pseudo %v2369
    %v2372 = vcvt.f32.s32.to.zero.pseudo %v2370
    %v2373 = vadd.s32 %v2368, %v2371
    %v2374 = vadd.s32 %v2368, %v2372
    %vm2375 = vcmask 523264
    %2376 = vst.msk [vmem:[%s9] sm:$0xff] %vm2375, %v2373
    %2377 = vst.msk [vmem:[%s9 + $0x8] sm:$0xff] %vm2375, %v2374
    %2378 = vrot.lane.b32.xlu0 %v2373, 64
    %v2379 = vpop.permute.xlu0 %2378
    %2380 = vrot.lane.b32.xlu0 %v2374, 64
    %v2381 = vpop.permute.xlu0 %2380
    %s2382 = scalar_lea.vmem %s9, 16
    %2383 = vst.msk [vmem:[%s2382] sm:$0xff] %vm2375, %v2379
    %2384 = vst.msk [vmem:[%s2382 + $0x8] sm:$0xff] %vm2375, %v2381
    %2385 = vst [vmem:[#allocation2 + $0x10] sm:$0xff] 0.0
    %2386 = vst [vmem:[#allocation2 + $0x40] sm:$0xff] 0.0
    %2387 = vst [vmem:[#allocation2 + $0x8] sm:$0xff] %v2354
    %2388 = vst [vmem:[#allocation2 + $0x38] sm:$0xff] %v2357
    %v2389 = vand.u32 %v106, 7
    %v2390 = vshra.s32 %v106, 3
    %v2391 = vand.u32 %v2390, 7
    %vm2392 = vcmp.ge.s32.totalorder %v2391, 1
    %vm2393 = vcmp.ge.s32.totalorder %v2391, 0
    %vm2394 = vcmp.lt.s32.totalorder %v2391, 7
    %vm2395 = vcmp.ge.s32.totalorder %v2389, 1
    %vm2396 = vcmp.ge.s32.totalorder %v2389, 0
    %vm2397 = vcmp.lt.s32.totalorder %v2389, 7
    %v2398 = vld [vmem:[#allocation2] sm:$0xff]
    %v2399 = vld [vmem:[#allocation2 + $0x8] sm:$0xff]
    %v2400 = vld [vmem:[#allocation2 + $0x30] sm:$0xff]
    %v2401 = vld [vmem:[#allocation2 + $0x38] sm:$0xff]
    %vm2402 = vmand %vm2392, %vm2395
    %v2403 = vsel %vm2402, 1, 0
    %vm2404 = vcmp.eq.s32.totalorder %v2403, 1
    %2409 = vrot.lane.b32.xlu0 %v2398, 9
    %v2410 = vpop.permute.xlu0 %2409
    %2411 = vrot.lane.b32.xlu0 %v2399, 9
    %v2412 = vpop.permute.xlu0 %2411
    %2413 = vrot.lane.b32.xlu0 %v2400, 9
    %v2414 = vpop.permute.xlu0 %2413
    %2415 = vrot.lane.b32.xlu0 %v2401, 9
    %v2416 = vpop.permute.xlu0 %2415
    %vm2417 = vcmask 72704
    %v2418 = vsel %vm2417, %v2410, %v2412
    %v2419 = vsel %vm2417, %v2414, %v2416
    %v2422 = vsel %vm2404, %v2418, 0.0
    %v2423 = vsel %vm2404, %v2419, 0.0
    %v2424 = vpack.c.bf16 %v2423, %v2422
    %v2425 = vld [vmem:[#allocation7] sm:$0xf]
    %v2426 = vld [vmem:[#allocation7 + $0x4] sm:$0xf]
    %v2427 = vld [vmem:[#allocation7 + $0x8] sm:$0xf]
    %v2428 = vld [vmem:[#allocation7 + $0xc] sm:$0xf]
    %vm2429 = vmand %vm2392, %vm2396
    %v2430 = vsel %vm2429, 1, 0
    %vm2431 = vcmp.eq.s32.totalorder %v2430, 1
    %2432 = vrot.lane.b32.xlu0 %v2398, 8
    %v2433 = vpop.permute.xlu0 %2432
    %2434 = vrot.lane.b32.xlu0 %v2399, 8
    %v2435 = vpop.permute.xlu0 %2434
    %2436 = vrot.lane.b32.xlu0 %v2400, 8
    %v2437 = vpop.permute.xlu0 %2436
    %2438 = vrot.lane.b32.xlu0 %v2401, 8
    %v2439 = vpop.permute.xlu0 %2438
    %vm2440 = vcmask 64512
    %v2441 = vsel %vm2440, %v2433, %v2435
    %v2442 = vsel %vm2440, %v2437, %v2439
    %v2445 = vsel %vm2431, %v2441, 0.0
    %v2446 = vsel %vm2431, %v2442, 0.0
    %v2447 = vpack.c.bf16 %v2446, %v2445
    %s2448 = scalar_lea.vmem [#allocation7], 16
    %v2449 = vld [vmem:[%s2448] sm:$0xf]
    %v2450 = vld [vmem:[%s2448 + $0x4] sm:$0xf]
    %v2451 = vld [vmem:[%s2448 + $0x8] sm:$0xf]
    %v2452 = vld [vmem:[%s2448 + $0xc] sm:$0xf]
    %v2457 = vunpack.c.l.b16 %v2449
    %v2458 = vunpack.c.l.b16 %v2450
    %v2459 = vunpack.c.l.b16 %v2451
    %v2460 = vunpack.c.l.b16 %v2452
    %v2461 = vpack.c.b16 %v2458, %v2457
    %v2462 = vpack.c.b16 %v2460, %v2459
    %v2464 = vsel %vm219, %v2461, 0
    %v2467 = vsel %vm219, %v2462, 0
    %2469 = vmatprep.subr.bf16.mxu0 0
    %2470 = vmatpush1.bf16.msra.mxu0 %v2447
    %2471 = vmatprep.subr.bf16.mxu0 0
    %2472 = vmatpush1.bf16.msra.mxu0 0
    %2473 = vmatprep.subr.bf16.mxu0 0
    %2474 = vmatpush1.bf16.msra.mxu0 0
    %2475 = vmatprep.subr.bf16.mxu0 0
    %2476 = vmatpush1.bf16.msra.mxu0 0
    %2477 = vmatprep.subr.bf16.mxu0 0
    %2478 = vmatpush1.bf16.msra.mxu0 0
    %2479 = vmatprep.subr.bf16.mxu0 0
    %2480 = vmatpush1.bf16.msra.mxu0 0
    %2481 = vmatprep.subr.bf16.mxu0 0
    %2482 = vmatpush1.bf16.msra.mxu0 0
    %2483 = vmatprep.subr.bf16.mxu0 0
    %2484 = vmatpush1.bf16.msra.mxu0 0
    %2485 = vmatprep.subr.bf16.mxu0 0
    %2486 = vmatpush1.bf16.msra.mxu0 0
    %2487 = vmatprep.subr.bf16.mxu0 0
    %2488 = vmatpush1.bf16.msra.mxu0 0
    %2489 = vmatprep.subr.bf16.mxu0 0
    %2490 = vmatpush1.bf16.msra.mxu0 0
    %2491 = vmatprep.subr.bf16.mxu0 0
    %2492 = vmatpush1.bf16.msra.mxu0 0
    %2493 = vmatprep.subr.bf16.mxu0 0
    %2494 = vmatpush1.bf16.msra.mxu0 0
    %2495 = vmatprep.subr.bf16.mxu0 0
    %2496 = vmatpush1.bf16.msra.mxu0 0
    %2497 = vmatprep.subr.bf16.mxu0 0
    %2498 = vmatpush1.bf16.msra.mxu0 0
    %2499 = vmatprep.subr.bf16.mxu0 0
    %2500 = vmatpush1.bf16.msra.mxu0 0
    %2501 = vmatprep.mubr.bf16.mxu0 0
    %2502 = vmatmul.mubr.bf16.gmra.mrb[0].mxu0 %v2464
    %v2503 = vpop.f32.mrb[0].mxu0
    %v2504 = vadd.f32 0.0, %v2503
    %v2505 = vpop.f32.mrb[0].mxu0
    %v2506 = vpop.f32.mrb[0].mxu0
    %v2507 = vadd.f32 0.0, %v2506
    %v2508 = vpop.f32.mrb[0].mxu0
    %2509 = vmatprep.mubr.bf16.mxu0 0
    %2510 = vmatmul.mubr.bf16.gmra.mrb[0].mxu0 %v2467
    %v2511 = vpop.f32.mrb[0].mxu0
    %v2512 = vadd.f32 0.0, %v2511
    %v2513 = vpop.f32.mrb[0].mxu0
    %v2514 = vpop.f32.mrb[0].mxu0
    %v2515 = vadd.f32 0.0, %v2514
    %v2516 = vpop.f32.mrb[0].mxu0
    %2517 = vdwg.mxu0
    %v2522 = vunpack.c.l.b16 %v2425
    %v2523 = vunpack.c.l.b16 %v2426
    %v2524 = vunpack.c.l.b16 %v2427
    %v2525 = vunpack.c.l.b16 %v2428
    %v2526 = vpack.c.b16 %v2523, %v2522
    %v2527 = vpack.c.b16 %v2525, %v2524
    %v2529 = vsel %vm219, %v2526, 0
    %v2532 = vsel %vm219, %v2527, 0
    %2534 = vmatprep.subr.bf16.mxu0 0
    %2535 = vmatpush1.bf16.msra.mxu0 %v2424
    %2536 = vmatprep.subr.bf16.mxu0 0
    %2537 = vmatpush1.bf16.msra.mxu0 0
    %2538 = vmatprep.subr.bf16.mxu0 0
    %2539 = vmatpush1.bf16.msra.mxu0 0
    %2540 = vmatprep.subr.bf16.mxu0 0
    %2541 = vmatpush1.bf16.msra.mxu0 0
    %2542 = vmatprep.subr.bf16.mxu0 0
    %2543 = vmatpush1.bf16.msra.mxu0 0
    %2544 = vmatprep.subr.bf16.mxu0 0
    %2545 = vmatpush1.bf16.msra.mxu0 0
    %2546 = vmatprep.subr.bf16.mxu0 0
    %2547 = vmatpush1.bf16.msra.mxu0 0
    %2548 = vmatprep.subr.bf16.mxu0 0
    %2549 = vmatpush1.bf16.msra.mxu0 0
    %2550 = vmatprep.subr.bf16.mxu0 0
    %2551 = vmatpush1.bf16.msra.mxu0 0
    %2552 = vmatprep.subr.bf16.mxu0 0
    %2553 = vmatpush1.bf16.msra.mxu0 0
    %2554 = vmatprep.subr.bf16.mxu0 0
    %2555 = vmatpush1.bf16.msra.mxu0 0
    %2556 = vmatprep.subr.bf16.mxu0 0
    %2557 = vmatpush1.bf16.msra.mxu0 0
    %2558 = vmatprep.subr.bf16.mxu0 0
    %2559 = vmatpush1.bf16.msra.mxu0 0
    %2560 = vmatprep.subr.bf16.mxu0 0
    %2561 = vmatpush1.bf16.msra.mxu0 0
    %2562 = vmatprep.subr.bf16.mxu0 0
    %2563 = vmatpush1.bf16.msra.mxu0 0
    %2564 = vmatprep.subr.bf16.mxu0 0
    %2565 = vmatpush1.bf16.msra.mxu0 0
    %2566 = vmatprep.mubr.bf16.mxu0 0
    %2567 = vmatmul.mubr.bf16.gmra.mrb[0].mxu0 %v2529
    %v2568 = vpop.f32.mrb[0].mxu0
    %v2569 = vadd.f32 %v2504, %v2568
    %v2570 = vpop.f32.mrb[0].mxu0
    %v2571 = vpop.f32.mrb[0].mxu0
    %v2572 = vadd.f32 %v2507, %v2571
    %v2573 = vpop.f32.mrb[0].mxu0
    %2574 = vmatprep.mubr.bf16.mxu0 0
    %2575 = vmatmul.mubr.bf16.gmra.mrb[0].mxu0 %v2532
    %v2576 = vpop.f32.mrb[0].mxu0
    %v2577 = vadd.f32 %v2512, %v2576
    %v2578 = vpop.f32.mrb[0].mxu0
    %v2579 = vpop.f32.mrb[0].mxu0
    %v2580 = vadd.f32 %v2515, %v2579
    %v2581 = vpop.f32.mrb[0].mxu0
    %2582 = vdwg.mxu0
    %vm2583 = vmand %vm2392, %vm2397
    %v2584 = vsel %vm2583, 1, 0
    %vm2585 = vcmp.eq.s32.totalorder %v2584, 1
    %2586 = vrot.lane.b32.xlu0 %v2398, 7
    %v2587 = vpop.permute.xlu0 %2586
    %2588 = vrot.lane.b32.xlu0 %v2399, 7
    %v2589 = vpop.permute.xlu0 %2588
    %2590 = vrot.lane.b32.xlu0 %v2400, 7
    %v2591 = vpop.permute.xlu0 %2590
    %2592 = vrot.lane.b32.xlu0 %v2401, 7
    %v2593 = vpop.permute.xlu0 %2592
    %vm2594 = vcmask 56320
    %v2595 = vsel %vm2594, %v2587, %v2589
    %v2596 = vsel %vm2594, %v2591, %v2593
    %v2599 = vsel %vm2585, %v2595, 0.0
    %v2600 = vsel %vm2585, %v2596, 0.0
    %v2601 = vpack.c.bf16 %v2600, %v2599
    %s2602 = scalar_lea.vmem [#allocation7], 32
    %v2603 = vld [vmem:[%s2602] sm:$0xf]
    %v2604 = vld [vmem:[%s2602 + $0x4] sm:$0xf]
    %v2605 = vld [vmem:[%s2602 + $0x8] sm:$0xf]
    %v2606 = vld [vmem:[%s2602 + $0xc] sm:$0xf]
    %v2611 = vunpack.c.l.b16 %v2603
    %v2612 = vunpack.c.l.b16 %v2604
    %v2613 = vunpack.c.l.b16 %v2605
    %v2614 = vunpack.c.l.b16 %v2606
    %v2615 = vpack.c.b16 %v2612, %v2611
    %v2616 = vpack.c.b16 %v2614, %v2613
    %v2618 = vsel %vm219, %v2615, 0
    %v2621 = vsel %vm219, %v2616, 0
    %2623 = vmatprep.subr.bf16.mxu0 0
    %2624 = vmatpush1.bf16.msra.mxu0 %v2601
    %2625 = vmatprep.subr.bf16.mxu0 0
    %2626 = vmatpush1.bf16.msra.mxu0 0
    %2627 = vmatprep.subr.bf16.mxu0 0
    %2628 = vmatpush1.bf16.msra.mxu0 0
    %2629 = vmatprep.subr.bf16.mxu0 0
    %2630 = vmatpush1.bf16.msra.mxu0 0
    %2631 = vmatprep.subr.bf16.mxu0 0
    %2632 = vmatpush1.bf16.msra.mxu0 0
    %2633 = vmatprep.subr.bf16.mxu0 0
    %2634 = vmatpush1.bf16.msra.mxu0 0
    %2635 = vmatprep.subr.bf16.mxu0 0
    %2636 = vmatpush1.bf16.msra.mxu0 0
    %2637 = vmatprep.subr.bf16.mxu0 0
    %2638 = vmatpush1.bf16.msra.mxu0 0
    %2639 = vmatprep.subr.bf16.mxu0 0
    %2640 = vmatpush1.bf16.msra.mxu0 0
    %2641 = vmatprep.subr.bf16.mxu0 0
    %2642 = vmatpush1.bf16.msra.mxu0 0
    %2643 = vmatprep.subr.bf16.mxu0 0
    %2644 = vmatpush1.bf16.msra.mxu0 0
    %2645 = vmatprep.subr.bf16.mxu0 0
    %2646 = vmatpush1.bf16.msra.mxu0 0
    %2647 = vmatprep.subr.bf16.mxu0 0
    %2648 = vmatpush1.bf16.msra.mxu0 0
    %2649 = vmatprep.subr.bf16.mxu0 0
    %2650 = vmatpush1.bf16.msra.mxu0 0
    %2651 = vmatprep.subr.bf16.mxu0 0
    %2652 = vmatpush1.bf16.msra.mxu0 0
    %2653 = vmatprep.subr.bf16.mxu0 0
    %2654 = vmatpush1.bf16.msra.mxu0 0
    %2655 = vmatprep.mubr.bf16.mxu0 0
    %2656 = vmatmul.mubr.bf16.gmra.mrb[0].mxu0 %v2618
    %v2657 = vpop.f32.mrb[0].mxu0
    %v2658 = vadd.f32 0.0, %v2657
    %v2659 = vpop.f32.mrb[0].mxu0
    %v2660 = vpop.f32.mrb[0].mxu0
    %v2661 = vadd.f32 0.0, %v2660
    %v2662 = vpop.f32.mrb[0].mxu0
    %2663 = vmatprep.mubr.bf16.mxu0 0
    %2664 = vmatmul.mubr.bf16.gmra.mrb[0].mxu0 %v2621
    %v2665 = vpop.f32.mrb[0].mxu0
    %v2666 = vadd.f32 0.0, %v2665
    %v2667 = vpop.f32.mrb[0].mxu0
    %v2668 = vpop.f32.mrb[0].mxu0
    %v2669 = vadd.f32 0.0, %v2668
    %v2670 = vpop.f32.mrb[0].mxu0
    %2671 = vdwg.mxu0
    %v2672 = vadd.f32 %v2569, %v2658
    %v2673 = vadd.f32 %v2572, %v2661
    %v2674 = vadd.f32 %v2577, %v2666
    %v2675 = vadd.f32 %v2580, %v2669
    %vm2676 = vmand %vm2393, %vm2395
    %v2677 = vsel %vm2676, 1, 0
    %vm2678 = vcmp.eq.s32.totalorder %v2677, 1
    %2679 = vrot.lane.b32.xlu0 %v2398, 1
    %v2680 = vpop.permute.xlu0 %2679
    %2681 = vrot.lane.b32.xlu0 %v2399, 1
    %v2682 = vpop.permute.xlu0 %2681
    %2683 = vrot.lane.b32.xlu0 %v2400, 1
    %v2684 = vpop.permute.xlu0 %2683
    %2685 = vrot.lane.b32.xlu0 %v2401, 1
    %v2686 = vpop.permute.xlu0 %2685
    %v2687 = vsel %vm631, %v2680, %v2682
    %v2688 = vsel %vm631, %v2684, %v2686
    %v2691 = vsel %vm2678, %v2687, 0.0
    %v2692 = vsel %vm2678, %v2688, 0.0
    %v2693 = vpack.c.bf16 %v2692, %v2691
    %s2694 = scalar_lea.vmem [#allocation7], 48
    %v2695 = vld [vmem:[%s2694] sm:$0xf]
    %v2696 = vld [vmem:[%s2694 + $0x4] sm:$0xf]
    %v2697 = vld [vmem:[%s2694 + $0x8] sm:$0xf]
    %v2698 = vld [vmem:[%s2694 + $0xc] sm:$0xf]
    %v2703 = vunpack.c.l.b16 %v2695
    %v2704 = vunpack.c.l.b16 %v2696
    %v2705 = vunpack.c.l.b16 %v2697
    %v2706 = vunpack.c.l.b16 %v2698
    %v2707 = vpack.c.b16 %v2704, %v2703
    %v2708 = vpack.c.b16 %v2706, %v2705
    %v2710 = vsel %vm219, %v2707, 0
    %v2713 = vsel %vm219, %v2708, 0
    %2715 = vmatprep.subr.bf16.mxu0 0
    %2716 = vmatpush1.bf16.msra.mxu0 %v2693
    %2717 = vmatprep.subr.bf16.mxu0 0
    %2718 = vmatpush1.bf16.msra.mxu0 0
    %2719 = vmatprep.subr.bf16.mxu0 0
    %2720 = vmatpush1.bf16.msra.mxu0 0
    %2721 = vmatprep.subr.bf16.mxu0 0
    %2722 = vmatpush1.bf16.msra.mxu0 0
    %2723 = vmatprep.subr.bf16.mxu0 0
    %2724 = vmatpush1.bf16.msra.mxu0 0
    %2725 = vmatprep.subr.bf16.mxu0 0
    %2726 = vmatpush1.bf16.msra.mxu0 0
    %2727 = vmatprep.subr.bf16.mxu0 0
    %2728 = vmatpush1.bf16.msra.mxu0 0
    %2729 = vmatprep.subr.bf16.mxu0 0
    %2730 = vmatpush1.bf16.msra.mxu0 0
    %2731 = vmatprep.subr.bf16.mxu0 0
    %2732 = vmatpush1.bf16.msra.mxu0 0
    %2733 = vmatprep.subr.bf16.mxu0 0
    %2734 = vmatpush1.bf16.msra.mxu0 0
    %2735 = vmatprep.subr.bf16.mxu0 0
    %2736 = vmatpush1.bf16.msra.mxu0 0
    %2737 = vmatprep.subr.bf16.mxu0 0
    %2738 = vmatpush1.bf16.msra.mxu0 0
    %2739 = vmatprep.subr.bf16.mxu0 0
    %2740 = vmatpush1.bf16.msra.mxu0 0
    %2741 = vmatprep.subr.bf16.mxu0 0
    %2742 = vmatpush1.bf16.msra.mxu0 0
    %2743 = vmatprep.subr.bf16.mxu0 0
    %2744 = vmatpush1.bf16.msra.mxu0 0
    %2745 = vmatprep.subr.bf16.mxu0 0
    %2746 = vmatpush1.bf16.msra.mxu0 0
    %2747 = vmatprep.mubr.bf16.mxu0 0
    %2748 = vmatmul.mubr.bf16.gmra.mrb[0].mxu0 %v2710
    %v2749 = vpop.f32.mrb[0].mxu0
    %v2750 = vadd.f32 0.0, %v2749
    %v2751 = vpop.f32.mrb[0].mxu0
    %v2752 = vpop.f32.mrb[0].mxu0
    %v2753 = vadd.f32 0.0, %v2752
    %v2754 = vpop.f32.mrb[0].mxu0
    %2755 = vmatprep.mubr.bf16.mxu0 0
    %2756 = vmatmul.mubr.bf16.gmra.mrb[0].mxu0 %v2713
    %v2757 = vpop.f32.mrb[0].mxu0
    %v2758 = vadd.f32 0.0, %v2757
    %v2759 = vpop.f32.mrb[0].mxu0
    %v2760 = vpop.f32.mrb[0].mxu0
    %v2761 = vadd.f32 0.0, %v2760
    %v2762 = vpop.f32.mrb[0].mxu0
    %2763 = vdwg.mxu0
    %v2764 = vadd.f32 %v2672, %v2750
    %v2765 = vadd.f32 %v2673, %v2753
    %v2766 = vadd.f32 %v2674, %v2758
    %v2767 = vadd.f32 %v2675, %v2761
    %vm2768 = vmand %vm2393, %vm2396
    %v2769 = vsel %vm2768, 1, 0
    %vm2770 = vcmp.eq.s32.totalorder %v2769, 1
    %v2771 = vsel %vm2770, %v2399, 0.0
    %v2772 = vsel %vm2770, %v2401, 0.0
    %v2773 = vpack.c.bf16 %v2772, %v2771
    %s2774 = scalar_lea.vmem [#allocation7], 64
    %v2775 = vld [vmem:[%s2774] sm:$0xf]
    %v2776 = vld [vmem:[%s2774 + $0x4] sm:$0xf]
    %v2777 = vld [vmem:[%s2774 + $0x8] sm:$0xf]
    %v2778 = vld [vmem:[%s2774 + $0xc] sm:$0xf]
    %v2783 = vunpack.c.l.b16 %v2775
    %v2784 = vunpack.c.l.b16 %v2776
    %v2785 = vunpack.c.l.b16 %v2777
    %v2786 = vunpack.c.l.b16 %v2778
    %v2787 = vpack.c.b16 %v2784, %v2783
    %v2788 = vpack.c.b16 %v2786, %v2785
    %v2790 = vsel %vm219, %v2787, 0
    %v2793 = vsel %vm219, %v2788, 0
    %2795 = vmatprep.subr.bf16.mxu0 0
    %2796 = vmatpush1.bf16.msra.mxu0 %v2773
    %2797 = vmatprep.subr.bf16.mxu0 0
    %2798 = vmatpush1.bf16.msra.mxu0 0
    %2799 = vmatprep.subr.bf16.mxu0 0
    %2800 = vmatpush1.bf16.msra.mxu0 0
    %2801 = vmatprep.subr.bf16.mxu0 0
    %2802 = vmatpush1.bf16.msra.mxu0 0
    %2803 = vmatprep.subr.bf16.mxu0 0
    %2804 = vmatpush1.bf16.msra.mxu0 0
    %2805 = vmatprep.subr.bf16.mxu0 0
    %2806 = vmatpush1.bf16.msra.mxu0 0
    %2807 = vmatprep.subr.bf16.mxu0 0
    %2808 = vmatpush1.bf16.msra.mxu0 0
    %2809 = vmatprep.subr.bf16.mxu0 0
    %2810 = vmatpush1.bf16.msra.mxu0 0
    %2811 = vmatprep.subr.bf16.mxu0 0
    %2812 = vmatpush1.bf16.msra.mxu0 0
    %2813 = vmatprep.subr.bf16.mxu0 0
    %2814 = vmatpush1.bf16.msra.mxu0 0
    %2815 = vmatprep.subr.bf16.mxu0 0
    %2816 = vmatpush1.bf16.msra.mxu0 0
    %2817 = vmatprep.subr.bf16.mxu0 0
    %2818 = vmatpush1.bf16.msra.mxu0 0
    %2819 = vmatprep.subr.bf16.mxu0 0
    %2820 = vmatpush1.bf16.msra.mxu0 0
    %2821 = vmatprep.subr.bf16.mxu0 0
    %2822 = vmatpush1.bf16.msra.mxu0 0
    %2823 = vmatprep.subr.bf16.mxu0 0
    %2824 = vmatpush1.bf16.msra.mxu0 0
    %2825 = vmatprep.subr.bf16.mxu0 0
    %2826 = vmatpush1.bf16.msra.mxu0 0
    %2827 = vmatprep.mubr.bf16.mxu0 0
    %2828 = vmatmul.mubr.bf16.gmra.mrb[0].mxu0 %v2790
    %v2829 = vpop.f32.mrb[0].mxu0
    %v2830 = vadd.f32 0.0, %v2829
    %v2831 = vpop.f32.mrb[0].mxu0
    %v2832 = vpop.f32.mrb[0].mxu0
    %v2833 = vadd.f32 0.0, %v2832
    %v2834 = vpop.f32.mrb[0].mxu0
    %2835 = vmatprep.mubr.bf16.mxu0 0
    %2836 = vmatmul.mubr.bf16.gmra.mrb[0].mxu0 %v2793
    %v2837 = vpop.f32.mrb[0].mxu0
    %v2838 = vadd.f32 0.0, %v2837
    %v2839 = vpop.f32.mrb[0].mxu0
    %v2840 = vpop.f32.mrb[0].mxu0
    %v2841 = vadd.f32 0.0, %v2840
    %v2842 = vpop.f32.mrb[0].mxu0
    %2843 = vdwg.mxu0
    %v2844 = vadd.f32 %v2764, %v2830
    %v2845 = vadd.f32 %v2765, %v2833
    %v2846 = vadd.f32 %v2766, %v2838
    %v2847 = vadd.f32 %v2767, %v2841
    %v2848 = vld [vmem:[#allocation2 + $0x8] sm:$0xff]
    %v2849 = vld [vmem:[#allocation2 + $0x10] sm:$0xff]
    %v2850 = vld [vmem:[#allocation2 + $0x38] sm:$0xff]
    %v2851 = vld [vmem:[#allocation2 + $0x40] sm:$0xff]
    %vm2852 = vmand %vm2393, %vm2397
    %v2853 = vsel %vm2852, 1, 0
    %vm2854 = vcmp.eq.s32.totalorder %v2853, 1
    %2859 = vrot.lane.b32.xlu0 %v2848, 127
    %v2860 = vpop.permute.xlu0 %2859
    %2861 = vrot.lane.b32.xlu0 %v2849, 127
    %v2862 = vpop.permute.xlu0 %2861
    %2863 = vrot.lane.b32.xlu0 %v2850, 127
    %v2864 = vpop.permute.xlu0 %2863
    %2865 = vrot.lane.b32.xlu0 %v2851, 127
    %v2866 = vpop.permute.xlu0 %2865
    %v2867 = vsel %vm934, %v2860, %v2862
    %v2868 = vsel %vm934, %v2864, %v2866
    %v2871 = vsel %vm2854, %v2867, 0.0
    %v2872 = vsel %vm2854, %v2868, 0.0
    %v2873 = vpack.c.bf16 %v2872, %v2871
    %s2874 = scalar_lea.vmem [#allocation7], 80
    %v2875 = vld [vmem:[%s2874] sm:$0xf]
    %v2876 = vld [vmem:[%s2874 + $0x4] sm:$0xf]
    %v2877 = vld [vmem:[%s2874 + $0x8] sm:$0xf]
    %v2878 = vld [vmem:[%s2874 + $0xc] sm:$0xf]
    %v2883 = vunpack.c.l.b16 %v2875
    %v2884 = vunpack.c.l.b16 %v2876
    %v2885 = vunpack.c.l.b16 %v2877
    %v2886 = vunpack.c.l.b16 %v2878
    %v2887 = vpack.c.b16 %v2884, %v2883
    %v2888 = vpack.c.b16 %v2886, %v2885
    %v2890 = vsel %vm219, %v2887, 0
    %v2893 = vsel %vm219, %v2888, 0
    %2895 = vmatprep.subr.bf16.mxu0 0
    %2896 = vmatpush1.bf16.msra.mxu0 %v2873
    %2897 = vmatprep.subr.bf16.mxu0 0
    %2898 = vmatpush1.bf16.msra.mxu0 0
    %2899 = vmatprep.subr.bf16.mxu0 0
    %2900 = vmatpush1.bf16.msra.mxu0 0
    %2901 = vmatprep.subr.bf16.mxu0 0
    %2902 = vmatpush1.bf16.msra.mxu0 0
    %2903 = vmatprep.subr.bf16.mxu0 0
    %2904 = vmatpush1.bf16.msra.mxu0 0
    %2905 = vmatprep.subr.bf16.mxu0 0
    %2906 = vmatpush1.bf16.msra.mxu0 0
    %2907 = vmatprep.subr.bf16.mxu0 0
    %2908 = vmatpush1.bf16.msra.mxu0 0
    %2909 = vmatprep.subr.bf16.mxu0 0
    %2910 = vmatpush1.bf16.msra.mxu0 0
    %2911 = vmatprep.subr.bf16.mxu0 0
    %2912 = vmatpush1.bf16.msra.mxu0 0
    %2913 = vmatprep.subr.bf16.mxu0 0
    %2914 = vmatpush1.bf16.msra.mxu0 0
    %2915 = vmatprep.subr.bf16.mxu0 0
    %2916 = vmatpush1.bf16.msra.mxu0 0
    %2917 = vmatprep.subr.bf16.mxu0 0
    %2918 = vmatpush1.bf16.msra.mxu0 0
    %2919 = vmatprep.subr.bf16.mxu0 0
    %2920 = vmatpush1.bf16.msra.mxu0 0
    %2921 = vmatprep.subr.bf16.mxu0 0
    %2922 = vmatpush1.bf16.msra.mxu0 0
    %2923 = vmatprep.subr.bf16.mxu0 0
    %2924 = vmatpush1.bf16.msra.mxu0 0
    %2925 = vmatprep.subr.bf16.mxu0 0
    %2926 = vmatpush1.bf16.msra.mxu0 0
    %2927 = vmatprep.mubr.bf16.mxu0 0
    %2928 = vmatmul.mubr.bf16.gmra.mrb[0].mxu0 %v2890
    %v2929 = vpop.f32.mrb[0].mxu0
    %v2930 = vadd.f32 0.0, %v2929
    %v2931 = vpop.f32.mrb[0].mxu0
    %v2932 = vpop.f32.mrb[0].mxu0
    %v2933 = vadd.f32 0.0, %v2932
    %v2934 = vpop.f32.mrb[0].mxu0
    %2935 = vmatprep.mubr.bf16.mxu0 0
    %2936 = vmatmul.mubr.bf16.gmra.mrb[0].mxu0 %v2893
    %v2937 = vpop.f32.mrb[0].mxu0
    %v2938 = vadd.f32 0.0, %v2937
    %v2939 = vpop.f32.mrb[0].mxu0
    %v2940 = vpop.f32.mrb[0].mxu0
    %v2941 = vadd.f32 0.0, %v2940
    %v2942 = vpop.f32.mrb[0].mxu0
    %2943 = vdwg.mxu0
    %v2944 = vadd.f32 %v2844, %v2930
    %v2945 = vadd.f32 %v2845, %v2933
    %v2946 = vadd.f32 %v2846, %v2938
    %v2947 = vadd.f32 %v2847, %v2941
    %vm2948 = vmand %vm2394, %vm2395
    %v2949 = vsel %vm2948, 1, 0
    %vm2950 = vcmp.eq.s32.totalorder %v2949, 1
    %2951 = vrot.lane.b32.xlu0 %v2848, 121
    %v2952 = vpop.permute.xlu0 %2951
    %2953 = vrot.lane.b32.xlu0 %v2849, 121
    %v2954 = vpop.permute.xlu0 %2953
    %2955 = vrot.lane.b32.xlu0 %v2850, 121
    %v2956 = vpop.permute.xlu0 %2955
    %2957 = vrot.lane.b32.xlu0 %v2851, 121
    %v2958 = vpop.permute.xlu0 %2957
    %vm2959 = vcmask 990208
    %v2960 = vsel %vm2959, %v2952, %v2954
    %v2961 = vsel %vm2959, %v2956, %v2958
    %v2964 = vsel %vm2950, %v2960, 0.0
    %v2965 = vsel %vm2950, %v2961, 0.0
    %v2966 = vpack.c.bf16 %v2965, %v2964
    %s2967 = scalar_lea.vmem [#allocation7], 96
    %v2968 = vld [vmem:[%s2967] sm:$0xf]
    %v2969 = vld [vmem:[%s2967 + $0x4] sm:$0xf]
    %v2970 = vld [vmem:[%s2967 + $0x8] sm:$0xf]
    %v2971 = vld [vmem:[%s2967 + $0xc] sm:$0xf]
    %v2976 = vunpack.c.l.b16 %v2968
    %v2977 = vunpack.c.l.b16 %v2969
    %v2978 = vunpack.c.l.b16 %v2970
    %v2979 = vunpack.c.l.b16 %v2971
    %v2980 = vpack.c.b16 %v2977, %v2976
    %v2981 = vpack.c.b16 %v2979, %v2978
    %v2983 = vsel %vm219, %v2980, 0
    %v2986 = vsel %vm219, %v2981, 0
    %2988 = vmatprep.subr.bf16.mxu0 0
    %2989 = vmatpush1.bf16.msra.mxu0 %v2966
    %2990 = vmatprep.subr.bf16.mxu0 0
    %2991 = vmatpush1.bf16.msra.mxu0 0
    %2992 = vmatprep.subr.bf16.mxu0 0
    %2993 = vmatpush1.bf16.msra.mxu0 0
    %2994 = vmatprep.subr.bf16.mxu0 0
    %2995 = vmatpush1.bf16.msra.mxu0 0
    %2996 = vmatprep.subr.bf16.mxu0 0
    %2997 = vmatpush1.bf16.msra.mxu0 0
    %2998 = vmatprep.subr.bf16.mxu0 0
    %2999 = vmatpush1.bf16.msra.mxu0 0
    %3000 = vmatprep.subr.bf16.mxu0 0
    %3001 = vmatpush1.bf16.msra.mxu0 0
    %3002 = vmatprep.subr.bf16.mxu0 0
    %3003 = vmatpush1.bf16.msra.mxu0 0
    %3004 = vmatprep.subr.bf16.mxu0 0
    %3005 = vmatpush1.bf16.msra.mxu0 0
    %3006 = vmatprep.subr.bf16.mxu0 0
    %3007 = vmatpush1.bf16.msra.mxu0 0
    %3008 = vmatprep.subr.bf16.mxu0 0
    %3009 = vmatpush1.bf16.msra.mxu0 0
    %3010 = vmatprep.subr.bf16.mxu0 0
    %3011 = vmatpush1.bf16.msra.mxu0 0
    %3012 = vmatprep.subr.bf16.mxu0 0
    %3013 = vmatpush1.bf16.msra.mxu0 0
    %3014 = vmatprep.subr.bf16.mxu0 0
    %3015 = vmatpush1.bf16.msra.mxu0 0
    %3016 = vmatprep.subr.bf16.mxu0 0
    %3017 = vmatpush1.bf16.msra.mxu0 0
    %3018 = vmatprep.subr.bf16.mxu0 0
    %3019 = vmatpush1.bf16.msra.mxu0 0
    %3020 = vmatprep.mubr.bf16.mxu0 0
    %3021 = vmatmul.mubr.bf16.gmra.mrb[0].mxu0 %v2983
    %v3022 = vpop.f32.mrb[0].mxu0
    %v3023 = vadd.f32 0.0, %v3022
    %v3024 = vpop.f32.mrb[0].mxu0
    %v3025 = vpop.f32.mrb[0].mxu0
    %v3026 = vadd.f32 0.0, %v3025
    %v3027 = vpop.f32.mrb[0].mxu0
    %3028 = vmatprep.mubr.bf16.mxu0 0
    %3029 = vmatmul.mubr.bf16.gmra.mrb[0].mxu0 %v2986
    %v3030 = vpop.f32.mrb[0].mxu0
    %v3031 = vadd.f32 0.0, %v3030
    %v3032 = vpop.f32.mrb[0].mxu0
    %v3033 = vpop.f32.mrb[0].mxu0
    %v3034 = vadd.f32 0.0, %v3033
    %v3035 = vpop.f32.mrb[0].mxu0
    %3036 = vdwg.mxu0
    %v3037 = vadd.f32 %v2944, %v3023
    %v3038 = vadd.f32 %v2945, %v3026
    %v3039 = vadd.f32 %v2946, %v3031
    %v3040 = vadd.f32 %v2947, %v3034
    %vm3041 = vmand %vm2394, %vm2396
    %v3042 = vsel %vm3041, 1, 0
    %vm3043 = vcmp.eq.s32.totalorder %v3042, 1
    %3044 = vrot.lane.b32.xlu0 %v2848, 120
    %v3045 = vpop.permute.xlu0 %3044
    %3046 = vrot.lane.b32.xlu0 %v2849, 120
    %v3047 = vpop.permute.xlu0 %3046
    %3048 = vrot.lane.b32.xlu0 %v2850, 120
    %v3049 = vpop.permute.xlu0 %3048
    %3050 = vrot.lane.b32.xlu0 %v2851, 120
    %v3051 = vpop.permute.xlu0 %3050
    %vm3052 = vcmask 982016
    %v3053 = vsel %vm3052, %v3045, %v3047
    %v3054 = vsel %vm3052, %v3049, %v3051
    %v3057 = vsel %vm3043, %v3053, 0.0
    %v3058 = vsel %vm3043, %v3054, 0.0
    %v3059 = vpack.c.bf16 %v3058, %v3057
    %s3060 = scalar_lea.vmem [#allocation7], 112
    %v3061 = vld [vmem:[%s3060] sm:$0xf]
    %v3062 = vld [vmem:[%s3060 + $0x4] sm:$0xf]
    %v3063 = vld [vmem:[%s3060 + $0x8] sm:$0xf]
    %v3064 = vld [vmem:[%s3060 + $0xc] sm:$0xf]
    %v3069 = vunpack.c.l.b16 %v3061
    %v3070 = vunpack.c.l.b16 %v3062
    %v3071 = vunpack.c.l.b16 %v3063
    %v3072 = vunpack.c.l.b16 %v3064
    %v3073 = vpack.c.b16 %v3070, %v3069
    %v3074 = vpack.c.b16 %v3072, %v3071
    %v3076 = vsel %vm219, %v3073, 0
    %v3079 = vsel %vm219, %v3074, 0
    %3081 = vmatprep.subr.bf16.mxu0 0
    %3082 = vmatpush1.bf16.msra.mxu0 %v3059
    %3083 = vmatprep.subr.bf16.mxu0 0
    %3084 = vmatpush1.bf16.msra.mxu0 0
    %3085 = vmatprep.subr.bf16.mxu0 0
    %3086 = vmatpush1.bf16.msra.mxu0 0
    %3087 = vmatprep.subr.bf16.mxu0 0
    %3088 = vmatpush1.bf16.msra.mxu0 0
    %3089 = vmatprep.subr.bf16.mxu0 0
    %3090 = vmatpush1.bf16.msra.mxu0 0
    %3091 = vmatprep.subr.bf16.mxu0 0
    %3092 = vmatpush1.bf16.msra.mxu0 0
    %3093 = vmatprep.subr.bf16.mxu0 0
    %3094 = vmatpush1.bf16.msra.mxu0 0
    %3095 = vmatprep.subr.bf16.mxu0 0
    %3096 = vmatpush1.bf16.msra.mxu0 0
    %3097 = vmatprep.subr.bf16.mxu0 0
    %3098 = vmatpush1.bf16.msra.mxu0 0
    %3099 = vmatprep.subr.bf16.mxu0 0
    %3100 = vmatpush1.bf16.msra.mxu0 0
    %3101 = vmatprep.subr.bf16.mxu0 0
    %3102 = vmatpush1.bf16.msra.mxu0 0
    %3103 = vmatprep.subr.bf16.mxu0 0
    %3104 = vmatpush1.bf16.msra.mxu0 0
    %3105 = vmatprep.subr.bf16.mxu0 0
    %3106 = vmatpush1.bf16.msra.mxu0 0
    %3107 = vmatprep.subr.bf16.mxu0 0
    %3108 = vmatpush1.bf16.msra.mxu0 0
    %3109 = vmatprep.subr.bf16.mxu0 0
    %3110 = vmatpush1.bf16.msra.mxu0 0
    %3111 = vmatprep.subr.bf16.mxu0 0
    %3112 = vmatpush1.bf16.msra.mxu0 0
    %3113 = vmatprep.mubr.bf16.mxu0 0
    %3114 = vmatmul.mubr.bf16.gmra.mrb[0].mxu0 %v3076
    %v3115 = vpop.f32.mrb[0].mxu0
    %v3116 = vadd.f32 0.0, %v3115
    %v3117 = vpop.f32.mrb[0].mxu0
    %v3118 = vpop.f32.mrb[0].mxu0
    %v3119 = vadd.f32 0.0, %v3118
    %v3120 = vpop.f32.mrb[0].mxu0
    %3121 = vmatprep.mubr.bf16.mxu0 0
    %3122 = vmatmul.mubr.bf16.gmra.mrb[0].mxu0 %v3079
    %v3123 = vpop.f32.mrb[0].mxu0
    %v3124 = vadd.f32 0.0, %v3123
    %v3125 = vpop.f32.mrb[0].mxu0
    %v3126 = vpop.f32.mrb[0].mxu0
    %v3127 = vadd.f32 0.0, %v3126
    %v3128 = vpop.f32.mrb[0].mxu0
    %3129 = vdwg.mxu0
    %v3130 = vadd.f32 %v3037, %v3116
    %v3131 = vadd.f32 %v3038, %v3119
    %v3132 = vadd.f32 %v3039, %v3124
    %v3133 = vadd.f32 %v3040, %v3127
    %vm3134 = vmand %vm2394, %vm2397
    %v3135 = vsel %vm3134, 1, 0
    %vm3136 = vcmp.eq.s32.totalorder %v3135, 1
    %3137 = vrot.lane.b32.xlu0 %v2848, 119
    %v3138 = vpop.permute.xlu0 %3137
    %3139 = vrot.lane.b32.xlu0 %v2849, 119
    %v3140 = vpop.permute.xlu0 %3139
    %3141 = vrot.lane.b32.xlu0 %v2850, 119
    %v3142 = vpop.permute.xlu0 %3141
    %3143 = vrot.lane.b32.xlu0 %v2851, 119
    %v3144 = vpop.permute.xlu0 %3143
    %vm3145 = vcmask 973824
    %v3146 = vsel %vm3145, %v3138, %v3140
    %v3147 = vsel %vm3145, %v3142, %v3144
    %v3150 = vsel %vm3136, %v3146, 0.0
    %v3151 = vsel %vm3136, %v3147, 0.0
    %v3152 = vpack.c.bf16 %v3151, %v3150
    %s3153 = scalar_lea.vmem [#allocation7], 128
    %v3154 = vld [vmem:[%s3153] sm:$0xf]
    %v3155 = vld [vmem:[%s3153 + $0x4] sm:$0xf]
    %v3156 = vld [vmem:[%s3153 + $0x8] sm:$0xf]
    %v3157 = vld [vmem:[%s3153 + $0xc] sm:$0xf]
    %v3162 = vunpack.c.l.b16 %v3154
    %v3163 = vunpack.c.l.b16 %v3155
    %v3164 = vunpack.c.l.b16 %v3156
    %v3165 = vunpack.c.l.b16 %v3157
    %v3166 = vpack.c.b16 %v3163, %v3162
    %v3167 = vpack.c.b16 %v3165, %v3164
    %v3169 = vsel %vm219, %v3166, 0
    %v3172 = vsel %vm219, %v3167, 0
    %3174 = vmatprep.subr.bf16.mxu0 0
    %3175 = vmatpush1.bf16.msra.mxu0 %v3152
    %3176 = vmatprep.subr.bf16.mxu0 0
    %3177 = vmatpush1.bf16.msra.mxu0 0
    %3178 = vmatprep.subr.bf16.mxu0 0
    %3179 = vmatpush1.bf16.msra.mxu0 0
    %3180 = vmatprep.subr.bf16.mxu0 0
    %3181 = vmatpush1.bf16.msra.mxu0 0
    %3182 = vmatprep.subr.bf16.mxu0 0
    %3183 = vmatpush1.bf16.msra.mxu0 0
    %3184 = vmatprep.subr.bf16.mxu0 0
    %3185 = vmatpush1.bf16.msra.mxu0 0
    %3186 = vmatprep.subr.bf16.mxu0 0
    %3187 = vmatpush1.bf16.msra.mxu0 0
    %3188 = vmatprep.subr.bf16.mxu0 0
    %3189 = vmatpush1.bf16.msra.mxu0 0
    %3190 = vmatprep.subr.bf16.mxu0 0
    %3191 = vmatpush1.bf16.msra.mxu0 0
    %3192 = vmatprep.subr.bf16.mxu0 0
    %3193 = vmatpush1.bf16.msra.mxu0 0
    %3194 = vmatprep.subr.bf16.mxu0 0
    %3195 = vmatpush1.bf16.msra.mxu0 0
    %3196 = vmatprep.subr.bf16.mxu0 0
    %3197 = vmatpush1.bf16.msra.mxu0 0
    %3198 = vmatprep.subr.bf16.mxu0 0
    %3199 = vmatpush1.bf16.msra.mxu0 0
    %3200 = vmatprep.subr.bf16.mxu0 0
    %3201 = vmatpush1.bf16.msra.mxu0 0
    %3202 = vmatprep.subr.bf16.mxu0 0
    %3203 = vmatpush1.bf16.msra.mxu0 0
    %3204 = vmatprep.subr.bf16.mxu0 0
    %3205 = vmatpush1.bf16.msra.mxu0 0
    %3206 = vmatprep.mubr.bf16.mxu0 0
    %3207 = vmatmul.mubr.bf16.gmra.mrb[0].mxu0 %v3169
    %v3208 = vpop.f32.mrb[0].mxu0
    %v3209 = vadd.f32 0.0, %v3208
    %v3210 = vpop.f32.mrb[0].mxu0
    %v3211 = vpop.f32.mrb[0].mxu0
    %v3212 = vadd.f32 0.0, %v3211
    %v3213 = vpop.f32.mrb[0].mxu0
    %3214 = vmatprep.mubr.bf16.mxu0 0
    %3215 = vmatmul.mubr.bf16.gmra.mrb[0].mxu0 %v3172
    %v3216 = vpop.f32.mrb[0].mxu0
    %v3217 = vadd.f32 0.0, %v3216
    %v3218 = vpop.f32.mrb[0].mxu0
    %v3219 = vpop.f32.mrb[0].mxu0
    %v3220 = vadd.f32 0.0, %v3219
    %v3221 = vpop.f32.mrb[0].mxu0
    %3222 = vdwg.mxu0
    %v3223 = vadd.f32 %v3130, %v3209
    %v3224 = vadd.f32 %v3131, %v3212
    %v3225 = vadd.f32 %v3132, %v3217
    %v3226 = vadd.f32 %v3133, %v3220
    %v3227 = vld [vmem:[#allocation8] sm:$0xff]
    %v3228 = vld [vmem:[#allocation8 + $0x8] sm:$0xff]
    %v3229 = vld [vmem:[#allocation8 + $0x10] sm:$0xff]
    %v3230 = vld [vmem:[#allocation8 + $0x18] sm:$0xff]
    %3232 = vset.pattern.permute.xlu0 0
    %3233 = vperm.xlu0 %3232, %v3227
    %v3234 = vpop.permute.xlu0 %3233
    %3237 = vset.pattern.permute.xlu0 0
    %3238 = vperm.xlu0 %3237, %v3228
    %v3239 = vpop.permute.xlu0 %3238
    %3242 = vset.pattern.permute.xlu0 0
    %3243 = vperm.xlu0 %3242, %v3229
    %v3244 = vpop.permute.xlu0 %3243
    %3247 = vset.pattern.permute.xlu0 0
    %3248 = vperm.xlu0 %3247, %v3230
    %v3249 = vpop.permute.xlu0 %3248
    %v3251 = vadd.f32 %v3223, %v3234
    %v3252 = vadd.f32 %v3224, %v3239
    %v3253 = vadd.f32 %v3225, %v3244
    %v3254 = vadd.f32 %v3226, %v3249
    %v3255 = vmax.f32 %v3251, 0.0
    %v3256 = vmax.f32 %v3252, 0.0
    %v3257 = vmax.f32 %v3253, 0.0
    %v3258 = vmax.f32 %v3254, 0.0
    %3259 = vst.msk [vmem:[%s10] sm:$0xff] %vm2375, %v3255
    %3260 = vst.msk [vmem:[%s10 + $0x8] sm:$0xff] %vm2375, %v3256
    %3261 = vst.msk [vmem:[%s10 + $0x10] sm:$0xff] %vm2375, %v3257
    %3262 = vst.msk [vmem:[%s10 + $0x18] sm:$0xff] %vm2375, %v3258
    %3267 = vrot.lane.b32.xlu0 %v3255, 64
    %v3268 = vpop.permute.xlu0 %3267
    %3269 = vrot.lane.b32.xlu0 %v3256, 64
    %v3270 = vpop.permute.xlu0 %3269
    %3271 = vrot.lane.b32.xlu0 %v3257, 64
    %v3272 = vpop.permute.xlu0 %3271
    %3273 = vrot.lane.b32.xlu0 %v3258, 64
    %v3274 = vpop.permute.xlu0 %3273
    %s3279 = scalar_lea.vmem %s10, 32
    %3280 = vst.msk [vmem:[%s3279] sm:$0xff] %vm2375, %v3268
    %3281 = vst.msk [vmem:[%s3279 + $0x8] sm:$0xff] %vm2375, %v3270
    %3282 = vst.msk [vmem:[%s3279 + $0x10] sm:$0xff] %vm2375, %v3272
    %3283 = vst.msk [vmem:[%s3279 + $0x18] sm:$0xff] %vm2375, %v3274
    %3284 = vst [vmem:[#allocation2 + $0x10] sm:$0xff] 0.0
    %3285 = vst [vmem:[#allocation2 + $0x40] sm:$0xff] 0.0
    %3286 = vst [vmem:[#allocation2 + $0x70] sm:$0xff] 0.0
    %3287 = vst [vmem:[#allocation2 + $0xa0] sm:$0xff] 0.0
    %3288 = vst [vmem:[#allocation2 + $0x8] sm:$0xff] %v3255
    %3289 = vst [vmem:[#allocation2 + $0x38] sm:$0xff] %v3256
    %3290 = vst [vmem:[#allocation2 + $0x68] sm:$0xff] %v3257
    %3291 = vst [vmem:[#allocation2 + $0x98] sm:$0xff] %v3258
    %v3292 = vld [vmem:[#allocation2 + $0x8] sm:$0xff]
    %v3293 = vld [vmem:[#allocation2 + $0x10] sm:$0xff]
    %v3294 = vld [vmem:[#allocation2 + $0x38] sm:$0xff]
    %v3295 = vld [vmem:[#allocation2 + $0x40] sm:$0xff]
    %v3296 = vld [vmem:[#allocation2 + $0x68] sm:$0xff]
    %v3297 = vld [vmem:[#allocation2 + $0x70] sm:$0xff]
    %v3298 = vld [vmem:[#allocation2 + $0x98] sm:$0xff]
    %v3299 = vld [vmem:[#allocation2 + $0xa0] sm:$0xff]
    %3300 = vrot.lane.b32.xlu0 %v3255, 1
    %v3301 = vpop.permute.xlu0 %3300
    %3302 = vrot.lane.b32.xlu0 %v3256, 1
    %v3303 = vpop.permute.xlu0 %3302
    %3304 = vrot.lane.b32.xlu0 %v3257, 1
    %v3305 = vpop.permute.xlu0 %3304
    %3306 = vrot.lane.b32.xlu0 %v3258, 1
    %v3307 = vpop.permute.xlu0 %3306
    %vm3312 = vcmp.gt.f32.partialorder %v3292, %v3301
    %vm3313 = vcmp.gt.f32.partialorder %v3293, %v3301
    %vm3314 = vcmp.gt.f32.partialorder %v3294, %v3303
    %vm3315 = vcmp.gt.f32.partialorder %v3295, %v3303
    %vm3316 = vcmp.gt.f32.partialorder %v3296, %v3305
    %vm3317 = vcmp.gt.f32.partialorder %v3297, %v3305
    %vm3318 = vcmp.gt.f32.partialorder %v3298, %v3307
    %vm3319 = vcmp.gt.f32.partialorder %v3299, %v3307
    %v3320 = vsel %vm3312, %v3292, %v3301
    %v3321 = vsel %vm3313, %v3293, %v3301
    %v3322 = vsel %vm3314, %v3294, %v3303
    %v3323 = vsel %vm3315, %v3295, %v3303
    %v3324 = vsel %vm3316, %v3296, %v3305
    %v3325 = vsel %vm3317, %v3297, %v3305
    %v3326 = vsel %vm3318, %v3298, %v3307
    %v3327 = vsel %vm3319, %v3299, %v3307
    %v3328 = vsel %vm3312, 1.0, 0.0
    %v3329 = vsel %vm3313, 1.0, 0.0
    %v3330 = vsel %vm3314, 1.0, 0.0
    %v3331 = vsel %vm3315, 1.0, 0.0
    %v3332 = vsel %vm3316, 1.0, 0.0
    %v3333 = vsel %vm3317, 1.0, 0.0
    %v3334 = vsel %vm3318, 1.0, 0.0
    %v3335 = vsel %vm3319, 1.0, 0.0
    %3344 = vrot.lane.b32.xlu0 %v3320, 7
    %v3345 = vpop.permute.xlu0 %3344
    %3346 = vrot.lane.b32.xlu0 %v3321, 7
    %v3347 = vpop.permute.xlu0 %3346
    %3348 = vrot.lane.b32.xlu0 %v3322, 7
    %v3349 = vpop.permute.xlu0 %3348
    %3350 = vrot.lane.b32.xlu0 %v3323, 7
    %v3351 = vpop.permute.xlu0 %3350
    %3352 = vrot.lane.b32.xlu0 %v3324, 7
    %v3353 = vpop.permute.xlu0 %3352
    %3354 = vrot.lane.b32.xlu0 %v3325, 7
    %v3355 = vpop.permute.xlu0 %3354
    %3356 = vrot.lane.b32.xlu0 %v3326, 7
    %v3357 = vpop.permute.xlu0 %3356
    %3358 = vrot.lane.b32.xlu0 %v3327, 7
    %v3359 = vpop.permute.xlu0 %3358
    %v3360 = vsel %vm2594, %v3345, %v3347
    %v3361 = vsel %vm2594, %v3349, %v3351
    %v3362 = vsel %vm2594, %v3353, %v3355
    %v3363 = vsel %vm2594, %v3357, %v3359
    %vm3372 = vcmp.gt.f32.partialorder %v3292, %v3345
    %vm3373 = vcmp.gt.f32.partialorder %v3293, %v3360
    %vm3374 = vcmp.gt.f32.partialorder %v3294, %v3349
    %vm3375 = vcmp.gt.f32.partialorder %v3295, %v3361
    %vm3376 = vcmp.gt.f32.partialorder %v3296, %v3353
    %vm3377 = vcmp.gt.f32.partialorder %v3297, %v3362
    %vm3378 = vcmp.gt.f32.partialorder %v3298, %v3357
    %vm3379 = vcmp.gt.f32.partialorder %v3299, %v3363
    %v3380 = vsel %vm3372, %v3292, %v3345
    %v3381 = vsel %vm3373, %v3293, %v3360
    %v3382 = vsel %vm3374, %v3294, %v3349
    %v3383 = vsel %vm3375, %v3295, %v3361
    %v3384 = vsel %vm3376, %v3296, %v3353
    %v3385 = vsel %vm3377, %v3297, %v3362
    %v3386 = vsel %vm3378, %v3298, %v3357
    %v3387 = vsel %vm3379, %v3299, %v3363
    %3396 = vrot.lane.b32.xlu0 %v3328, 7
    %v3397 = vpop.permute.xlu0 %3396
    %3398 = vrot.lane.b32.xlu0 %v3329, 7
    %v3399 = vpop.permute.xlu0 %3398
    %3400 = vrot.lane.b32.xlu0 %v3330, 7
    %v3401 = vpop.permute.xlu0 %3400
    %3402 = vrot.lane.b32.xlu0 %v3331, 7
    %v3403 = vpop.permute.xlu0 %3402
    %3404 = vrot.lane.b32.xlu0 %v3332, 7
    %v3405 = vpop.permute.xlu0 %3404
    %3406 = vrot.lane.b32.xlu0 %v3333, 7
    %v3407 = vpop.permute.xlu0 %3406
    %3408 = vrot.lane.b32.xlu0 %v3334, 7
    %v3409 = vpop.permute.xlu0 %3408
    %3410 = vrot.lane.b32.xlu0 %v3335, 7
    %v3411 = vpop.permute.xlu0 %3410
    %v3412 = vsel %vm2594, %v3397, %v3399
    %v3413 = vsel %vm2594, %v3401, %v3403
    %v3414 = vsel %vm2594, %v3405, %v3407
    %v3415 = vsel %vm2594, %v3409, %v3411
    %v3424 = vsel %vm3372, 8.0, %v3397
    %v3425 = vsel %vm3373, 8.0, %v3412
    %v3426 = vsel %vm3374, 8.0, %v3401
    %v3427 = vsel %vm3375, 8.0, %v3413
    %v3428 = vsel %vm3376, 8.0, %v3405
    %v3429 = vsel %vm3377, 8.0, %v3414
    %v3430 = vsel %vm3378, 8.0, %v3409
    %v3431 = vsel %vm3379, 8.0, %v3415
    %3440 = vrot.lane.b32.xlu0 %v3380, 1
    %v3441 = vpop.permute.xlu0 %3440
    %3442 = vrot.lane.b32.xlu0 %v3381, 1
    %v3443 = vpop.permute.xlu0 %3442
    %3444 = vrot.lane.b32.xlu0 %v3382, 1
    %v3445 = vpop.permute.xlu0 %3444
    %3446 = vrot.lane.b32.xlu0 %v3383, 1
    %v3447 = vpop.permute.xlu0 %3446
    %3448 = vrot.lane.b32.xlu0 %v3384, 1
    %v3449 = vpop.permute.xlu0 %3448
    %3450 = vrot.lane.b32.xlu0 %v3385, 1
    %v3451 = vpop.permute.xlu0 %3450
    %3452 = vrot.lane.b32.xlu0 %v3386, 1
    %v3453 = vpop.permute.xlu0 %3452
    %3454 = vrot.lane.b32.xlu0 %v3387, 1
    %v3455 = vpop.permute.xlu0 %3454
    %v3456 = vsel %vm631, %v3441, %v3443
    %v3457 = vsel %vm631, %v3445, %v3447
    %v3458 = vsel %vm631, %v3449, %v3451
    %v3459 = vsel %vm631, %v3453, %v3455
    %vm3468 = vcmp.gt.f32.partialorder %v3292, %v3441
    %vm3469 = vcmp.gt.f32.partialorder %v3293, %v3456
    %vm3470 = vcmp.gt.f32.partialorder %v3294, %v3445
    %vm3471 = vcmp.gt.f32.partialorder %v3295, %v3457
    %vm3472 = vcmp.gt.f32.partialorder %v3296, %v3449
    %vm3473 = vcmp.gt.f32.partialorder %v3297, %v3458
    %vm3474 = vcmp.gt.f32.partialorder %v3298, %v3453
    %vm3475 = vcmp.gt.f32.partialorder %v3299, %v3459
    %v3476 = vsel %vm3468, %v3292, %v3441
    %v3477 = vsel %vm3469, %v3293, %v3456
    %v3478 = vsel %vm3470, %v3294, %v3445
    %v3479 = vsel %vm3471, %v3295, %v3457
    %v3480 = vsel %vm3472, %v3296, %v3449
    %v3481 = vsel %vm3473, %v3297, %v3458
    %v3482 = vsel %vm3474, %v3298, %v3453
    %v3483 = vsel %vm3475, %v3299, %v3459
    %3492 = vrot.lane.b32.xlu0 %v3424, 1
    %v3493 = vpop.permute.xlu0 %3492
    %3494 = vrot.lane.b32.xlu0 %v3425, 1
    %v3495 = vpop.permute.xlu0 %3494
    %3496 = vrot.lane.b32.xlu0 %v3426, 1
    %v3497 = vpop.permute.xlu0 %3496
    %3498 = vrot.lane.b32.xlu0 %v3427, 1
    %v3499 = vpop.permute.xlu0 %3498
    %3500 = vrot.lane.b32.xlu0 %v3428, 1
    %v3501 = vpop.permute.xlu0 %3500
    %3502 = vrot.lane.b32.xlu0 %v3429, 1
    %v3503 = vpop.permute.xlu0 %3502
    %3504 = vrot.lane.b32.xlu0 %v3430, 1
    %v3505 = vpop.permute.xlu0 %3504
    %3506 = vrot.lane.b32.xlu0 %v3431, 1
    %v3507 = vpop.permute.xlu0 %3506
    %v3508 = vsel %vm631, %v3493, %v3495
    %v3509 = vsel %vm631, %v3497, %v3499
    %v3510 = vsel %vm631, %v3501, %v3503
    %v3511 = vsel %vm631, %v3505, %v3507
    %v3520 = vsel %vm3468, 9.0, %v3493
    %v3521 = vsel %vm3469, 9.0, %v3508
    %v3522 = vsel %vm3470, 9.0, %v3497
    %v3523 = vsel %vm3471, 9.0, %v3509
    %v3524 = vsel %vm3472, 9.0, %v3501
    %v3525 = vsel %vm3473, 9.0, %v3510
    %v3526 = vsel %vm3474, 9.0, %v3505
    %v3527 = vsel %vm3475, 9.0, %v3511
    %v3528 = vsub.s32 %v106, %v110
    %v3529 = vshll.u32 %v3528, 2
    %v3530 = vshra.s32 %v110, 2
    %v3531 = vshll.u32 %v3530, 4
    %v3532 = vadd.s32 %v3529, %v3531
    %v3533 = vand.u32 %v110, 3
    %v3534 = vshll.u32 %v3533, 1
    %v3535 = vadd.s32 %v3532, %v3534
    %vm3536 = vcmp.eq.s32.totalorder %v1916, %v3535
    %vm3537 = vcmp.eq.s32.totalorder %v1917, %v3535
    %vm3538 = vcmp.eq.s32.totalorder %v1918, %v3535
    %vm3539 = vcmp.eq.s32.totalorder %v1919, %v3535
    %vm3540 = vcmp.eq.s32.totalorder %v1920, %v3535
    %vm3541 = vcmp.eq.s32.totalorder %v1921, %v3535
    %vm3542 = vcmp.eq.s32.totalorder %v1922, %v3535
    %vm3543 = vcmp.eq.s32.totalorder %v1923, %v3535
    %vm3544 = vcmp.eq.s32.totalorder %v1924, %v3535
    %vm3545 = vcmp.eq.s32.totalorder %v1925, %v3535
    %vm3546 = vcmp.eq.s32.totalorder %v1926, %v3535
    %vm3547 = vcmp.eq.s32.totalorder %v1927, %v3535
    %vm3548 = vcmp.eq.s32.totalorder %v1928, %v3535
    %vm3549 = vcmp.eq.s32.totalorder %v1929, %v3535
    %vm3550 = vcmp.eq.s32.totalorder %v1930, %v3535
    %vm3551 = vcmp.eq.s32.totalorder %v1931, %v3535
    %v3552 = vsel %vm3536, 1, 0
    %v3553 = vsel %vm3537, 1, 0
    %v3554 = vsel %vm3538, 1, 0
    %v3555 = vsel %vm3539, 1, 0
    %v3556 = vsel %vm3540, 1, 0
    %v3557 = vsel %vm3541, 1, 0
    %v3558 = vsel %vm3542, 1, 0
    %v3559 = vsel %vm3543, 1, 0
    %v3560 = vsel %vm3544, 1, 0
    %v3561 = vsel %vm3545, 1, 0
    %v3562 = vsel %vm3546, 1, 0
    %v3563 = vsel %vm3547, 1, 0
    %v3564 = vsel %vm3548, 1, 0
    %v3565 = vsel %vm3549, 1, 0
    %v3566 = vsel %vm3550, 1, 0
    %v3567 = vsel %vm3551, 1, 0
    %v3568 = vcvt.s32.f32 %v3552
    %v3569 = vcvt.s32.f32 %v3553
    %v3570 = vcvt.s32.f32 %v3554
    %v3571 = vcvt.s32.f32 %v3555
    %v3572 = vcvt.s32.f32 %v3556
    %v3573 = vcvt.s32.f32 %v3557
    %v3574 = vcvt.s32.f32 %v3558
    %v3575 = vcvt.s32.f32 %v3559
    %v3576 = vcvt.s32.f32 %v3560
    %v3577 = vcvt.s32.f32 %v3561
    %v3578 = vcvt.s32.f32 %v3562
    %v3579 = vcvt.s32.f32 %v3563
    %v3580 = vcvt.s32.f32 %v3564
    %v3581 = vcvt.s32.f32 %v3565
    %v3582 = vcvt.s32.f32 %v3566
    %v3583 = vcvt.s32.f32 %v3567
    %v3584 = vpack.c.bf16 %v3569, %v3568
    %v3585 = vpack.c.bf16 %v3571, %v3570
    %v3586 = vpack.c.bf16 %v3573, %v3572
    %v3587 = vpack.c.bf16 %v3575, %v3574
    %v3588 = vpack.c.bf16 %v3577, %v3576
    %v3589 = vpack.c.bf16 %v3579, %v3578
    %v3590 = vpack.c.bf16 %v3581, %v3580
    %v3591 = vpack.c.bf16 %v3583, %v3582
    %v3592 = vpack.c.bf16 %v3478, %v3476
    %v3593 = vpack.c.bf16 %v3479, %v3477
    %v3594 = vpack.c.bf16 %v3482, %v3480
    %v3595 = vpack.c.bf16 %v3483, %v3481
    %v3596 = vpack.c.bf16 %v3522, %v3520
    %v3597 = vpack.c.bf16 %v3523, %v3521
    %v3598 = vpack.c.bf16 %v3526, %v3524
    %v3599 = vpack.c.bf16 %v3527, %v3525
    %3608 = vrot.lane.b32.xlu0 %v3592, 119
    %v3609 = vpop.permute.xlu0 %3608
    %3610 = vrot.lane.b32.xlu0 %v3593, 119
    %v3611 = vpop.permute.xlu0 %3610
    %3612 = vrot.lane.b32.xlu0 %v3594, 119
    %v3613 = vpop.permute.xlu0 %3612
    %3614 = vrot.lane.b32.xlu0 %v3595, 119
    %v3615 = vpop.permute.xlu0 %3614
    %3616 = vrot.lane.b32.xlu0 %v3596, 119
    %v3617 = vpop.permute.xlu0 %3616
    %3618 = vrot.lane.b32.xlu0 %v3597, 119
    %v3619 = vpop.permute.xlu0 %3618
    %3620 = vrot.lane.b32.xlu0 %v3598, 119
    %v3621 = vpop.permute.xlu0 %3620
    %3622 = vrot.lane.b32.xlu0 %v3599, 119
    %v3623 = vpop.permute.xlu0 %3622
    %vm3624 = vcmask 973824
    %v3625 = vsel %vm3624, %v3609, %v3611
    %v3626 = vsel %vm3624, %v3613, %v3615
    %v3627 = vsel %vm3624, %v3617, %v3619
    %v3628 = vsel %vm3624, %v3621, %v3623
    %3633 = vmatprep.subr.bf16.mxu0 0
    %3634 = vmatpush1.bf16.msra.mxu0 %v3584
    %3635 = vmatprep.subr.bf16.mxu0 0
    %3636 = vmatpush1.bf16.msra.mxu0 %v3585
    %3637 = vmatprep.subr.bf16.mxu0 0
    %3638 = vmatpush1.bf16.msra.mxu0 %v3586
    %3639 = vmatprep.subr.bf16.mxu0 0
    %3640 = vmatpush1.bf16.msra.mxu0 %v3587
    %3641 = vmatprep.subr.bf16.mxu0 0
    %3642 = vmatpush1.bf16.msra.mxu0 %v3588
    %3643 = vmatprep.subr.bf16.mxu0 0
    %3644 = vmatpush1.bf16.msra.mxu0 %v3589
    %3645 = vmatprep.subr.bf16.mxu0 0
    %3646 = vmatpush1.bf16.msra.mxu0 %v3590
    %3647 = vmatprep.subr.bf16.mxu0 0
    %3648 = vmatpush1.bf16.msra.mxu0 %v3591
    %3649 = vmatprep.subr.bf16.mxu0 0
    %3650 = vmatpush1.bf16.msra.mxu0 0
    %3651 = vmatprep.subr.bf16.mxu0 0
    %3652 = vmatpush1.bf16.msra.mxu0 0
    %3653 = vmatprep.subr.bf16.mxu0 0
    %3654 = vmatpush1.bf16.msra.mxu0 0
    %3655 = vmatprep.subr.bf16.mxu0 0
    %3656 = vmatpush1.bf16.msra.mxu0 0
    %3657 = vmatprep.subr.bf16.mxu0 0
    %3658 = vmatpush1.bf16.msra.mxu0 0
    %3659 = vmatprep.subr.bf16.mxu0 0
    %3660 = vmatpush1.bf16.msra.mxu0 0
    %3661 = vmatprep.subr.bf16.mxu0 0
    %3662 = vmatpush1.bf16.msra.mxu0 0
    %3663 = vmatprep.subr.bf16.mxu0 0
    %3664 = vmatpush1.bf16.msra.mxu0 0
    %3665 = vmatprep.mubr.bf16.mxu0 0
    %3666 = vmatmul.mubr.bf16.gmra.mrb[0].mxu0 %v3625
    %v3667 = vpop.f32.mrb[0].mxu0
    %v3668 = vadd.f32 0.0, %v3667
    %v3669 = vpop.f32.mrb[0].mxu0
    %v3670 = vpop.f32.mrb[0].mxu0
    %v3671 = vadd.f32 0.0, %v3670
    %v3672 = vpop.f32.mrb[0].mxu0
    %3673 = vmatprep.mubr.bf16.mxu0 0
    %3674 = vmatmul.mubr.bf16.gmra.mrb[0].mxu0 %v3626
    %v3675 = vpop.f32.mrb[0].mxu0
    %v3676 = vadd.f32 0.0, %v3675
    %v3677 = vpop.f32.mrb[0].mxu0
    %v3678 = vpop.f32.mrb[0].mxu0
    %v3679 = vadd.f32 0.0, %v3678
    %v3680 = vpop.f32.mrb[0].mxu0
    %3681 = vmatprep.mubr.bf16.mxu0 0
    %3682 = vmatmul.mubr.bf16.gmra.mrb[0].mxu0 %v3627
    %v3683 = vpop.f32.mrb[0].mxu0
    %v3684 = vadd.f32 0.0, %v3683
    %v3685 = vpop.f32.mrb[0].mxu0
    %v3686 = vpop.f32.mrb[0].mxu0
    %v3687 = vadd.f32 0.0, %v3686
    %v3688 = vpop.f32.mrb[0].mxu0
    %3689 = vmatprep.mubr.bf16.mxu0 0
    %3690 = vmatmul.mubr.bf16.gmra.mrb[0].mxu0 %v3628
    %v3691 = vpop.f32.mrb[0].mxu0
    %v3692 = vadd.f32 0.0, %v3691
    %v3693 = vpop.f32.mrb[0].mxu0
    %v3694 = vpop.f32.mrb[0].mxu0
    %v3695 = vadd.f32 0.0, %v3694
    %v3696 = vpop.f32.mrb[0].mxu0
    %3697 = vdwg.mxu0
    %v3698 = vadd.s32 %v3531, %v3534
    %v3699 = vadd.f32 %v3684, 0.5
    %v3700 = vadd.f32 %v3687, 0.5
    %v3701 = vadd.f32 %v3692, 0.5
    %v3702 = vadd.f32 %v3695, 0.5
    %v3703 = vcvt.f32.s32.to.zero.pseudo %v3699
    %v3704 = vcvt.f32.s32.to.zero.pseudo %v3700
    %v3705 = vcvt.f32.s32.to.zero.pseudo %v3701
    %v3706 = vcvt.f32.s32.to.zero.pseudo %v3702
    %v3707 = vadd.s32 %v3698, %v3703
    %v3708 = vadd.s32 %v3698, %v3704
    %v3709 = vadd.s32 %v3698, %v3705
    %v3710 = vadd.s32 %v3698, %v3706
    %3711 = vst.msk [vmem:[%s11] sm:$0xff] %vm219, %v3707
    %3712 = vst.msk [vmem:[%s11 + $0x8] sm:$0xff] %vm219, %v3708
    %3713 = vst.msk [vmem:[%s11 + $0x10] sm:$0xff] %vm219, %v3709
    %3714 = vst.msk [vmem:[%s11 + $0x18] sm:$0xff] %vm219, %v3710
    %3715 = vrot.lane.b32.xlu0 %v3707, 112
    %v3716 = vpop.permute.xlu0 %3715
    %3717 = vrot.lane.b32.xlu0 %v3708, 112
    %v3718 = vpop.permute.xlu0 %3717
    %3719 = vrot.lane.b32.xlu0 %v3709, 112
    %v3720 = vpop.permute.xlu0 %3719
    %3721 = vrot.lane.b32.xlu0 %v3710, 112
    %v3722 = vpop.permute.xlu0 %3721
    %s3723 = scalar_lea.vmem %s11, 32
    %3724 = vst.msk [vmem:[%s3723] sm:$0xff] %vm219, %v3716
    %3725 = vst.msk [vmem:[%s3723 + $0x8] sm:$0xff] %vm219, %v3718
    %3726 = vst.msk [vmem:[%s3723 + $0x10] sm:$0xff] %vm219, %v3720
    %3727 = vst.msk [vmem:[%s3723 + $0x18] sm:$0xff] %vm219, %v3722
    %vm3728 = vcmask 1047808
    %3729 = vst.msk [vmem:[#allocation2 + $0x8] sm:$0xff] %vm3728, 0.0
    %vm3730 = vcmask 261120
    %3731 = vst.msk [vmem:[#allocation2 + $0x10] sm:$0xff] %vm3730, 0.0
    %3732 = vst.msk [vmem:[#allocation2 + $0x38] sm:$0xff] %vm3728, 0.0
    %3733 = vst.msk [vmem:[#allocation2 + $0x40] sm:$0xff] %vm3730, 0.0
    %3734 = vst.msk [vmem:[#allocation2 + $0x68] sm:$0xff] %vm3728, 0.0
    %3735 = vst.msk [vmem:[#allocation2 + $0x70] sm:$0xff] %vm3730, 0.0
    %3736 = vst.msk [vmem:[#allocation2 + $0x98] sm:$0xff] %vm3728, 0.0
    %3737 = vst.msk [vmem:[#allocation2 + $0xa0] sm:$0xff] %vm3730, 0.0
    %3738 = vst.msk [vmem:[#allocation2 + $0x8] sm:$0xff] %vm3730, %v3668
    %3739 = vst.msk [vmem:[#allocation2 + $0x38] sm:$0xff] %vm3730, %v3671
    %3740 = vst.msk [vmem:[#allocation2 + $0x68] sm:$0xff] %vm3730, %v3676
    %3741 = vst.msk [vmem:[#allocation2 + $0x98] sm:$0xff] %vm3730, %v3679
    %v3742 = vand.u32 %v106, 3
    %v3743 = vshra.s32 %v106, 2
    %v3744 = vand.u32 %v3743, 3
    %vm3745 = vcmp.ge.s32.totalorder %v3744, 1
    %vm3746 = vcmp.ge.s32.totalorder %v3744, 0
    %vm3747 = vcmp.lt.s32.totalorder %v3744, 3
    %vm3748 = vcmp.ge.s32.totalorder %v3742, 1
    %vm3749 = vcmp.ge.s32.totalorder %v3742, 0
    %vm3750 = vcmp.lt.s32.totalorder %v3742, 3
    %v3751 = vld [vmem:[#allocation2] sm:$0xff]
    %v3752 = vld [vmem:[#allocation2 + $0x8] sm:$0xff]
    %v3753 = vld [vmem:[#allocation2 + $0x30] sm:$0xff]
    %v3754 = vld [vmem:[#allocation2 + $0x38] sm:$0xff]
    %v3755 = vld [vmem:[#allocation2 + $0x60] sm:$0xff]
    %v3756 = vld [vmem:[#allocation2 + $0x68] sm:$0xff]
    %v3757 = vld [vmem:[#allocation2 + $0x90] sm:$0xff]
    %v3758 = vld [vmem:[#allocation2 + $0x98] sm:$0xff]
    %vm3759 = vmand %vm3745, %vm3748
    %v3760 = vsel %vm3759, 1, 0
    %vm3761 = vcmp.eq.s32.totalorder %v3760, 1
    %3770 = vrot.lane.b32.xlu0 %v3751, 5
    %v3771 = vpop.permute.xlu0 %3770
    %3772 = vrot.lane.b32.xlu0 %v3752, 5
    %v3773 = vpop.permute.xlu0 %3772
    %3774 = vrot.lane.b32.xlu0 %v3753, 5
    %v3775 = vpop.permute.xlu0 %3774
    %3776 = vrot.lane.b32.xlu0 %v3754, 5
    %v3777 = vpop.permute.xlu0 %3776
    %3778 = vrot.lane.b32.xlu0 %v3755, 5
    %v3779 = vpop.permute.xlu0 %3778
    %3780 = vrot.lane.b32.xlu0 %v3756, 5
    %v3781 = vpop.permute.xlu0 %3780
    %3782 = vrot.lane.b32.xlu0 %v3757, 5
    %v3783 = vpop.permute.xlu0 %3782
    %3784 = vrot.lane.b32.xlu0 %v3758, 5
    %v3785 = vpop.permute.xlu0 %3784
    %vm3786 = vcmask 39936
    %v3787 = vsel %vm3786, %v3771, %v3773
    %v3788 = vsel %vm3786, %v3775, %v3777
    %v3789 = vsel %vm3786, %v3779, %v3781
    %v3790 = vsel %vm3786, %v3783, %v3785
    %v3795 = vsel %vm3761, %v3787, 0.0
    %v3796 = vsel %vm3761, %v3788, 0.0
    %v3797 = vsel %vm3761, %v3789, 0.0
    %v3798 = vsel %vm3761, %v3790, 0.0
    %v3799 = vpack.c.bf16 %v3796, %v3795
    %v3800 = vpack.c.bf16 %v3798, %v3797
    %v3801 = vld [vmem:[%s5] sm:$0xf]
    %v3802 = vld [vmem:[%s5 + $0x4] sm:$0xf]
    %v3803 = vld [vmem:[%s5 + $0x8] sm:$0xf]
    %v3804 = vld [vmem:[%s5 + $0xc] sm:$0xf]
    %vm3805 = vmand %vm3745, %vm3749
    %v3806 = vsel %vm3805, 1, 0
    %vm3807 = vcmp.eq.s32.totalorder %v3806, 1
    %3808 = vrot.lane.b32.xlu0 %v3751, 4
    %v3809 = vpop.permute.xlu0 %3808
    %3810 = vrot.lane.b32.xlu0 %v3752, 4
    %v3811 = vpop.permute.xlu0 %3810
    %3812 = vrot.lane.b32.xlu0 %v3753, 4
    %v3813 = vpop.permute.xlu0 %3812
    %3814 = vrot.lane.b32.xlu0 %v3754, 4
    %v3815 = vpop.permute.xlu0 %3814
    %3816 = vrot.lane.b32.xlu0 %v3755, 4
    %v3817 = vpop.permute.xlu0 %3816
    %3818 = vrot.lane.b32.xlu0 %v3756, 4
    %v3819 = vpop.permute.xlu0 %3818
    %3820 = vrot.lane.b32.xlu0 %v3757, 4
    %v3821 = vpop.permute.xlu0 %3820
    %3822 = vrot.lane.b32.xlu0 %v3758, 4
    %v3823 = vpop.permute.xlu0 %3822
    %v3824 = vsel %vm244, %v3809, %v3811
    %v3825 = vsel %vm244, %v3813, %v3815
    %v3826 = vsel %vm244, %v3817, %v3819
    %v3827 = vsel %vm244, %v3821, %v3823
    %v3832 = vsel %vm3807, %v3824, 0.0
    %v3833 = vsel %vm3807, %v3825, 0.0
    %v3834 = vsel %vm3807, %v3826, 0.0
    %v3835 = vsel %vm3807, %v3827, 0.0
    %v3836 = vpack.c.bf16 %v3833, %v3832
    %v3837 = vpack.c.bf16 %v3835, %v3834
    %s3838 = scalar_lea.vmem %s5, 16
    %v3839 = vld [vmem:[%s3838] sm:$0xf]
    %v3840 = vld [vmem:[%s3838 + $0x4] sm:$0xf]
    %v3841 = vld [vmem:[%s3838 + $0x8] sm:$0xf]
    %v3842 = vld [vmem:[%s3838 + $0xc] sm:$0xf]
    %v3847 = vunpack.c.l.b16 %v3839
    %v3848 = vunpack.c.l.b16 %v3840
    %v3849 = vunpack.c.l.b16 %v3841
    %v3850 = vunpack.c.l.b16 %v3842
    %v3851 = vpack.c.b16 %v3848, %v3847
    %v3852 = vpack.c.b16 %v3850, %v3849
    %v3854 = vsel %vm3730, %v3851, 0
    %v3857 = vsel %vm3730, %v3852, 0
    %3859 = vmatprep.subr.bf16.mxu0 0
    %3860 = vmatpush1.bf16.msra.mxu0 %v3836
    %3861 = vmatprep.subr.bf16.mxu0 0
    %3862 = vmatpush1.bf16.msra.mxu0 %v3837
    %3863 = vmatprep.subr.bf16.mxu0 0
    %3864 = vmatpush1.bf16.msra.mxu0 0
    %3865 = vmatprep.subr.bf16.mxu0 0
    %3866 = vmatpush1.bf16.msra.mxu0 0
    %3867 = vmatprep.subr.bf16.mxu0 0
    %3868 = vmatpush1.bf16.msra.mxu0 0
    %3869 = vmatprep.subr.bf16.mxu0 0
    %3870 = vmatpush1.bf16.msra.mxu0 0
    %3871 = vmatprep.subr.bf16.mxu0 0
    %3872 = vmatpush1.bf16.msra.mxu0 0
    %3873 = vmatprep.subr.bf16.mxu0 0
    %3874 = vmatpush1.bf16.msra.mxu0 0
    %3875 = vmatprep.subr.bf16.mxu0 0
    %3876 = vmatpush1.bf16.msra.mxu0 0
    %3877 = vmatprep.subr.bf16.mxu0 0
    %3878 = vmatpush1.bf16.msra.mxu0 0
    %3879 = vmatprep.subr.bf16.mxu0 0
    %3880 = vmatpush1.bf16.msra.mxu0 0
    %3881 = vmatprep.subr.bf16.mxu0 0
    %3882 = vmatpush1.bf16.msra.mxu0 0
    %3883 = vmatprep.subr.bf16.mxu0 0
    %3884 = vmatpush1.bf16.msra.mxu0 0
    %3885 = vmatprep.subr.bf16.mxu0 0
    %3886 = vmatpush1.bf16.msra.mxu0 0
    %3887 = vmatprep.subr.bf16.mxu0 0
    %3888 = vmatpush1.bf16.msra.mxu0 0
    %3889 = vmatprep.subr.bf16.mxu0 0
    %3890 = vmatpush1.bf16.msra.mxu0 0
    %3891 = vmatprep.mubr.bf16.mxu0 0
    %3892 = vmatmul.mubr.bf16.gmra.mrb[0].mxu0 %v3854
    %v3893 = vpop.f32.mrb[0].mxu0
    %v3894 = vadd.f32 0.0, %v3893
    %v3895 = vpop.f32.mrb[0].mxu0
    %v3896 = vpop.f32.mrb[0].mxu0
    %v3897 = vadd.f32 0.0, %v3896
    %v3898 = vpop.f32.mrb[0].mxu0
    %3899 = vmatprep.mubr.bf16.mxu0 0
    %3900 = vmatmul.mubr.bf16.gmra.mrb[0].mxu0 %v3857
    %v3901 = vpop.f32.mrb[0].mxu0
    %v3902 = vadd.f32 0.0, %v3901
    %v3903 = vpop.f32.mrb[0].mxu0
    %v3904 = vpop.f32.mrb[0].mxu0
    %v3905 = vadd.f32 0.0, %v3904
    %v3906 = vpop.f32.mrb[0].mxu0
    %3907 = vdwg.mxu0
    %v3912 = vunpack.c.l.b16 %v3801
    %v3913 = vunpack.c.l.b16 %v3802
    %v3914 = vunpack.c.l.b16 %v3803
    %v3915 = vunpack.c.l.b16 %v3804
    %v3916 = vpack.c.b16 %v3913, %v3912
    %v3917 = vpack.c.b16 %v3915, %v3914
    %v3919 = vsel %vm3730, %v3916, 0
    %v3922 = vsel %vm3730, %v3917, 0
    %3924 = vmatprep.subr.bf16.mxu0 0
    %3925 = vmatpush1.bf16.msra.mxu0 %v3799
    %3926 = vmatprep.subr.bf16.mxu0 0
    %3927 = vmatpush1.bf16.msra.mxu0 %v3800
    %3928 = vmatprep.subr.bf16.mxu0 0
    %3929 = vmatpush1.bf16.msra.mxu0 0
    %3930 = vmatprep.subr.bf16.mxu0 0
    %3931 = vmatpush1.bf16.msra.mxu0 0
    %3932 = vmatprep.subr.bf16.mxu0 0
    %3933 = vmatpush1.bf16.msra.mxu0 0
    %3934 = vmatprep.subr.bf16.mxu0 0
    %3935 = vmatpush1.bf16.msra.mxu0 0
    %3936 = vmatprep.subr.bf16.mxu0 0
    %3937 = vmatpush1.bf16.msra.mxu0 0
    %3938 = vmatprep.subr.bf16.mxu0 0
    %3939 = vmatpush1.bf16.msra.mxu0 0
    %3940 = vmatprep.subr.bf16.mxu0 0
    %3941 = vmatpush1.bf16.msra.mxu0 0
    %3942 = vmatprep.subr.bf16.mxu0 0
    %3943 = vmatpush1.bf16.msra.mxu0 0
    %3944 = vmatprep.subr.bf16.mxu0 0
    %3945 = vmatpush1.bf16.msra.mxu0 0
    %3946 = vmatprep.subr.bf16.mxu0 0
    %3947 = vmatpush1.bf16.msra.mxu0 0
    %3948 = vmatprep.subr.bf16.mxu0 0
    %3949 = vmatpush1.bf16.msra.mxu0 0
    %3950 = vmatprep.subr.bf16.mxu0 0
    %3951 = vmatpush1.bf16.msra.mxu0 0
    %3952 = vmatprep.subr.bf16.mxu0 0
    %3953 = vmatpush1.bf16.msra.mxu0 0
    %3954 = vmatprep.subr.bf16.mxu0 0
    %3955 = vmatpush1.bf16.msra.mxu0 0
    %3956 = vmatprep.mubr.bf16.mxu0 0
    %3957 = vmatmul.mubr.bf16.gmra.mrb[0].mxu0 %v3919
    %v3958 = vpop.f32.mrb[0].mxu0
    %v3959 = vadd.f32 %v3894, %v3958
    %v3960 = vpop.f32.mrb[0].mxu0
    %v3961 = vpop.f32.mrb[0].mxu0
    %v3962 = vadd.f32 %v3897, %v3961
    %v3963 = vpop.f32.mrb[0].mxu0
    %3964 = vmatprep.mubr.bf16.mxu0 0
    %3965 = vmatmul.mubr.bf16.gmra.mrb[0].mxu0 %v3922
    %v3966 = vpop.f32.mrb[0].mxu0
    %v3967 = vadd.f32 %v3902, %v3966
    %v3968 = vpop.f32.mrb[0].mxu0
    %v3969 = vpop.f32.mrb[0].mxu0
    %v3970 = vadd.f32 %v3905, %v3969
    %v3971 = vpop.f32.mrb[0].mxu0
    %3972 = vdwg.mxu0
    %vm3973 = vmand %vm3745, %vm3750
    %v3974 = vsel %vm3973, 1, 0
    %vm3975 = vcmp.eq.s32.totalorder %v3974, 1
    %3976 = vrot.lane.b32.xlu0 %v3751, 3
    %v3977 = vpop.permute.xlu0 %3976
    %3978 = vrot.lane.b32.xlu0 %v3752, 3
    %v3979 = vpop.permute.xlu0 %3978
    %3980 = vrot.lane.b32.xlu0 %v3753, 3
    %v3981 = vpop.permute.xlu0 %3980
    %3982 = vrot.lane.b32.xlu0 %v3754, 3
    %v3983 = vpop.permute.xlu0 %3982
    %3984 = vrot.lane.b32.xlu0 %v3755, 3
    %v3985 = vpop.permute.xlu0 %3984
    %3986 = vrot.lane.b32.xlu0 %v3756, 3
    %v3987 = vpop.permute.xlu0 %3986
    %3988 = vrot.lane.b32.xlu0 %v3757, 3
    %v3989 = vpop.permute.xlu0 %3988
    %3990 = vrot.lane.b32.xlu0 %v3758, 3
    %v3991 = vpop.permute.xlu0 %3990
    %vm3992 = vcmask 23552
    %v3993 = vsel %vm3992, %v3977, %v3979
    %v3994 = vsel %vm3992, %v3981, %v3983
    %v3995 = vsel %vm3992, %v3985, %v3987
    %v3996 = vsel %vm3992, %v3989, %v3991
    %v4001 = vsel %vm3975, %v3993, 0.0
    %v4002 = vsel %vm3975, %v3994, 0.0
    %v4003 = vsel %vm3975, %v3995, 0.0
    %v4004 = vsel %vm3975, %v3996, 0.0
    %v4005 = vpack.c.bf16 %v4002, %v4001
    %v4006 = vpack.c.bf16 %v4004, %v4003
    %s4007 = scalar_lea.vmem %s5, 32
    %v4008 = vld [vmem:[%s4007] sm:$0xf]
    %v4009 = vld [vmem:[%s4007 + $0x4] sm:$0xf]
    %v4010 = vld [vmem:[%s4007 + $0x8] sm:$0xf]
    %v4011 = vld [vmem:[%s4007 + $0xc] sm:$0xf]
    %v4016 = vunpack.c.l.b16 %v4008
    %v4017 = vunpack.c.l.b16 %v4009
    %v4018 = vunpack.c.l.b16 %v4010
    %v4019 = vunpack.c.l.b16 %v4011
    %v4020 = vpack.c.b16 %v4017, %v4016
    %v4021 = vpack.c.b16 %v4019, %v4018
    %v4023 = vsel %vm3730, %v4020, 0
    %v4026 = vsel %vm3730, %v4021, 0
    %4028 = vmatprep.subr.bf16.mxu0 0
    %4029 = vmatpush1.bf16.msra.mxu0 %v4005
    %4030 = vmatprep.subr.bf16.mxu0 0
    %4031 = vmatpush1.bf16.msra.mxu0 %v4006
    %4032 = vmatprep.subr.bf16.mxu0 0
    %4033 = vmatpush1.bf16.msra.mxu0 0
    %4034 = vmatprep.subr.bf16.mxu0 0
    %4035 = vmatpush1.bf16.msra.mxu0 0
    %4036 = vmatprep.subr.bf16.mxu0 0
    %4037 = vmatpush1.bf16.msra.mxu0 0
    %4038 = vmatprep.subr.bf16.mxu0 0
    %4039 = vmatpush1.bf16.msra.mxu0 0
    %4040 = vmatprep.subr.bf16.mxu0 0
    %4041 = vmatpush1.bf16.msra.mxu0 0
    %4042 = vmatprep.subr.bf16.mxu0 0
    %4043 = vmatpush1.bf16.msra.mxu0 0
    %4044 = vmatprep.subr.bf16.mxu0 0
    %4045 = vmatpush1.bf16.msra.mxu0 0
    %4046 = vmatprep.subr.bf16.mxu0 0
    %4047 = vmatpush1.bf16.msra.mxu0 0
    %4048 = vmatprep.subr.bf16.mxu0 0
    %4049 = vmatpush1.bf16.msra.mxu0 0
    %4050 = vmatprep.subr.bf16.mxu0 0
    %4051 = vmatpush1.bf16.msra.mxu0 0
    %4052 = vmatprep.subr.bf16.mxu0 0
    %4053 = vmatpush1.bf16.msra.mxu0 0
    %4054 = vmatprep.subr.bf16.mxu0 0
    %4055 = vmatpush1.bf16.msra.mxu0 0
    %4056 = vmatprep.subr.bf16.mxu0 0
    %4057 = vmatpush1.bf16.msra.mxu0 0
    %4058 = vmatprep.subr.bf16.mxu0 0
    %4059 = vmatpush1.bf16.msra.mxu0 0
    %4060 = vmatprep.mubr.bf16.mxu0 0
    %4061 = vmatmul.mubr.bf16.gmra.mrb[0].mxu0 %v4023
    %v4062 = vpop.f32.mrb[0].mxu0
    %v4063 = vadd.f32 0.0, %v4062
    %v4064 = vpop.f32.mrb[0].mxu0
    %v4065 = vpop.f32.mrb[0].mxu0
    %v4066 = vadd.f32 0.0, %v4065
    %v4067 = vpop.f32.mrb[0].mxu0
    %4068 = vmatprep.mubr.bf16.mxu0 0
    %4069 = vmatmul.mubr.bf16.gmra.mrb[0].mxu0 %v4026
    %v4070 = vpop.f32.mrb[0].mxu0
    %v4071 = vadd.f32 0.0, %v4070
    %v4072 = vpop.f32.mrb[0].mxu0
    %v4073 = vpop.f32.mrb[0].mxu0
    %v4074 = vadd.f32 0.0, %v4073
    %v4075 = vpop.f32.mrb[0].mxu0
    %4076 = vdwg.mxu0
    %v4077 = vadd.f32 %v3959, %v4063
    %v4078 = vadd.f32 %v3962, %v4066
    %v4079 = vadd.f32 %v3967, %v4071
    %v4080 = vadd.f32 %v3970, %v4074
    %vm4081 = vmand %vm3746, %vm3748
    %v4082 = vsel %vm4081, 1, 0
    %vm4083 = vcmp.eq.s32.totalorder %v4082, 1
    %4084 = vrot.lane.b32.xlu0 %v3751, 1
    %v4085 = vpop.permute.xlu0 %4084
    %4086 = vrot.lane.b32.xlu0 %v3752, 1
    %v4087 = vpop.permute.xlu0 %4086
    %4088 = vrot.lane.b32.xlu0 %v3753, 1
    %v4089 = vpop.permute.xlu0 %4088
    %4090 = vrot.lane.b32.xlu0 %v3754, 1
    %v4091 = vpop.permute.xlu0 %4090
    %4092 = vrot.lane.b32.xlu0 %v3755, 1
    %v4093 = vpop.permute.xlu0 %4092
    %4094 = vrot.lane.b32.xlu0 %v3756, 1
    %v4095 = vpop.permute.xlu0 %4094
    %4096 = vrot.lane.b32.xlu0 %v3757, 1
    %v4097 = vpop.permute.xlu0 %4096
    %4098 = vrot.lane.b32.xlu0 %v3758, 1
    %v4099 = vpop.permute.xlu0 %4098
    %v4100 = vsel %vm631, %v4085, %v4087
    %v4101 = vsel %vm631, %v4089, %v4091
    %v4102 = vsel %vm631, %v4093, %v4095
    %v4103 = vsel %vm631, %v4097, %v4099
    %v4108 = vsel %vm4083, %v4100, 0.0
    %v4109 = vsel %vm4083, %v4101, 0.0
    %v4110 = vsel %vm4083, %v4102, 0.0
    %v4111 = vsel %vm4083, %v4103, 0.0
    %v4112 = vpack.c.bf16 %v4109, %v4108
    %v4113 = vpack.c.bf16 %v4111, %v4110
    %s4114 = scalar_lea.vmem %s5, 48
    %v4115 = vld [vmem:[%s4114] sm:$0xf]
    %v4116 = vld [vmem:[%s4114 + $0x4] sm:$0xf]
    %v4117 = vld [vmem:[%s4114 + $0x8] sm:$0xf]
    %v4118 = vld [vmem:[%s4114 + $0xc] sm:$0xf]
    %v4123 = vunpack.c.l.b16 %v4115
    %v4124 = vunpack.c.l.b16 %v4116
    %v4125 = vunpack.c.l.b16 %v4117
    %v4126 = vunpack.c.l.b16 %v4118
    %v4127 = vpack.c.b16 %v4124, %v4123
    %v4128 = vpack.c.b16 %v4126, %v4125
    %v4130 = vsel %vm3730, %v4127, 0
    %v4133 = vsel %vm3730, %v4128, 0
    %4135 = vmatprep.subr.bf16.mxu0 0
    %4136 = vmatpush1.bf16.msra.mxu0 %v4112
    %4137 = vmatprep.subr.bf16.mxu0 0
    %4138 = vmatpush1.bf16.msra.mxu0 %v4113
    %4139 = vmatprep.subr.bf16.mxu0 0
    %4140 = vmatpush1.bf16.msra.mxu0 0
    %4141 = vmatprep.subr.bf16.mxu0 0
    %4142 = vmatpush1.bf16.msra.mxu0 0
    %4143 = vmatprep.subr.bf16.mxu0 0
    %4144 = vmatpush1.bf16.msra.mxu0 0
    %4145 = vmatprep.subr.bf16.mxu0 0
    %4146 = vmatpush1.bf16.msra.mxu0 0
    %4147 = vmatprep.subr.bf16.mxu0 0
    %4148 = vmatpush1.bf16.msra.mxu0 0
    %4149 = vmatprep.subr.bf16.mxu0 0
    %4150 = vmatpush1.bf16.msra.mxu0 0
    %4151 = vmatprep.subr.bf16.mxu0 0
    %4152 = vmatpush1.bf16.msra.mxu0 0
    %4153 = vmatprep.subr.bf16.mxu0 0
    %4154 = vmatpush1.bf16.msra.mxu0 0
    %4155 = vmatprep.subr.bf16.mxu0 0
    %4156 = vmatpush1.bf16.msra.mxu0 0
    %4157 = vmatprep.subr.bf16.mxu0 0
    %4158 = vmatpush1.bf16.msra.mxu0 0
    %4159 = vmatprep.subr.bf16.mxu0 0
    %4160 = vmatpush1.bf16.msra.mxu0 0
    %4161 = vmatprep.subr.bf16.mxu0 0
    %4162 = vmatpush1.bf16.msra.mxu0 0
    %4163 = vmatprep.subr.bf16.mxu0 0
    %4164 = vmatpush1.bf16.msra.mxu0 0
    %4165 = vmatprep.subr.bf16.mxu0 0
    %4166 = vmatpush1.bf16.msra.mxu0 0
    %4167 = vmatprep.mubr.bf16.mxu0 0
    %4168 = vmatmul.mubr.bf16.gmra.mrb[0].mxu0 %v4130
    %v4169 = vpop.f32.mrb[0].mxu0
    %v4170 = vadd.f32 0.0, %v4169
    %v4171 = vpop.f32.mrb[0].mxu0
    %v4172 = vpop.f32.mrb[0].mxu0
    %v4173 = vadd.f32 0.0, %v4172
    %v4174 = vpop.f32.mrb[0].mxu0
    %4175 = vmatprep.mubr.bf16.mxu0 0
    %4176 = vmatmul.mubr.bf16.gmra.mrb[0].mxu0 %v4133
    %v4177 = vpop.f32.mrb[0].mxu0
    %v4178 = vadd.f32 0.0, %v4177
    %v4179 = vpop.f32.mrb[0].mxu0
    %v4180 = vpop.f32.mrb[0].mxu0
    %v4181 = vadd.f32 0.0, %v4180
    %v4182 = vpop.f32.mrb[0].mxu0
    %4183 = vdwg.mxu0
    %v4184 = vadd.f32 %v4077, %v4170
    %v4185 = vadd.f32 %v4078, %v4173
    %v4186 = vadd.f32 %v4079, %v4178
    %v4187 = vadd.f32 %v4080, %v4181
    %vm4188 = vmand %vm3746, %vm3749
    %v4189 = vsel %vm4188, 1, 0
    %vm4190 = vcmp.eq.s32.totalorder %v4189, 1
    %v4191 = vsel %vm4190, %v3752, 0.0
    %v4192 = vsel %vm4190, %v3754, 0.0
    %v4193 = vsel %vm4190, %v3756, 0.0
    %v4194 = vsel %vm4190, %v3758, 0.0
    %v4195 = vpack.c.bf16 %v4192, %v4191
    %v4196 = vpack.c.bf16 %v4194, %v4193
    %s4197 = scalar_lea.vmem %s5, 64
    %v4198 = vld [vmem:[%s4197] sm:$0xf]
    %v4199 = vld [vmem:[%s4197 + $0x4] sm:$0xf]
    %v4200 = vld [vmem:[%s4197 + $0x8] sm:$0xf]
    %v4201 = vld [vmem:[%s4197 + $0xc] sm:$0xf]
    %v4206 = vunpack.c.l.b16 %v4198
    %v4207 = vunpack.c.l.b16 %v4199
    %v4208 = vunpack.c.l.b16 %v4200
    %v4209 = vunpack.c.l.b16 %v4201
    %v4210 = vpack.c.b16 %v4207, %v4206
    %v4211 = vpack.c.b16 %v4209, %v4208
    %v4213 = vsel %vm3730, %v4210, 0
    %v4216 = vsel %vm3730, %v4211, 0
    %4218 = vmatprep.subr.bf16.mxu0 0
    %4219 = vmatpush1.bf16.msra.mxu0 %v4195
    %4220 = vmatprep.subr.bf16.mxu0 0
    %4221 = vmatpush1.bf16.msra.mxu0 %v4196
    %4222 = vmatprep.subr.bf16.mxu0 0
    %4223 = vmatpush1.bf16.msra.mxu0 0
    %4224 = vmatprep.subr.bf16.mxu0 0
    %4225 = vmatpush1.bf16.msra.mxu0 0
    %4226 = vmatprep.subr.bf16.mxu0 0
    %4227 = vmatpush1.bf16.msra.mxu0 0
    %4228 = vmatprep.subr.bf16.mxu0 0
    %4229 = vmatpush1.bf16.msra.mxu0 0
    %4230 = vmatprep.subr.bf16.mxu0 0
    %4231 = vmatpush1.bf16.msra.mxu0 0
    %4232 = vmatprep.subr.bf16.mxu0 0
    %4233 = vmatpush1.bf16.msra.mxu0 0
    %4234 = vmatprep.subr.bf16.mxu0 0
    %4235 = vmatpush1.bf16.msra.mxu0 0
    %4236 = vmatprep.subr.bf16.mxu0 0
    %4237 = vmatpush1.bf16.msra.mxu0 0
    %4238 = vmatprep.subr.bf16.mxu0 0
    %4239 = vmatpush1.bf16.msra.mxu0 0
    %4240 = vmatprep.subr.bf16.mxu0 0
    %4241 = vmatpush1.bf16.msra.mxu0 0
    %4242 = vmatprep.subr.bf16.mxu0 0
    %4243 = vmatpush1.bf16.msra.mxu0 0
    %4244 = vmatprep.subr.bf16.mxu0 0
    %4245 = vmatpush1.bf16.msra.mxu0 0
    %4246 = vmatprep.subr.bf16.mxu0 0
    %4247 = vmatpush1.bf16.msra.mxu0 0
    %4248 = vmatprep.subr.bf16.mxu0 0
    %4249 = vmatpush1.bf16.msra.mxu0 0
    %4250 = vmatprep.mubr.bf16.mxu0 0
    %4251 = vmatmul.mubr.bf16.gmra.mrb[0].mxu0 %v4213
    %v4252 = vpop.f32.mrb[0].mxu0
    %v4253 = vadd.f32 0.0, %v4252
    %v4254 = vpop.f32.mrb[0].mxu0
    %v4255 = vpop.f32.mrb[0].mxu0
    %v4256 = vadd.f32 0.0, %v4255
    %v4257 = vpop.f32.mrb[0].mxu0
    %4258 = vmatprep.mubr.bf16.mxu0 0
    %4259 = vmatmul.mubr.bf16.gmra.mrb[0].mxu0 %v4216
    %v4260 = vpop.f32.mrb[0].mxu0
    %v4261 = vadd.f32 0.0, %v4260
    %v4262 = vpop.f32.mrb[0].mxu0
    %v4263 = vpop.f32.mrb[0].mxu0
    %v4264 = vadd.f32 0.0, %v4263
    %v4265 = vpop.f32.mrb[0].mxu0
    %4266 = vdwg.mxu0
    %v4267 = vadd.f32 %v4184, %v4253
    %v4268 = vadd.f32 %v4185, %v4256
    %v4269 = vadd.f32 %v4186, %v4261
    %v4270 = vadd.f32 %v4187, %v4264
    %vm4271 = vmand %vm3746, %vm3750
    %v4272 = vsel %vm4271, 1, 0
    %vm4273 = vcmp.eq.s32.totalorder %v4272, 1
    %4274 = vrot.lane.b32.xlu0 %v3752, 127
    %v4275 = vpop.permute.xlu0 %4274
    %4276 = vrot.lane.b32.xlu0 %v3754, 127
    %v4277 = vpop.permute.xlu0 %4276
    %4278 = vrot.lane.b32.xlu0 %v3756, 127
    %v4279 = vpop.permute.xlu0 %4278
    %4280 = vrot.lane.b32.xlu0 %v3758, 127
    %v4281 = vpop.permute.xlu0 %4280
    %v4286 = vsel %vm4273, %v4275, 0.0
    %v4287 = vsel %vm4273, %v4277, 0.0
    %v4288 = vsel %vm4273, %v4279, 0.0
    %v4289 = vsel %vm4273, %v4281, 0.0
    %v4290 = vpack.c.bf16 %v4287, %v4286
    %v4291 = vpack.c.bf16 %v4289, %v4288
    %s4292 = scalar_lea.vmem %s5, 80
    %v4293 = vld [vmem:[%s4292] sm:$0xf]
    %v4294 = vld [vmem:[%s4292 + $0x4] sm:$0xf]
    %v4295 = vld [vmem:[%s4292 + $0x8] sm:$0xf]
    %v4296 = vld [vmem:[%s4292 + $0xc] sm:$0xf]
    %v4301 = vunpack.c.l.b16 %v4293
    %v4302 = vunpack.c.l.b16 %v4294
    %v4303 = vunpack.c.l.b16 %v4295
    %v4304 = vunpack.c.l.b16 %v4296
    %v4305 = vpack.c.b16 %v4302, %v4301
    %v4306 = vpack.c.b16 %v4304, %v4303
    %v4308 = vsel %vm3730, %v4305, 0
    %v4311 = vsel %vm3730, %v4306, 0
    %4313 = vmatprep.subr.bf16.mxu0 0
    %4314 = vmatpush1.bf16.msra.mxu0 %v4290
    %4315 = vmatprep.subr.bf16.mxu0 0
    %4316 = vmatpush1.bf16.msra.mxu0 %v4291
    %4317 = vmatprep.subr.bf16.mxu0 0
    %4318 = vmatpush1.bf16.msra.mxu0 0
    %4319 = vmatprep.subr.bf16.mxu0 0
    %4320 = vmatpush1.bf16.msra.mxu0 0
    %4321 = vmatprep.subr.bf16.mxu0 0
    %4322 = vmatpush1.bf16.msra.mxu0 0
    %4323 = vmatprep.subr.bf16.mxu0 0
    %4324 = vmatpush1.bf16.msra.mxu0 0
    %4325 = vmatprep.subr.bf16.mxu0 0
    %4326 = vmatpush1.bf16.msra.mxu0 0
    %4327 = vmatprep.subr.bf16.mxu0 0
    %4328 = vmatpush1.bf16.msra.mxu0 0
    %4329 = vmatprep.subr.bf16.mxu0 0
    %4330 = vmatpush1.bf16.msra.mxu0 0
    %4331 = vmatprep.subr.bf16.mxu0 0
    %4332 = vmatpush1.bf16.msra.mxu0 0
    %4333 = vmatprep.subr.bf16.mxu0 0
    %4334 = vmatpush1.bf16.msra.mxu0 0
    %4335 = vmatprep.subr.bf16.mxu0 0
    %4336 = vmatpush1.bf16.msra.mxu0 0
    %4337 = vmatprep.subr.bf16.mxu0 0
    %4338 = vmatpush1.bf16.msra.mxu0 0
    %4339 = vmatprep.subr.bf16.mxu0 0
    %4340 = vmatpush1.bf16.msra.mxu0 0
    %4341 = vmatprep.subr.bf16.mxu0 0
    %4342 = vmatpush1.bf16.msra.mxu0 0
    %4343 = vmatprep.subr.bf16.mxu0 0
    %4344 = vmatpush1.bf16.msra.mxu0 0
    %4345 = vmatprep.mubr.bf16.mxu0 0
    %4346 = vmatmul.mubr.bf16.gmra.mrb[0].mxu0 %v4308
    %v4347 = vpop.f32.mrb[0].mxu0
    %v4348 = vadd.f32 0.0, %v4347
    %v4349 = vpop.f32.mrb[0].mxu0
    %v4350 = vpop.f32.mrb[0].mxu0
    %v4351 = vadd.f32 0.0, %v4350
    %v4352 = vpop.f32.mrb[0].mxu0
    %4353 = vmatprep.mubr.bf16.mxu0 0
    %4354 = vmatmul.mubr.bf16.gmra.mrb[0].mxu0 %v4311
    %v4355 = vpop.f32.mrb[0].mxu0
    %v4356 = vadd.f32 0.0, %v4355
    %v4357 = vpop.f32.mrb[0].mxu0
    %v4358 = vpop.f32.mrb[0].mxu0
    %v4359 = vadd.f32 0.0, %v4358
    %v4360 = vpop.f32.mrb[0].mxu0
    %4361 = vdwg.mxu0
    %v4362 = vadd.f32 %v4267, %v4348
    %v4363 = vadd.f32 %v4268, %v4351
    %v4364 = vadd.f32 %v4269, %v4356
    %v4365 = vadd.f32 %v4270, %v4359
    %vm4366 = vmand %vm3747, %vm3748
    %v4367 = vsel %vm4366, 1, 0
    %vm4368 = vcmp.eq.s32.totalorder %v4367, 1
    %4369 = vrot.lane.b32.xlu0 %v3752, 125
    %v4370 = vpop.permute.xlu0 %4369
    %4371 = vrot.lane.b32.xlu0 %v3754, 125
    %v4372 = vpop.permute.xlu0 %4371
    %4373 = vrot.lane.b32.xlu0 %v3756, 125
    %v4374 = vpop.permute.xlu0 %4373
    %4375 = vrot.lane.b32.xlu0 %v3758, 125
    %v4376 = vpop.permute.xlu0 %4375
    %v4381 = vsel %vm4368, %v4370, 0.0
    %v4382 = vsel %vm4368, %v4372, 0.0
    %v4383 = vsel %vm4368, %v4374, 0.0
    %v4384 = vsel %vm4368, %v4376, 0.0
    %v4385 = vpack.c.bf16 %v4382, %v4381
    %v4386 = vpack.c.bf16 %v4384, %v4383
    %s4387 = scalar_lea.vmem %s5, 96
    %v4388 = vld [vmem:[%s4387] sm:$0xf]
    %v4389 = vld [vmem:[%s4387 + $0x4] sm:$0xf]
    %v4390 = vld [vmem:[%s4387 + $0x8] sm:$0xf]
    %v4391 = vld [vmem:[%s4387 + $0xc] sm:$0xf]
    %v4396 = vunpack.c.l.b16 %v4388
    %v4397 = vunpack.c.l.b16 %v4389
    %v4398 = vunpack.c.l.b16 %v4390
    %v4399 = vunpack.c.l.b16 %v4391
    %v4400 = vpack.c.b16 %v4397, %v4396
    %v4401 = vpack.c.b16 %v4399, %v4398
    %v4403 = vsel %vm3730, %v4400, 0
    %v4406 = vsel %vm3730, %v4401, 0
    %4408 = vmatprep.subr.bf16.mxu0 0
    %4409 = vmatpush1.bf16.msra.mxu0 %v4385
    %4410 = vmatprep.subr.bf16.mxu0 0
    %4411 = vmatpush1.bf16.msra.mxu0 %v4386
    %4412 = vmatprep.subr.bf16.mxu0 0
    %4413 = vmatpush1.bf16.msra.mxu0 0
    %4414 = vmatprep.subr.bf16.mxu0 0
    %4415 = vmatpush1.bf16.msra.mxu0 0
    %4416 = vmatprep.subr.bf16.mxu0 0
    %4417 = vmatpush1.bf16.msra.mxu0 0
    %4418 = vmatprep.subr.bf16.mxu0 0
    %4419 = vmatpush1.bf16.msra.mxu0 0
    %4420 = vmatprep.subr.bf16.mxu0 0
    %4421 = vmatpush1.bf16.msra.mxu0 0
    %4422 = vmatprep.subr.bf16.mxu0 0
    %4423 = vmatpush1.bf16.msra.mxu0 0
    %4424 = vmatprep.subr.bf16.mxu0 0
    %4425 = vmatpush1.bf16.msra.mxu0 0
    %4426 = vmatprep.subr.bf16.mxu0 0
    %4427 = vmatpush1.bf16.msra.mxu0 0
    %4428 = vmatprep.subr.bf16.mxu0 0
    %4429 = vmatpush1.bf16.msra.mxu0 0
    %4430 = vmatprep.subr.bf16.mxu0 0
    %4431 = vmatpush1.bf16.msra.mxu0 0
    %4432 = vmatprep.subr.bf16.mxu0 0
    %4433 = vmatpush1.bf16.msra.mxu0 0
    %4434 = vmatprep.subr.bf16.mxu0 0
    %4435 = vmatpush1.bf16.msra.mxu0 0
    %4436 = vmatprep.subr.bf16.mxu0 0
    %4437 = vmatpush1.bf16.msra.mxu0 0
    %4438 = vmatprep.subr.bf16.mxu0 0
    %4439 = vmatpush1.bf16.msra.mxu0 0
    %4440 = vmatprep.mubr.bf16.mxu0 0
    %4441 = vmatmul.mubr.bf16.gmra.mrb[0].mxu0 %v4403
    %v4442 = vpop.f32.mrb[0].mxu0
    %v4443 = vadd.f32 0.0, %v4442
    %v4444 = vpop.f32.mrb[0].mxu0
    %v4445 = vpop.f32.mrb[0].mxu0
    %v4446 = vadd.f32 0.0, %v4445
    %v4447 = vpop.f32.mrb[0].mxu0
    %4448 = vmatprep.mubr.bf16.mxu0 0
    %4449 = vmatmul.mubr.bf16.gmra.mrb[0].mxu0 %v4406
    %v4450 = vpop.f32.mrb[0].mxu0
    %v4451 = vadd.f32 0.0, %v4450
    %v4452 = vpop.f32.mrb[0].mxu0
    %v4453 = vpop.f32.mrb[0].mxu0
    %v4454 = vadd.f32 0.0, %v4453
    %v4455 = vpop.f32.mrb[0].mxu0
    %4456 = vdwg.mxu0
    %v4457 = vadd.f32 %v4362, %v4443
    %v4458 = vadd.f32 %v4363, %v4446
    %v4459 = vadd.f32 %v4364, %v4451
    %v4460 = vadd.f32 %v4365, %v4454
    %vm4461 = vmand %vm3747, %vm3749
    %v4462 = vsel %vm4461, 1, 0
    %vm4463 = vcmp.eq.s32.totalorder %v4462, 1
    %4464 = vrot.lane.b32.xlu0 %v3752, 124
    %v4465 = vpop.permute.xlu0 %4464
    %4466 = vrot.lane.b32.xlu0 %v3754, 124
    %v4467 = vpop.permute.xlu0 %4466
    %4468 = vrot.lane.b32.xlu0 %v3756, 124
    %v4469 = vpop.permute.xlu0 %4468
    %4470 = vrot.lane.b32.xlu0 %v3758, 124
    %v4471 = vpop.permute.xlu0 %4470
    %v4476 = vsel %vm4463, %v4465, 0.0
    %v4477 = vsel %vm4463, %v4467, 0.0
    %v4478 = vsel %vm4463, %v4469, 0.0
    %v4479 = vsel %vm4463, %v4471, 0.0
    %v4480 = vpack.c.bf16 %v4477, %v4476
    %v4481 = vpack.c.bf16 %v4479, %v4478
    %s4482 = scalar_lea.vmem %s5, 112
    %v4483 = vld [vmem:[%s4482] sm:$0xf]
    %v4484 = vld [vmem:[%s4482 + $0x4] sm:$0xf]
    %v4485 = vld [vmem:[%s4482 + $0x8] sm:$0xf]
    %v4486 = vld [vmem:[%s4482 + $0xc] sm:$0xf]
    %v4491 = vunpack.c.l.b16 %v4483
    %v4492 = vunpack.c.l.b16 %v4484
    %v4493 = vunpack.c.l.b16 %v4485
    %v4494 = vunpack.c.l.b16 %v4486
    %v4495 = vpack.c.b16 %v4492, %v4491
    %v4496 = vpack.c.b16 %v4494, %v4493
    %v4498 = vsel %vm3730, %v4495, 0
    %v4501 = vsel %vm3730, %v4496, 0
    %4503 = vmatprep.subr.bf16.mxu0 0
    %4504 = vmatpush1.bf16.msra.mxu0 %v4480
    %4505 = vmatprep.subr.bf16.mxu0 0
    %4506 = vmatpush1.bf16.msra.mxu0 %v4481
    %4507 = vmatprep.subr.bf16.mxu0 0
    %4508 = vmatpush1.bf16.msra.mxu0 0
    %4509 = vmatprep.subr.bf16.mxu0 0
    %4510 = vmatpush1.bf16.msra.mxu0 0
    %4511 = vmatprep.subr.bf16.mxu0 0
    %4512 = vmatpush1.bf16.msra.mxu0 0
    %4513 = vmatprep.subr.bf16.mxu0 0
    %4514 = vmatpush1.bf16.msra.mxu0 0
    %4515 = vmatprep.subr.bf16.mxu0 0
    %4516 = vmatpush1.bf16.msra.mxu0 0
    %4517 = vmatprep.subr.bf16.mxu0 0
    %4518 = vmatpush1.bf16.msra.mxu0 0
    %4519 = vmatprep.subr.bf16.mxu0 0
    %4520 = vmatpush1.bf16.msra.mxu0 0
    %4521 = vmatprep.subr.bf16.mxu0 0
    %4522 = vmatpush1.bf16.msra.mxu0 0
    %4523 = vmatprep.subr.bf16.mxu0 0
    %4524 = vmatpush1.bf16.msra.mxu0 0
    %4525 = vmatprep.subr.bf16.mxu0 0
    %4526 = vmatpush1.bf16.msra.mxu0 0
    %4527 = vmatprep.subr.bf16.mxu0 0
    %4528 = vmatpush1.bf16.msra.mxu0 0
    %4529 = vmatprep.subr.bf16.mxu0 0
    %4530 = vmatpush1.bf16.msra.mxu0 0
    %4531 = vmatprep.subr.bf16.mxu0 0
    %4532 = vmatpush1.bf16.msra.mxu0 0
    %4533 = vmatprep.subr.bf16.mxu0 0
    %4534 = vmatpush1.bf16.msra.mxu0 0
    %4535 = vmatprep.mubr.bf16.mxu0 0
    %4536 = vmatmul.mubr.bf16.gmra.mrb[0].mxu0 %v4498
    %v4537 = vpop.f32.mrb[0].mxu0
    %v4538 = vadd.f32 0.0, %v4537
    %v4539 = vpop.f32.mrb[0].mxu0
    %v4540 = vpop.f32.mrb[0].mxu0
    %v4541 = vadd.f32 0.0, %v4540
    %v4542 = vpop.f32.mrb[0].mxu0
    %4543 = vmatprep.mubr.bf16.mxu0 0
    %4544 = vmatmul.mubr.bf16.gmra.mrb[0].mxu0 %v4501
    %v4545 = vpop.f32.mrb[0].mxu0
    %v4546 = vadd.f32 0.0, %v4545
    %v4547 = vpop.f32.mrb[0].mxu0
    %v4548 = vpop.f32.mrb[0].mxu0
    %v4549 = vadd.f32 0.0, %v4548
    %v4550 = vpop.f32.mrb[0].mxu0
    %4551 = vdwg.mxu0
    %v4552 = vadd.f32 %v4457, %v4538
    %v4553 = vadd.f32 %v4458, %v4541
    %v4554 = vadd.f32 %v4459, %v4546
    %v4555 = vadd.f32 %v4460, %v4549
    %vm4556 = vmand %vm3747, %vm3750
    %v4557 = vsel %vm4556, 1, 0
    %vm4558 = vcmp.eq.s32.totalorder %v4557, 1
    %4559 = vrot.lane.b32.xlu0 %v3752, 123
    %v4560 = vpop.permute.xlu0 %4559
    %4561 = vrot.lane.b32.xlu0 %v3754, 123
    %v4562 = vpop.permute.xlu0 %4561
    %4563 = vrot.lane.b32.xlu0 %v3756, 123
    %v4564 = vpop.permute.xlu0 %4563
    %4565 = vrot.lane.b32.xlu0 %v3758, 123
    %v4566 = vpop.permute.xlu0 %4565
    %v4571 = vsel %vm4558, %v4560, 0.0
    %v4572 = vsel %vm4558, %v4562, 0.0
    %v4573 = vsel %vm4558, %v4564, 0.0
    %v4574 = vsel %vm4558, %v4566, 0.0
    %v4575 = vpack.c.bf16 %v4572, %v4571
    %v4576 = vpack.c.bf16 %v4574, %v4573
    %s4577 = scalar_lea.vmem %s5, 128
    %v4578 = vld [vmem:[%s4577] sm:$0xf]
    %v4579 = vld [vmem:[%s4577 + $0x4] sm:$0xf]
    %v4580 = vld [vmem:[%s4577 + $0x8] sm:$0xf]
    %v4581 = vld [vmem:[%s4577 + $0xc] sm:$0xf]
    %v4586 = vunpack.c.l.b16 %v4578
    %v4587 = vunpack.c.l.b16 %v4579
    %v4588 = vunpack.c.l.b16 %v4580
    %v4589 = vunpack.c.l.b16 %v4581
    %v4590 = vpack.c.b16 %v4587, %v4586
    %v4591 = vpack.c.b16 %v4589, %v4588
    %v4593 = vsel %vm3730, %v4590, 0
    %v4596 = vsel %vm3730, %v4591, 0
    %4598 = vmatprep.subr.bf16.mxu0 0
    %4599 = vmatpush1.bf16.msra.mxu0 %v4575
    %4600 = vmatprep.subr.bf16.mxu0 0
    %4601 = vmatpush1.bf16.msra.mxu0 %v4576
    %4602 = vmatprep.subr.bf16.mxu0 0
    %4603 = vmatpush1.bf16.msra.mxu0 0
    %4604 = vmatprep.subr.bf16.mxu0 0
    %4605 = vmatpush1.bf16.msra.mxu0 0
    %4606 = vmatprep.subr.bf16.mxu0 0
    %4607 = vmatpush1.bf16.msra.mxu0 0
    %4608 = vmatprep.subr.bf16.mxu0 0
    %4609 = vmatpush1.bf16.msra.mxu0 0
    %4610 = vmatprep.subr.bf16.mxu0 0
    %4611 = vmatpush1.bf16.msra.mxu0 0
    %4612 = vmatprep.subr.bf16.mxu0 0
    %4613 = vmatpush1.bf16.msra.mxu0 0
    %4614 = vmatprep.subr.bf16.mxu0 0
    %4615 = vmatpush1.bf16.msra.mxu0 0
    %4616 = vmatprep.subr.bf16.mxu0 0
    %4617 = vmatpush1.bf16.msra.mxu0 0
    %4618 = vmatprep.subr.bf16.mxu0 0
    %4619 = vmatpush1.bf16.msra.mxu0 0
    %4620 = vmatprep.subr.bf16.mxu0 0
    %4621 = vmatpush1.bf16.msra.mxu0 0
    %4622 = vmatprep.subr.bf16.mxu0 0
    %4623 = vmatpush1.bf16.msra.mxu0 0
    %4624 = vmatprep.subr.bf16.mxu0 0
    %4625 = vmatpush1.bf16.msra.mxu0 0
    %4626 = vmatprep.subr.bf16.mxu0 0
    %4627 = vmatpush1.bf16.msra.mxu0 0
    %4628 = vmatprep.subr.bf16.mxu0 0
    %4629 = vmatpush1.bf16.msra.mxu0 0
    %4630 = vmatprep.mubr.bf16.mxu0 0
    %4631 = vmatmul.mubr.bf16.gmra.mrb[0].mxu0 %v4593
    %v4632 = vpop.f32.mrb[0].mxu0
    %v4633 = vadd.f32 0.0, %v4632
    %v4634 = vpop.f32.mrb[0].mxu0
    %v4635 = vpop.f32.mrb[0].mxu0
    %v4636 = vadd.f32 0.0, %v4635
    %v4637 = vpop.f32.mrb[0].mxu0
    %4638 = vmatprep.mubr.bf16.mxu0 0
    %4639 = vmatmul.mubr.bf16.gmra.mrb[0].mxu0 %v4596
    %v4640 = vpop.f32.mrb[0].mxu0
    %v4641 = vadd.f32 0.0, %v4640
    %v4642 = vpop.f32.mrb[0].mxu0
    %v4643 = vpop.f32.mrb[0].mxu0
    %v4644 = vadd.f32 0.0, %v4643
    %v4645 = vpop.f32.mrb[0].mxu0
    %4646 = vdwg.mxu0
    %v4647 = vadd.f32 %v4552, %v4633
    %v4648 = vadd.f32 %v4553, %v4636
    %v4649 = vadd.f32 %v4554, %v4641
    %v4650 = vadd.f32 %v4555, %v4644
    %v4651 = vld [vmem:[%s6] sm:$0xff]
    %v4652 = vld [vmem:[%s6 + $0x8] sm:$0xff]
    %v4653 = vld [vmem:[%s6 + $0x10] sm:$0xff]
    %v4654 = vld [vmem:[%s6 + $0x18] sm:$0xff]
    %4656 = vset.pattern.permute.xlu0 0
    %4657 = vperm.xlu0 %4656, %v4651
    %v4658 = vpop.permute.xlu0 %4657
    %4661 = vset.pattern.permute.xlu0 0
    %4662 = vperm.xlu0 %4661, %v4652
    %v4663 = vpop.permute.xlu0 %4662
    %4666 = vset.pattern.permute.xlu0 0
    %4667 = vperm.xlu0 %4666, %v4653
    %v4668 = vpop.permute.xlu0 %4667
    %4671 = vset.pattern.permute.xlu0 0
    %4672 = vperm.xlu0 %4671, %v4654
    %v4673 = vpop.permute.xlu0 %4672
    %v4675 = vadd.f32 %v4647, %v4658
    %v4676 = vadd.f32 %v4648, %v4663
    %v4677 = vadd.f32 %v4649, %v4668
    %v4678 = vadd.f32 %v4650, %v4673
    %4679 = vst.msk [vmem:[%s7] sm:$0xff] %vm219, %v4675
    %4680 = vst.msk [vmem:[%s7 + $0x8] sm:$0xff] %vm219, %v4676
    %4681 = vst.msk [vmem:[%s7 + $0x10] sm:$0xff] %vm219, %v4677
    %4682 = vst.msk [vmem:[%s7 + $0x18] sm:$0xff] %vm219, %v4678
    %4687 = vrot.lane.b32.xlu0 %v4675, 112
    %v4688 = vpop.permute.xlu0 %4687
    %4689 = vrot.lane.b32.xlu0 %v4676, 112
    %v4690 = vpop.permute.xlu0 %4689
    %4691 = vrot.lane.b32.xlu0 %v4677, 112
    %v4692 = vpop.permute.xlu0 %4691
    %4693 = vrot.lane.b32.xlu0 %v4678, 112
    %v4694 = vpop.permute.xlu0 %4693
    %s4699 = scalar_lea.vmem %s7, 32
    %4700 = vst.msk [vmem:[%s4699] sm:$0xff] %vm219, %v4688
    %4701 = vst.msk [vmem:[%s4699 + $0x8] sm:$0xff] %vm219, %v4690
    %4702 = vst.msk [vmem:[%s4699 + $0x10] sm:$0xff] %vm219, %v4692
    %4703 = vst.msk [vmem:[%s4699 + $0x18] sm:$0xff] %vm219, %v4694
    // Predicated region
    $region46: #{_forward_impl.1} parent=1 // pred_check
      _
    $region47: #{_forward_impl.1} parent=1 // pred_check_branch
      %4705 = sbr.rel (0) target = $region49
    $region48: #{_forward_impl.1} parent=1 // pred_region
      _
    $region49: #{_forward_impl.1} parent=1 // pred_fallthru
      _
    // Predicated region
    $region50: #{_forward_impl.1} parent=1 // pred_check
      _
    $region51: #{_forward_impl.1} parent=1 // pred_check_branch
      %4707 = sbr.rel (0) target = $region53
    $region52: #{_forward_impl.1} parent=1 // pred_region
      _
    $region53: #{_forward_impl.1} parent=1 // pred_fallthru
      _
    // Predicated region
    $region54: #{_forward_impl.1} parent=1 // pred_check
      _
    $region55: #{_forward_impl.1} parent=1 // pred_check_branch
      %4709 = sbr.rel (0) target = $region57
    $region56: #{_forward_impl.1} parent=1 // pred_region
      _
    $region57: #{_forward_impl.1} parent=1 // pred_fallthru
      _
    // Predicated region
    $region58: #{_forward_impl.1} parent=1 // pred_check
      _
    $region59: #{_forward_impl.1} parent=1 // pred_check_branch
      %4711 = sbr.rel (0) target = $region61
    $region60: #{_forward_impl.1} parent=1 // pred_region
      _
    $region61: #{_forward_impl.1} parent=1 // pred_fallthru
      _
    // Predicated region
    $region62: #{_forward_impl.1} parent=1 // pred_check
      _
    $region63: #{_forward_impl.1} parent=1 // pred_check_branch
      %4713 = sbr.rel (0) target = $region65
    $region64: #{_forward_impl.1} parent=1 // pred_region
      _
    $region65: #{_forward_impl.1} parent=1 // pred_fallthru
      _
    // Predicated region
    $region66: #{_forward_impl.1} parent=1 // pred_check
      _
    $region67: #{_forward_impl.1} parent=1 // pred_check_branch
      %4715 = sbr.rel (0) target = $region69
    $region68: #{_forward_impl.1} parent=1 // pred_region
      _
    $region69: #{_forward_impl.1} parent=1 // pred_fallthru
      _
    // Predicated region
    $region70: #{_forward_impl.1} parent=1 // pred_check
      _
    $region71: #{_forward_impl.1} parent=1 // pred_check_branch
      %4717 = sbr.rel (0) target = $region73
    $region72: #{_forward_impl.1} parent=1 // pred_region
      _
    $region73: #{_forward_impl.1} parent=1 // pred_fallthru
      _
    // Predicated region
    $region74: #{_forward_impl.1} parent=1 // pred_check
      _
    $region75: #{_forward_impl.1} parent=1 // pred_check_branch
      %4719 = sbr.rel (0) target = $region77
    $region76: #{_forward_impl.1} parent=1 // pred_region
      _
    $region77: #{_forward_impl.1} parent=1 // pred_fallthru
      _
    // Predicated region
    $region78: #{_forward_impl.1} parent=1 // pred_check
      _
    $region79: #{_forward_impl.1} parent=1 // pred_check_branch
      %4721 = sbr.rel (0) target = $region81
    $region80: #{_forward_impl.1} parent=1 // pred_region
      _
    $region81: #{_forward_impl.1} parent=1 // pred_fallthru
      _
    // Predicated region
    $region82: #{_forward_impl.1} parent=1 // pred_check
      _
    $region83: #{_forward_impl.1} parent=1 // pred_check_branch
      %4723 = sbr.rel (0) target = $region85
    $region84: #{_forward_impl.1} parent=1 // pred_region
      _
    $region85: #{_forward_impl.1} parent=1 // pred_fallthru
      _
    %4724 = vsyncpa [#allocation4], 1
    %4725 = vsyncpa [#allocation6], 1
    %4726 = vsyncpa [#allocation9], 1

</llo_original>
